<compile_context>
chip_gen: v7x
topology: tpu7x:2x2x1
jax: 0.10.0
libtpu: 0.0.40
codegen_flags: <defaults>
</compile_context>

<pallas_src>
import functools

import jax
import jax.numpy as jnp
import numpy as np
from jax.experimental import pallas as pl
from jax.experimental.pallas import tpu as pltpu


def _fused_tcn_kernel(x_ref, *refs, conv_meta):
    """Fused dilated-causal-conv + bias + ReLU stack.

    x_ref : [T, Mb, Cin0]   bf16 activation tile (time leading, channels-last)
    refs  : w0, b0, w1, b1, ..., o_ref, bufA, bufB
            w : [K, Cin, Cout] bf16, b : [1, Cout] f32
    bufA/bufB : [(Kmax-1)*dmax + T, Mb, Cmax] bf16 ping-pong staging buffers.
    """
    n = len(conv_meta)
    w_refs = [refs[2 * c] for c in range(n)]
    b_refs = [refs[2 * c + 1] for c in range(n)]
    o_ref = refs[2 * n]
    bufs = (refs[2 * n + 1], refs[2 * n + 2])

    T, Mb, _ = x_ref.shape

    # Stage conv-0 input (already bf16): causal zero pad + activation, cast-free.
    K0, Cin0, _, d0 = conv_meta[0]
    pad0 = (K0 - 1) * d0
    if pad0 > 0:
        bufs[0][0:pad0, :, 0:Cin0] = jnp.zeros((pad0, Mb, Cin0), bufs[0].dtype)
    bufs[0][pad0:pad0 + T, :, 0:Cin0] = x_ref[...]

    for c in range(n):  # static unroll over convs (2 per TemporalBlock2d)
        K, Cin, Cout, d = conv_meta[c]
        src = bufs[c % 2]

        # Uninterrupted MXU accumulation chain (v7x MRB accumulates in place);
        # accumulator comes straight from tap 0 — no zeros pass.
        x0 = src[0:d * 0 + 0:, :, :] if False else src[0:T, :, 0:Cin]
        acc = jnp.dot(x0.reshape(T * Mb, Cin), w_refs[c][0],
                      preferred_element_type=jnp.float32)
        for k in range(1, K):  # static unroll over kernel taps
            off = k * d  # leading-dim offset: free address arithmetic
            xk = src[off:off + T, :, 0:Cin].reshape(T * Mb, Cin)
            acc = acc + jnp.dot(xk, w_refs[c][k],
                                preferred_element_type=jnp.float32)

        acc = acc + b_refs[c][...]                        # f32 bias broadcast [1, Cout]
        h = jnp.maximum(acc, 0.0).reshape(T, Mb, Cout)    # ReLU (f32 on VPU)
        # TODO(synk): nn.Dropout omitted — eval/inference semantics (identity).

        if c + 1 < n:
            Kn, Cin_n, _, dn = conv_meta[c + 1]
            pn = (Kn - 1) * dn
            dst = bufs[(c + 1) % 2]
            if pn > 0:
                dst[0:pn, :, 0:Cin_n] = jnp.zeros((pn, Mb, Cin_n), dst.dtype)
            dst[pn:pn + T, :, 0:Cin_n] = h.astype(dst.dtype)   # single bf16 cast
        else:
            o_ref[...] = h.astype(o_ref.dtype)


def _padded_vmem_bytes(shape, dtype):
    """Lane/sublane-padded VMEM footprint of one buffer (last dim -> 128 lanes)."""
    it = int(np.dtype(dtype).itemsize)
    sub = 8 * max(1, 4 // it)           # f32 -> 8 sublanes, bf16 -> 16, int8 -> 32
    shape = tuple(int(s) for s in shape)
    if len(shape) < 2:
        shape = (1,) * (2 - len(shape)) + shape
    lanes = 128 * ((shape[-1] + 127) // 128)
    subl = sub * ((shape[-2] + sub - 1) // sub)
    rest = 1
    for s in shape[:-2]:
        rest *= s
    return rest * subl * lanes * it


def tcn2d_forward(x, params, *, block_m=256, vmem_target_bytes=40 << 20):
    """x: [B, num_nodes, num_features, T] -> [B, C_out, num_nodes, T] (PyTorch layout)."""
    B, N, F, T = x.shape
    M = B * N
    convs = [cv for layer in params for cv in layer]          # [(w[K,Cin,Cout], b, dil)]
    conv_meta = tuple((int(w.shape[0]), int(w.shape[1]), int(w.shape[2]), int(d))
                      for (w, _, d) in convs)
    C_final = conv_meta[-1][2]
    Cmax = max(m[1] for m in conv_meta)
    buf_rows = max((m[0] - 1) * m[3] for m in conv_meta) + T   # max causal pad + T

    # permute(0,2,1,3) + conv over (1,K) never mixes nodes -> fold (B,N) into M and use
    # a time-leading channels-last layout [T, M, F]. bf16 cast rides on this transpose.
    h = jnp.transpose(x, (3, 0, 1, 2)).reshape(T, M, F).astype(jnp.bfloat16)

    # --- M tiling: multiple of 16 (bf16 sublane packing), divisor-aware (minimal
    #     zero-row padding), >=2 tiles when possible (v7x megacore), VMEM-capped. ---
    SUB = 16
    block_m = max(SUB, (block_m // SUB) * SUB)
    M16 = ((M + SUB - 1) // SUB) * SUB
    min_tiles = 2 if M16 >= 2 * SUB else 1

    def _mb(nt):
        per = -(-M16 // nt)
        return max(SUB, -(-per // SUB) * SUB)

    def _vmem_estimate(mb):
        est = 2 * _padded_vmem_bytes((T, mb, F), jnp.bfloat16)             # in dbl-buf
        est += 2 * _padded_vmem_bytes((T, mb, C_final), x.dtype)           # out dbl-buf
        est += 2 * _padded_vmem_bytes((buf_rows, mb, Cmax), jnp.bfloat16)  # ping-pong
        for (K, Cin, Cout, _) in conv_meta:
            est += 2 * _padded_vmem_bytes((K, Cin, Cout), jnp.bfloat16)
            est += 2 * _padded_vmem_bytes((1, Cout), jnp.float32)
        return est

    base = max(min_tiles, -(-M16 // block_m))
    best = None
    for nt in range(base, base + 8):          # small search: minimize padded rows,
        mb = _mb(nt)                          # tie-break to fewer/bigger tiles.
        cand = (nt * mb, nt, mb)
        if best is None or cand[:2] < best[:2]:
            best = cand
    n_tiles, MB = best[1], best[2]
    while _vmem_estimate(MB) > vmem_target_bytes and MB > SUB:
        n_tiles += 1
        MB = _mb(n_tiles)
    Mp = n_tiles * MB
    if Mp != M:
        h = jnp.pad(h, ((0, 0), (0, Mp - M), (0, 0)))

    flat_inputs = [h]
    in_specs = [pl.BlockSpec((T, MB, F), lambda i: (0, i, 0))]
    for (w, b, _) in convs:
        K, Cin, Cout = (int(s) for s in w.shape)
        flat_inputs += [w.astype(jnp.bfloat16),
                        b.reshape(1, Cout).astype(jnp.float32)]
        in_specs += [pl.BlockSpec((K, Cin, Cout), lambda i: (0, 0, 0)),
                     pl.BlockSpec((1, Cout), lambda i: (0, 0))]

    scratch = [pltpu.VMEM((buf_rows, MB, Cmax), jnp.bfloat16),   # ping-pong staging
               pltpu.VMEM((buf_rows, MB, Cmax), jnp.bfloat16)]

    vmem_limit = int(min(96 << 20, max(32 << 20, 2 * _vmem_estimate(MB))))

    out = pl.pallas_call(
        functools.partial(_fused_tcn_kernel, conv_meta=conv_meta),
        out_shape=jax.ShapeDtypeStruct((T, Mp, C_final), x.dtype),
        grid_spec=pltpu.PrefetchScalarGridSpec(
            num_scalar_prefetch=0,
            grid=(n_tiles,),
            in_specs=in_specs,
            out_specs=pl.BlockSpec((T, MB, C_final), lambda i: (0, i, 0)),
            scratch_shapes=scratch,
        ),
        compiler_params=pltpu.CompilerParams(
            dimension_semantics=("parallel",),   # rows independent -> megacore on v7x
            vmem_limit_bytes=vmem_limit,
        ),
    )(*flat_inputs)

    out = out[:, :M, :]                                        # drop row padding
    return out.reshape(T, B, N, C_final).transpose(1, 3, 2, 0)  # [B, C_out, N, T]


def make_tcn_params(key, input_size, output_size, num_channels, kernel_size):
    """Deterministic parameter init matching the module's shapes.

    Each conv is weight-normed: w = g * v / ||v||_(in,kh,kw); at init g = ||v||, so
    the effective weight equals the raw normal(0, 0.01) draw (as in the module).
    Loading a trained checkpoint would require recomputing w = g*v/||v|| here.
    """
    params = []
    num_levels = len(num_channels)
    for i in range(num_levels):
        dilation = 2 ** i
        cin = input_size if i == 0 else num_channels[i - 1]
        cout = output_size if i == num_levels - 1 else num_channels[i]
        layer = []
        for ci, co in ((cin, cout), (cout, cout)):   # conv1, conv2 of TemporalBlock2d
            key, kw, kb = jax.random.split(key, 3)
            v = 0.01 * jax.random.normal(kw, (co, ci, 1, kernel_size), jnp.float32)
            norm = jnp.sqrt(jnp.sum(v * v, axis=(1, 2, 3), keepdims=True))
            g = norm                                  # weight_norm init: g = ||v||
            w = g * v / jnp.maximum(norm, 1e-12)      # effective weight (== v at init)
            bound = 1.0 / np.sqrt(ci * kernel_size)
            bias = jax.random.uniform(kb, (co,), jnp.float32, -bound, bound)
            # PyTorch OIHW [co, ci, 1, K]  ->  kernel layout [K, Cin, Cout]
            w_k = jnp.transpose(w[:, :, 0, :], (2, 1, 0))
            layer.append((w_k, bias, dilation))
        params.append(layer)
    return params


def _reference_forward(x, params):
    """Pure-JAX reference mirroring the kernel math (bf16 MXU inputs, f32 accumulate)."""
    B, N, F, T = x.shape
    h = jnp.transpose(x, (3, 0, 1, 2)).reshape(T, B * N, F)
    for layer in params:
        for (w, b, d) in layer:
            K, Cin, Cout = w.shape
            pad = (K - 1) * d
            hb = jnp.pad(h.astype(jnp.bfloat16), ((pad, 0), (0, 0), (0, 0)))
            wb = w.astype(jnp.bfloat16)
            acc = jnp.zeros((T, h.shape[1], Cout), jnp.float32)
            for k in range(K):
                acc = acc + jax.lax.dot_general(
                    hb[k * d:k * d + T], wb[k],
                    dimension_numbers=(((2,), (0,)), ((), ())),
                    preferred_element_type=jnp.float32)
            h = jnp.maximum(acc + b[None, None, :], 0.0)
    C = h.shape[-1]
    return h.reshape(T, B, N, C).transpose(1, 3, 2, 0)


if __name__ == "__main__":
    # Small shapes consistent with the module:
    #   x: [batch=2, num_nodes=4, num_features=input_size=8, num_time_steps=16]
    B, N, F, T = 2, 4, 8, 16
    input_size, output_size = F, 32
    num_channels, kernel_size = [32, 32], 3

    key = jax.random.PRNGKey(0)
    kx, kp = jax.random.split(key)
    x = jax.random.normal(kx, (B, N, F, T), jnp.float32)
    params = make_tcn_params(kp, input_size, output_size, num_channels, kernel_size)

    out = jax.block_until_ready(tcn2d_forward(x, params))
    ref = jax.block_until_ready(_reference_forward(x, params))

    assert out.shape == (B, output_size, N, T), out.shape
    np.testing.assert_allclose(np.asarray(out), np.asarray(ref), rtol=1e-3, atol=1e-4)
    print("KERNEL_OK")
</pallas_src>

<mosaic_0001>
module attributes {stable_mosaic.version = 11 : i64} {
  func.func @_fused_tcn_kernel(%arg0: i32, %arg1: memref<16x16x8xbf16, #tpu.memory_space<vmem>>, %arg2: memref<3x8x32xbf16, #tpu.memory_space<vmem>>, %arg3: memref<1x32xf32, #tpu.memory_space<vmem>>, %arg4: memref<3x32x32xbf16, #tpu.memory_space<vmem>>, %arg5: memref<1x32xf32, #tpu.memory_space<vmem>>, %arg6: memref<3x32x32xbf16, #tpu.memory_space<vmem>>, %arg7: memref<1x32xf32, #tpu.memory_space<vmem>>, %arg8: memref<3x32x32xbf16, #tpu.memory_space<vmem>>, %arg9: memref<1x32xf32, #tpu.memory_space<vmem>>, %arg10: memref<16x16x32xf32, #tpu.memory_space<vmem>>, %arg11: memref<20x16x32xbf16, #tpu.memory_space<vmem>>, %arg12: memref<20x16x32xbf16, #tpu.memory_space<vmem>>) attributes {dimension_semantics = [#tpu.dimension_semantics<parallel>], iteration_bounds = array<i64: 1>, scalar_prefetch = 0 : i64, scratch_operands = 2 : i64, tpu.core_type = #tpu.core_type<tc>, window_params = [{transform_indices = @transform_0, window_bounds = array<i64: 16, 16, 8>}, {pipeline_mode = #tpu.pipeline_mode<synchronous>, transform_indices = @transform_1, window_bounds = array<i64: 3, 8, 32>}, {pipeline_mode = #tpu.pipeline_mode<synchronous>, transform_indices = @transform_2, window_bounds = array<i64: 1, 32>}, {pipeline_mode = #tpu.pipeline_mode<synchronous>, transform_indices = @transform_3, window_bounds = array<i64: 3, 32, 32>}, {pipeline_mode = #tpu.pipeline_mode<synchronous>, transform_indices = @transform_4, window_bounds = array<i64: 1, 32>}, {pipeline_mode = #tpu.pipeline_mode<synchronous>, transform_indices = @transform_5, window_bounds = array<i64: 3, 32, 32>}, {pipeline_mode = #tpu.pipeline_mode<synchronous>, transform_indices = @transform_6, window_bounds = array<i64: 1, 32>}, {pipeline_mode = #tpu.pipeline_mode<synchronous>, transform_indices = @transform_7, window_bounds = array<i64: 3, 32, 32>}, {pipeline_mode = #tpu.pipeline_mode<synchronous>, transform_indices = @transform_8, window_bounds = array<i64: 1, 32>}, {transform_indices = @transform_9, window_bounds = array<i64: 16, 16, 32>}]} {
    %cst = arith.constant 0.000000e+00 : bf16
    %0 = vector.broadcast %cst : bf16 to vector<2x16x8xbf16>
    %c0 = arith.constant 0 : index
    %c0_0 = arith.constant 0 : index
    %c0_1 = arith.constant 0 : index
    %1 = vector.load %arg11[%c0, %c0_0, %c0_1] : memref<20x16x32xbf16, #tpu.memory_space<vmem>>, vector<2x16x8xbf16>
    tpu.vector_store %arg11[%c0, %c0_0, %c0_1], %0 {strides = array<i32>} : memref<20x16x32xbf16, #tpu.memory_space<vmem>>, vector<2x16x8xbf16>,
    %c0_2 = arith.constant 0 : index
    %c0_3 = arith.constant 0 : index
    %c0_4 = arith.constant 0 : index
    %2 = vector.load %arg1[%c0_2, %c0_3, %c0_4] : memref<16x16x8xbf16, #tpu.memory_space<vmem>>, vector<16x16x8xbf16>
    %c2 = arith.constant 2 : index
    %c0_5 = arith.constant 0 : index
    %c0_6 = arith.constant 0 : index
    %3 = vector.load %arg11[%c2, %c0_5, %c0_6] : memref<20x16x32xbf16, #tpu.memory_space<vmem>>, vector<16x16x8xbf16>
    tpu.vector_store %arg11[%c2, %c0_5, %c0_6], %2 {strides = array<i32>} : memref<20x16x32xbf16, #tpu.memory_space<vmem>>, vector<16x16x8xbf16>,
    %c0_7 = arith.constant 0 : index
    %c0_8 = arith.constant 0 : index
    %c0_9 = arith.constant 0 : index
    %4 = vector.load %arg11[%c0_7, %c0_8, %c0_9] : memref<20x16x32xbf16, #tpu.memory_space<vmem>>, vector<16x16x8xbf16>
    %5 = vector.shape_cast %4 : vector<16x16x8xbf16> to vector<256x8xbf16>
    %c0_10 = arith.constant 0 : index
    %c0_11 = arith.constant 0 : index
    %c0_12 = arith.constant 0 : index
    %6 = vector.load %arg2[%c0_10, %c0_11, %c0_12] : memref<3x8x32xbf16, #tpu.memory_space<vmem>>, vector<1x8x32xbf16>
    %7 = vector.shape_cast %6 : vector<1x8x32xbf16> to vector<8x32xbf16>
    %cst_13 = arith.constant dense<0.000000e+00> : vector<256x32xf32>
    %8 = tpu.matmul %5, %7, %cst_13 {dimension_numbers = #tpu.dot_dimension_numbers<[1], [0], [0], [1], [0, 0, 1, 1], [], []>} : vector<256x8xbf16>, vector<8x32xbf16>, vector<256x32xf32> -> vector<256x32xf32>
    %c1 = arith.constant 1 : index
    %c0_14 = arith.constant 0 : index
    %c0_15 = arith.constant 0 : index
    %9 = vector.load %arg11[%c1, %c0_14, %c0_15] : memref<20x16x32xbf16, #tpu.memory_space<vmem>>, vector<16x16x8xbf16>
    %10 = vector.shape_cast %9 : vector<16x16x8xbf16> to vector<256x8xbf16>
    %c1_16 = arith.constant 1 : index
    %c0_17 = arith.constant 0 : index
    %c0_18 = arith.constant 0 : index
    %11 = vector.load %arg2[%c1_16, %c0_17, %c0_18] : memref<3x8x32xbf16, #tpu.memory_space<vmem>>, vector<1x8x32xbf16>
    %12 = vector.shape_cast %11 : vector<1x8x32xbf16> to vector<8x32xbf16>
    %cst_19 = arith.constant dense<0.000000e+00> : vector<256x32xf32>
    %13 = tpu.matmul %10, %12, %cst_19 {dimension_numbers = #tpu.dot_dimension_numbers<[1], [0], [0], [1], [0, 0, 1, 1], [], []>} : vector<256x8xbf16>, vector<8x32xbf16>, vector<256x32xf32> -> vector<256x32xf32>
    %14 = arith.addf %8, %13 : vector<256x32xf32>
    %c2_20 = arith.constant 2 : index
    %c0_21 = arith.constant 0 : index
    %c0_22 = arith.constant 0 : index
    %15 = vector.load %arg11[%c2_20, %c0_21, %c0_22] : memref<20x16x32xbf16, #tpu.memory_space<vmem>>, vector<16x16x8xbf16>
    %16 = vector.shape_cast %15 : vector<16x16x8xbf16> to vector<256x8xbf16>
    %c2_23 = arith.constant 2 : index
    %c0_24 = arith.constant 0 : index
    %c0_25 = arith.constant 0 : index
    %17 = vector.load %arg2[%c2_23, %c0_24, %c0_25] : memref<3x8x32xbf16, #tpu.memory_space<vmem>>, vector<1x8x32xbf16>
    %18 = vector.shape_cast %17 : vector<1x8x32xbf16> to vector<8x32xbf16>
    %cst_26 = arith.constant dense<0.000000e+00> : vector<256x32xf32>
    %19 = tpu.matmul %16, %18, %cst_26 {dimension_numbers = #tpu.dot_dimension_numbers<[1], [0], [0], [1], [0, 0, 1, 1], [], []>} : vector<256x8xbf16>, vector<8x32xbf16>, vector<256x32xf32> -> vector<256x32xf32>
    %20 = arith.addf %14, %19 : vector<256x32xf32>
    %c0_27 = arith.constant 0 : index
    %c0_28 = arith.constant 0 : index
    %21 = vector.load %arg3[%c0_27, %c0_28] : memref<1x32xf32, #tpu.memory_space<vmem>>, vector<1x32xf32>
    %22 = vector.broadcast %21 : vector<1x32xf32> to vector<256x32xf32>
    %23 = arith.addf %20, %22 : vector<256x32xf32>
    %cst_29 = arith.constant 0.000000e+00 : f32
    %24 = vector.broadcast %cst_29 : f32 to vector<256x32xf32>
    %25 = arith.maximumf %23, %24 : vector<256x32xf32>
    %26 = vector.shape_cast %25 : vector<256x32xf32> to vector<16x16x32xf32>
    %cst_30 = arith.constant 0.000000e+00 : bf16
    %27 = vector.broadcast %cst_30 : bf16 to vector<2x16x32xbf16>
    %c0_31 = arith.constant 0 : index
    %c0_32 = arith.constant 0 : index
    %c0_33 = arith.constant 0 : index
    %28 = vector.load %arg12[%c0_31, %c0_32, %c0_33] : memref<20x16x32xbf16, #tpu.memory_space<vmem>>, vector<2x16x32xbf16>
    tpu.vector_store %arg12[%c0_31, %c0_32, %c0_33], %27 {strides = array<i32>} : memref<20x16x32xbf16, #tpu.memory_space<vmem>>, vector<2x16x32xbf16>,
    %29 = arith.truncf %26 : vector<16x16x32xf32> to vector<16x16x32xbf16>
    %c2_34 = arith.constant 2 : index
    %c0_35 = arith.constant 0 : index
    %c0_36 = arith.constant 0 : index
    %30 = vector.load %arg12[%c2_34, %c0_35, %c0_36] : memref<20x16x32xbf16, #tpu.memory_space<vmem>>, vector<16x16x32xbf16>
    tpu.vector_store %arg12[%c2_34, %c0_35, %c0_36], %29 {strides = array<i32>} : memref<20x16x32xbf16, #tpu.memory_space<vmem>>, vector<16x16x32xbf16>,
    %c0_37 = arith.constant 0 : index
    %c0_38 = arith.constant 0 : index
    %c0_39 = arith.constant 0 : index
    %31 = vector.load %arg12[%c0_37, %c0_38, %c0_39] : memref<20x16x32xbf16, #tpu.memory_space<vmem>>, vector<16x16x32xbf16>
    %32 = vector.shape_cast %31 : vector<16x16x32xbf16> to vector<256x32xbf16>
    %c0_40 = arith.constant 0 : index
    %c0_41 = arith.constant 0 : index
    %c0_42 = arith.constant 0 : index
    %33 = vector.load %arg4[%c0_40, %c0_41, %c0_42] : memref<3x32x32xbf16, #tpu.memory_space<vmem>>, vector<1x32x32xbf16>
    %34 = vector.shape_cast %33 : vector<1x32x32xbf16> to vector<32x32xbf16>
    %cst_43 = arith.constant dense<0.000000e+00> : vector<256x32xf32>
    %35 = tpu.matmul %32, %34, %cst_43 {dimension_numbers = #tpu.dot_dimension_numbers<[1], [0], [0], [1], [0, 0, 1, 1], [], []>} : vector<256x32xbf16>, vector<32x32xbf16>, vector<256x32xf32> -> vector<256x32xf32>
    %c1_44 = arith.constant 1 : index
    %c0_45 = arith.constant 0 : index
    %c0_46 = arith.constant 0 : index
    %36 = vector.load %arg12[%c1_44, %c0_45, %c0_46] : memref<20x16x32xbf16, #tpu.memory_space<vmem>>, vector<16x16x32xbf16>
    %37 = vector.shape_cast %36 : vector<16x16x32xbf16> to vector<256x32xbf16>
    %c1_47 = arith.constant 1 : index
    %c0_48 = arith.constant 0 : index
    %c0_49 = arith.constant 0 : index
    %38 = vector.load %arg4[%c1_47, %c0_48, %c0_49] : memref<3x32x32xbf16, #tpu.memory_space<vmem>>, vector<1x32x32xbf16>
    %39 = vector.shape_cast %38 : vector<1x32x32xbf16> to vector<32x32xbf16>
    %cst_50 = arith.constant dense<0.000000e+00> : vector<256x32xf32>
    %40 = tpu.matmul %37, %39, %cst_50 {dimension_numbers = #tpu.dot_dimension_numbers<[1], [0], [0], [1], [0, 0, 1, 1], [], []>} : vector<256x32xbf16>, vector<32x32xbf16>, vector<256x32xf32> -> vector<256x32xf32>
    %41 = arith.addf %35, %40 : vector<256x32xf32>
    %c2_51 = arith.constant 2 : index
    %c0_52 = arith.constant 0 : index
    %c0_53 = arith.constant 0 : index
    %42 = vector.load %arg12[%c2_51, %c0_52, %c0_53] : memref<20x16x32xbf16, #tpu.memory_space<vmem>>, vector<16x16x32xbf16>
    %43 = vector.shape_cast %42 : vector<16x16x32xbf16> to vector<256x32xbf16>
    %c2_54 = arith.constant 2 : index
    %c0_55 = arith.constant 0 : index
    %c0_56 = arith.constant 0 : index
    %44 = vector.load %arg4[%c2_54, %c0_55, %c0_56] : memref<3x32x32xbf16, #tpu.memory_space<vmem>>, vector<1x32x32xbf16>
    %45 = vector.shape_cast %44 : vector<1x32x32xbf16> to vector<32x32xbf16>
    %cst_57 = arith.constant dense<0.000000e+00> : vector<256x32xf32>
    %46 = tpu.matmul %43, %45, %cst_57 {dimension_numbers = #tpu.dot_dimension_numbers<[1], [0], [0], [1], [0, 0, 1, 1], [], []>} : vector<256x32xbf16>, vector<32x32xbf16>, vector<256x32xf32> -> vector<256x32xf32>
    %47 = arith.addf %41, %46 : vector<256x32xf32>
    %c0_58 = arith.constant 0 : index
    %c0_59 = arith.constant 0 : index
    %48 = vector.load %arg5[%c0_58, %c0_59] : memref<1x32xf32, #tpu.memory_space<vmem>>, vector<1x32xf32>
    %49 = vector.broadcast %48 : vector<1x32xf32> to vector<256x32xf32>
    %50 = arith.addf %47, %49 : vector<256x32xf32>
    %cst_60 = arith.constant 0.000000e+00 : f32
    %51 = vector.broadcast %cst_60 : f32 to vector<256x32xf32>
    %52 = arith.maximumf %50, %51 : vector<256x32xf32>
    %53 = vector.shape_cast %52 : vector<256x32xf32> to vector<16x16x32xf32>
    %cst_61 = arith.constant 0.000000e+00 : bf16
    %54 = vector.broadcast %cst_61 : bf16 to vector<4x16x32xbf16>
    %c0_62 = arith.constant 0 : index
    %c0_63 = arith.constant 0 : index
    %c0_64 = arith.constant 0 : index
    %55 = vector.load %arg11[%c0_62, %c0_63, %c0_64] : memref<20x16x32xbf16, #tpu.memory_space<vmem>>, vector<4x16x32xbf16>
    tpu.vector_store %arg11[%c0_62, %c0_63, %c0_64], %54 {strides = array<i32>} : memref<20x16x32xbf16, #tpu.memory_space<vmem>>, vector<4x16x32xbf16>,
    %56 = arith.truncf %53 : vector<16x16x32xf32> to vector<16x16x32xbf16>
    %c4 = arith.constant 4 : index
    %c0_65 = arith.constant 0 : index
    %c0_66 = arith.constant 0 : index
    %57 = vector.load %arg11[%c4, %c0_65, %c0_66] : memref<20x16x32xbf16, #tpu.memory_space<vmem>>, vector<16x16x32xbf16>
    tpu.vector_store %arg11[%c4, %c0_65, %c0_66], %56 {strides = array<i32>} : memref<20x16x32xbf16, #tpu.memory_space<vmem>>, vector<16x16x32xbf16>,
    %c0_67 = arith.constant 0 : index
    %c0_68 = arith.constant 0 : index
    %c0_69 = arith.constant 0 : index
    %58 = vector.load %arg11[%c0_67, %c0_68, %c0_69] : memref<20x16x32xbf16, #tpu.memory_space<vmem>>, vector<16x16x32xbf16>
    %59 = vector.shape_cast %58 : vector<16x16x32xbf16> to vector<256x32xbf16>
    %c0_70 = arith.constant 0 : index
    %c0_71 = arith.constant 0 : index
    %c0_72 = arith.constant 0 : index
    %60 = vector.load %arg6[%c0_70, %c0_71, %c0_72] : memref<3x32x32xbf16, #tpu.memory_space<vmem>>, vector<1x32x32xbf16>
    %61 = vector.shape_cast %60 : vector<1x32x32xbf16> to vector<32x32xbf16>
    %cst_73 = arith.constant dense<0.000000e+00> : vector<256x32xf32>
    %62 = tpu.matmul %59, %61, %cst_73 {dimension_numbers = #tpu.dot_dimension_numbers<[1], [0], [0], [1], [0, 0, 1, 1], [], []>} : vector<256x32xbf16>, vector<32x32xbf16>, vector<256x32xf32> -> vector<256x32xf32>
    %c2_74 = arith.constant 2 : index
    %c0_75 = arith.constant 0 : index
    %c0_76 = arith.constant 0 : index
    %63 = vector.load %arg11[%c2_74, %c0_75, %c0_76] : memref<20x16x32xbf16, #tpu.memory_space<vmem>>, vector<16x16x32xbf16>
    %64 = vector.shape_cast %63 : vector<16x16x32xbf16> to vector<256x32xbf16>
    %c1_77 = arith.constant 1 : index
    %c0_78 = arith.constant 0 : index
    %c0_79 = arith.constant 0 : index
    %65 = vector.load %arg6[%c1_77, %c0_78, %c0_79] : memref<3x32x32xbf16, #tpu.memory_space<vmem>>, vector<1x32x32xbf16>
    %66 = vector.shape_cast %65 : vector<1x32x32xbf16> to vector<32x32xbf16>
    %cst_80 = arith.constant dense<0.000000e+00> : vector<256x32xf32>
    %67 = tpu.matmul %64, %66, %cst_80 {dimension_numbers = #tpu.dot_dimension_numbers<[1], [0], [0], [1], [0, 0, 1, 1], [], []>} : vector<256x32xbf16>, vector<32x32xbf16>, vector<256x32xf32> -> vector<256x32xf32>
    %68 = arith.addf %62, %67 : vector<256x32xf32>
    %c4_81 = arith.constant 4 : index
    %c0_82 = arith.constant 0 : index
    %c0_83 = arith.constant 0 : index
    %69 = vector.load %arg11[%c4_81, %c0_82, %c0_83] : memref<20x16x32xbf16, #tpu.memory_space<vmem>>, vector<16x16x32xbf16>
    %70 = vector.shape_cast %69 : vector<16x16x32xbf16> to vector<256x32xbf16>
    %c2_84 = arith.constant 2 : index
    %c0_85 = arith.constant 0 : index
    %c0_86 = arith.constant 0 : index
    %71 = vector.load %arg6[%c2_84, %c0_85, %c0_86] : memref<3x32x32xbf16, #tpu.memory_space<vmem>>, vector<1x32x32xbf16>
    %72 = vector.shape_cast %71 : vector<1x32x32xbf16> to vector<32x32xbf16>
    %cst_87 = arith.constant dense<0.000000e+00> : vector<256x32xf32>
    %73 = tpu.matmul %70, %72, %cst_87 {dimension_numbers = #tpu.dot_dimension_numbers<[1], [0], [0], [1], [0, 0, 1, 1], [], []>} : vector<256x32xbf16>, vector<32x32xbf16>, vector<256x32xf32> -> vector<256x32xf32>
    %74 = arith.addf %68, %73 : vector<256x32xf32>
    %c0_88 = arith.constant 0 : index
    %c0_89 = arith.constant 0 : index
    %75 = vector.load %arg7[%c0_88, %c0_89] : memref<1x32xf32, #tpu.memory_space<vmem>>, vector<1x32xf32>
    %76 = vector.broadcast %75 : vector<1x32xf32> to vector<256x32xf32>
    %77 = arith.addf %74, %76 : vector<256x32xf32>
    %cst_90 = arith.constant 0.000000e+00 : f32
    %78 = vector.broadcast %cst_90 : f32 to vector<256x32xf32>
    %79 = arith.maximumf %77, %78 : vector<256x32xf32>
    %80 = vector.shape_cast %79 : vector<256x32xf32> to vector<16x16x32xf32>
    %cst_91 = arith.constant 0.000000e+00 : bf16
    %81 = vector.broadcast %cst_91 : bf16 to vector<4x16x32xbf16>
    %c0_92 = arith.constant 0 : index
    %c0_93 = arith.constant 0 : index
    %c0_94 = arith.constant 0 : index
    %82 = vector.load %arg12[%c0_92, %c0_93, %c0_94] : memref<20x16x32xbf16, #tpu.memory_space<vmem>>, vector<4x16x32xbf16>
    tpu.vector_store %arg12[%c0_92, %c0_93, %c0_94], %81 {strides = array<i32>} : memref<20x16x32xbf16, #tpu.memory_space<vmem>>, vector<4x16x32xbf16>,
    %83 = arith.truncf %80 : vector<16x16x32xf32> to vector<16x16x32xbf16>
    %c4_95 = arith.constant 4 : index
    %c0_96 = arith.constant 0 : index
    %c0_97 = arith.constant 0 : index
    %84 = vector.load %arg12[%c4_95, %c0_96, %c0_97] : memref<20x16x32xbf16, #tpu.memory_space<vmem>>, vector<16x16x32xbf16>
    tpu.vector_store %arg12[%c4_95, %c0_96, %c0_97], %83 {strides = array<i32>} : memref<20x16x32xbf16, #tpu.memory_space<vmem>>, vector<16x16x32xbf16>,
    %c0_98 = arith.constant 0 : index
    %c0_99 = arith.constant 0 : index
    %c0_100 = arith.constant 0 : index
    %85 = vector.load %arg12[%c0_98, %c0_99, %c0_100] : memref<20x16x32xbf16, #tpu.memory_space<vmem>>, vector<16x16x32xbf16>
    %86 = vector.shape_cast %85 : vector<16x16x32xbf16> to vector<256x32xbf16>
    %c0_101 = arith.constant 0 : index
    %c0_102 = arith.constant 0 : index
    %c0_103 = arith.constant 0 : index
    %87 = vector.load %arg8[%c0_101, %c0_102, %c0_103] : memref<3x32x32xbf16, #tpu.memory_space<vmem>>, vector<1x32x32xbf16>
    %88 = vector.shape_cast %87 : vector<1x32x32xbf16> to vector<32x32xbf16>
    %cst_104 = arith.constant dense<0.000000e+00> : vector<256x32xf32>
    %89 = tpu.matmul %86, %88, %cst_104 {dimension_numbers = #tpu.dot_dimension_numbers<[1], [0], [0], [1], [0, 0, 1, 1], [], []>} : vector<256x32xbf16>, vector<32x32xbf16>, vector<256x32xf32> -> vector<256x32xf32>
    %c2_105 = arith.constant 2 : index
    %c0_106 = arith.constant 0 : index
    %c0_107 = arith.constant 0 : index
    %90 = vector.load %arg12[%c2_105, %c0_106, %c0_107] : memref<20x16x32xbf16, #tpu.memory_space<vmem>>, vector<16x16x32xbf16>
    %91 = vector.shape_cast %90 : vector<16x16x32xbf16> to vector<256x32xbf16>
    %c1_108 = arith.constant 1 : index
    %c0_109 = arith.constant 0 : index
    %c0_110 = arith.constant 0 : index
    %92 = vector.load %arg8[%c1_108, %c0_109, %c0_110] : memref<3x32x32xbf16, #tpu.memory_space<vmem>>, vector<1x32x32xbf16>
    %93 = vector.shape_cast %92 : vector<1x32x32xbf16> to vector<32x32xbf16>
    %cst_111 = arith.constant dense<0.000000e+00> : vector<256x32xf32>
    %94 = tpu.matmul %91, %93, %cst_111 {dimension_numbers = #tpu.dot_dimension_numbers<[1], [0], [0], [1], [0, 0, 1, 1], [], []>} : vector<256x32xbf16>, vector<32x32xbf16>, vector<256x32xf32> -> vector<256x32xf32>
    %95 = arith.addf %89, %94 : vector<256x32xf32>
    %c4_112 = arith.constant 4 : index
    %c0_113 = arith.constant 0 : index
    %c0_114 = arith.constant 0 : index
    %96 = vector.load %arg12[%c4_112, %c0_113, %c0_114] : memref<20x16x32xbf16, #tpu.memory_space<vmem>>, vector<16x16x32xbf16>
    %97 = vector.shape_cast %96 : vector<16x16x32xbf16> to vector<256x32xbf16>
    %c2_115 = arith.constant 2 : index
    %c0_116 = arith.constant 0 : index
    %c0_117 = arith.constant 0 : index
    %98 = vector.load %arg8[%c2_115, %c0_116, %c0_117] : memref<3x32x32xbf16, #tpu.memory_space<vmem>>, vector<1x32x32xbf16>
    %99 = vector.shape_cast %98 : vector<1x32x32xbf16> to vector<32x32xbf16>
    %cst_118 = arith.constant dense<0.000000e+00> : vector<256x32xf32>
    %100 = tpu.matmul %97, %99, %cst_118 {dimension_numbers = #tpu.dot_dimension_numbers<[1], [0], [0], [1], [0, 0, 1, 1], [], []>} : vector<256x32xbf16>, vector<32x32xbf16>, vector<256x32xf32> -> vector<256x32xf32>
    %101 = arith.addf %95, %100 : vector<256x32xf32>
    %c0_119 = arith.constant 0 : index
    %c0_120 = arith.constant 0 : index
    %102 = vector.load %arg9[%c0_119, %c0_120] : memref<1x32xf32, #tpu.memory_space<vmem>>, vector<1x32xf32>
    %103 = vector.broadcast %102 : vector<1x32xf32> to vector<256x32xf32>
    %104 = arith.addf %101, %103 : vector<256x32xf32>
    %cst_121 = arith.constant 0.000000e+00 : f32
    %105 = vector.broadcast %cst_121 : f32 to vector<256x32xf32>
    %106 = arith.maximumf %104, %105 : vector<256x32xf32>
    %107 = vector.shape_cast %106 : vector<256x32xf32> to vector<16x16x32xf32>
    %c0_122 = arith.constant 0 : index
    %c0_123 = arith.constant 0 : index
    %c0_124 = arith.constant 0 : index
    %108 = vector.load %arg10[%c0_122, %c0_123, %c0_124] : memref<16x16x32xf32, #tpu.memory_space<vmem>>, vector<16x16x32xf32>
    tpu.vector_store %arg10[%c0_122, %c0_123, %c0_124], %107 {strides = array<i32>} : memref<16x16x32xf32, #tpu.memory_space<vmem>>, vector<16x16x32xf32>,
    return
  }
  func.func @transform_0(%arg0: i32) -> (i32, i32, i32) {
    %c0_i32 = arith.constant 0 : i32
    %c0_i32_0 = arith.constant 0 : i32
    %c0_i32_1 = arith.constant 0 : i32
    return %c0_i32, %arg0, %c0_i32_0 : i32, i32, i32
  }
  func.func @transform_1(%arg0: i32) -> (i32, i32, i32) {
    %c0_i32 = arith.constant 0 : i32
    %c0_i32_0 = arith.constant 0 : i32
    %c0_i32_1 = arith.constant 0 : i32
    %c0_i32_2 = arith.constant 0 : i32
    return %c0_i32, %c0_i32_0, %c0_i32_1 : i32, i32, i32
  }
  func.func @transform_2(%arg0: i32) -> (i32, i32) {
    %c0_i32 = arith.constant 0 : i32
    %c0_i32_0 = arith.constant 0 : i32
    %c0_i32_1 = arith.constant 0 : i32
    return %c0_i32, %c0_i32_0 : i32, i32
  }
  func.func @transform_3(%arg0: i32) -> (i32, i32, i32) {
    %c0_i32 = arith.constant 0 : i32
    %c0_i32_0 = arith.constant 0 : i32
    %c0_i32_1 = arith.constant 0 : i32
    %c0_i32_2 = arith.constant 0 : i32
    return %c0_i32, %c0_i32_0, %c0_i32_1 : i32, i32, i32
  }
  func.func @transform_4(%arg0: i32) -> (i32, i32) {
    %c0_i32 = arith.constant 0 : i32
    %c0_i32_0 = arith.constant 0 : i32
    %c0_i32_1 = arith.constant 0 : i32
    return %c0_i32, %c0_i32_0 : i32, i32
  }
  func.func @transform_5(%arg0: i32) -> (i32, i32, i32) {
    %c0_i32 = arith.constant 0 : i32
    %c0_i32_0 = arith.constant 0 : i32
    %c0_i32_1 = arith.constant 0 : i32
    %c0_i32_2 = arith.constant 0 : i32
    return %c0_i32, %c0_i32_0, %c0_i32_1 : i32, i32, i32
  }
  func.func @transform_6(%arg0: i32) -> (i32, i32) {
    %c0_i32 = arith.constant 0 : i32
    %c0_i32_0 = arith.constant 0 : i32
    %c0_i32_1 = arith.constant 0 : i32
    return %c0_i32, %c0_i32_0 : i32, i32
  }
  func.func @transform_7(%arg0: i32) -> (i32, i32, i32) {
    %c0_i32 = arith.constant 0 : i32
    %c0_i32_0 = arith.constant 0 : i32
    %c0_i32_1 = arith.constant 0 : i32
    %c0_i32_2 = arith.constant 0 : i32
    return %c0_i32, %c0_i32_0, %c0_i32_1 : i32, i32, i32
  }
  func.func @transform_8(%arg0: i32) -> (i32, i32) {
    %c0_i32 = arith.constant 0 : i32
    %c0_i32_0 = arith.constant 0 : i32
    %c0_i32_1 = arith.constant 0 : i32
    return %c0_i32, %c0_i32_0 : i32, i32
  }
  func.func @transform_9(%arg0: i32) -> (i32, i32, i32) {
    %c0_i32 = arith.constant 0 : i32
    %c0_i32_0 = arith.constant 0 : i32
    %c0_i32_1 = arith.constant 0 : i32
    return %c0_i32, %arg0, %c0_i32_0 : i32, i32, i32
  }
}

</mosaic_0001>

<llo_original>
// kernel: tpu_custom_call.1
$region0: #{tpu_custom_call.1}
  #allocation0 [shape = 'u32[]', space=smem, size = 0x4, offset = 0x4, fixed_abs, tag = 'smem constant byte address 0x4 - core index']
  #allocation1 [shape = 'u32[144,128]{1,0:T(1,128)}', space=vmem, size = 0x12000, scoped, tag = 'internal scratch']
  #allocation2 [shape = 'bf16[20,16,32]{2,1,0:T(16,128)(2,1)}', space=vmem, size = 0x14000, scoped, tag = 'scratch operand']
  #allocation3 [shape = 'bf16[20,16,32]{2,1,0:T(16,128)(2,1)}', space=vmem, size = 0x14000, scoped, tag = 'scratch operand']
  %s0 = inlined_call_operand.vmem [shape: bf16[16,16,8], index: 0, kind: input, shape index: {}]
  %s1 = inlined_call_operand.vmem [shape: bf16[3,8,32], index: 1, kind: input, shape index: {}]
  %s2 = inlined_call_operand.vmem [shape: f32[1,32], index: 2, kind: input, shape index: {}]
  %s3 = inlined_call_operand.vmem [shape: bf16[3,32,32], index: 3, kind: input, shape index: {}]
  %s4 = inlined_call_operand.vmem [shape: f32[1,32], index: 4, kind: input, shape index: {}]
  %s5 = inlined_call_operand.vmem [shape: bf16[3,32,32], index: 5, kind: input, shape index: {}]
  %s6 = inlined_call_operand.vmem [shape: f32[1,32], index: 6, kind: input, shape index: {}]
  %s7 = inlined_call_operand.vmem [shape: bf16[3,32,32], index: 7, kind: input, shape index: {}]
  %s8 = inlined_call_operand.vmem [shape: f32[1,32], index: 8, kind: input, shape index: {}]
  %s9 = inlined_call_operand.hbm [shape: f32[16,16,32], index: 9, kind: output, shape index: {}]
  %s10 = sld [smem:[#allocation0]]
  $region46: #{tpu_custom_call.1} parent=0
    _
  %s12 = ssub.s32 1, %s10
  %s13 = scalar_select 0, %s12, %s10
  $region1: #{tpu_custom_call.1} parent=0
    #allocation4 [shape = 'u8[131072]{0}', space=vmem, size = 0x20000, scoped, tag = 'output window, operand 0, single buffered']
    #allocation5 [shape = 's32[1]{0}', space=sflag, size = 0x4, scoped, tag = 'scoped memory for tpu_custom_call.1']
    %14 = vsyncpa [#allocation5], 0
    // Predicated region
    $region2: #{tpu_custom_call.1} parent=1 // pred_check
      _
    $region3: #{tpu_custom_call.1} parent=1 // pred_check_branch
      %16 = sbr.rel (0) target = $region5
    $region4: #{tpu_custom_call.1} parent=1 // pred_region
      _
    $region5: #{tpu_custom_call.1} parent=1 // pred_fallthru
      _
    // Predicated region
    $region6: #{tpu_custom_call.1} parent=1 // pred_check
      _
    $region7: #{tpu_custom_call.1} parent=1 // pred_check_branch
      %18 = sbr.rel (0) target = $region9
    $region8: #{tpu_custom_call.1} parent=1 // pred_region
      _
    $region9: #{tpu_custom_call.1} parent=1 // pred_fallthru
      _
    // Predicated region
    $region10: #{tpu_custom_call.1} parent=1 // pred_check
      _
    $region11: #{tpu_custom_call.1} parent=1 // pred_check_branch
      %20 = sbr.rel (0) target = $region13
    $region12: #{tpu_custom_call.1} parent=1 // pred_region
      _
    $region13: #{tpu_custom_call.1} parent=1 // pred_fallthru
      _
    // Predicated region
    $region14: #{tpu_custom_call.1} parent=1 // pred_check
      _
    $region15: #{tpu_custom_call.1} parent=1 // pred_check_branch
      %22 = sbr.rel (0) target = $region17
    $region16: #{tpu_custom_call.1} parent=1 // pred_region
      _
    $region17: #{tpu_custom_call.1} parent=1 // pred_fallthru
      _
    // Predicated region
    $region18: #{tpu_custom_call.1} parent=1 // pred_check
      _
    $region19: #{tpu_custom_call.1} parent=1 // pred_check_branch
      %24 = sbr.rel (0) target = $region21
    $region20: #{tpu_custom_call.1} parent=1 // pred_region
      _
    $region21: #{tpu_custom_call.1} parent=1 // pred_fallthru
      _
    // Predicated region
    $region22: #{tpu_custom_call.1} parent=1 // pred_check
      _
    $region23: #{tpu_custom_call.1} parent=1 // pred_check_branch
      %26 = sbr.rel (0) target = $region25
    $region24: #{tpu_custom_call.1} parent=1 // pred_region
      _
    $region25: #{tpu_custom_call.1} parent=1 // pred_fallthru
      _
    // Predicated region
    $region26: #{tpu_custom_call.1} parent=1 // pred_check
      _
    $region27: #{tpu_custom_call.1} parent=1 // pred_check_branch
      %28 = sbr.rel (0) target = $region29
    $region28: #{tpu_custom_call.1} parent=1 // pred_region
      _
    $region29: #{tpu_custom_call.1} parent=1 // pred_fallthru
      _
    // Predicated region
    $region30: #{tpu_custom_call.1} parent=1 // pred_check
      _
    $region31: #{tpu_custom_call.1} parent=1 // pred_check_branch
      %30 = sbr.rel (0) target = $region33
    $region32: #{tpu_custom_call.1} parent=1 // pred_region
      _
    $region33: #{tpu_custom_call.1} parent=1 // pred_fallthru
      _
    // Predicated region
    $region34: #{tpu_custom_call.1} parent=1 // pred_check
      _
    $region35: #{tpu_custom_call.1} parent=1 // pred_check_branch
      %32 = sbr.rel (0) target = $region37
    $region36: #{tpu_custom_call.1} parent=1 // pred_region
      _
    $region37: #{tpu_custom_call.1} parent=1 // pred_fallthru
      _
    %vm34 = vcmask 64512
    %35 = vst.msk [vmem:[#allocation2] sm:$0xff] %vm34, 0
    %36 = vst.msk [vmem:[#allocation2 + $0x8] sm:$0xff] %vm34, 0
    %v37 = vld [vmem:[%s0] sm:$0xf]
    %v38 = vld [vmem:[%s0 + $0x4] sm:$0xf]
    %v39 = vld [vmem:[%s0 + $0x8] sm:$0xf]
    %v40 = vld [vmem:[%s0 + $0xc] sm:$0xf]
    %v41 = vld [vmem:[%s0 + $0x10] sm:$0xf]
    %v42 = vld [vmem:[%s0 + $0x14] sm:$0xf]
    %v43 = vld [vmem:[%s0 + $0x18] sm:$0xf]
    %v44 = vld [vmem:[%s0 + $0x1c] sm:$0xf]
    %v45 = vld [vmem:[%s0 + $0x20] sm:$0xf]
    %v46 = vld [vmem:[%s0 + $0x24] sm:$0xf]
    %v47 = vld [vmem:[%s0 + $0x28] sm:$0xf]
    %v48 = vld [vmem:[%s0 + $0x2c] sm:$0xf]
    %v49 = vld [vmem:[%s0 + $0x30] sm:$0xf]
    %v50 = vld [vmem:[%s0 + $0x34] sm:$0xf]
    %v51 = vld [vmem:[%s0 + $0x38] sm:$0xf]
    %v52 = vld [vmem:[%s0 + $0x3c] sm:$0xf]
    %v53 = vld [vmem:[%s0 + $0x40] sm:$0xf]
    %v54 = vld [vmem:[%s0 + $0x44] sm:$0xf]
    %v55 = vld [vmem:[%s0 + $0x48] sm:$0xf]
    %v56 = vld [vmem:[%s0 + $0x4c] sm:$0xf]
    %v57 = vld [vmem:[%s0 + $0x50] sm:$0xf]
    %v58 = vld [vmem:[%s0 + $0x54] sm:$0xf]
    %v59 = vld [vmem:[%s0 + $0x58] sm:$0xf]
    %v60 = vld [vmem:[%s0 + $0x5c] sm:$0xf]
    %v61 = vld [vmem:[%s0 + $0x60] sm:$0xf]
    %v62 = vld [vmem:[%s0 + $0x64] sm:$0xf]
    %v63 = vld [vmem:[%s0 + $0x68] sm:$0xf]
    %v64 = vld [vmem:[%s0 + $0x6c] sm:$0xf]
    %v65 = vld [vmem:[%s0 + $0x70] sm:$0xf]
    %v66 = vld [vmem:[%s0 + $0x74] sm:$0xf]
    %v67 = vld [vmem:[%s0 + $0x78] sm:$0xf]
    %v68 = vld [vmem:[%s0 + $0x7c] sm:$0xf]
    %v101 = vunpack.c.l.b16 %v37
    %v102 = vunpack.c.l.b16 %v38
    %v103 = vunpack.c.l.b16 %v39
    %v104 = vunpack.c.l.b16 %v40
    %v105 = vunpack.c.l.b16 %v41
    %v106 = vunpack.c.l.b16 %v42
    %v107 = vunpack.c.l.b16 %v43
    %v108 = vunpack.c.l.b16 %v44
    %v109 = vunpack.c.l.b16 %v45
    %v110 = vunpack.c.l.b16 %v46
    %v111 = vunpack.c.l.b16 %v47
    %v112 = vunpack.c.l.b16 %v48
    %v113 = vunpack.c.l.b16 %v49
    %v114 = vunpack.c.l.b16 %v50
    %v115 = vunpack.c.l.b16 %v51
    %v116 = vunpack.c.l.b16 %v52
    %v117 = vunpack.c.l.b16 %v53
    %v118 = vunpack.c.l.b16 %v54
    %v119 = vunpack.c.l.b16 %v55
    %v120 = vunpack.c.l.b16 %v56
    %v121 = vunpack.c.l.b16 %v57
    %v122 = vunpack.c.l.b16 %v58
    %v123 = vunpack.c.l.b16 %v59
    %v124 = vunpack.c.l.b16 %v60
    %v125 = vunpack.c.l.b16 %v61
    %v126 = vunpack.c.l.b16 %v62
    %v127 = vunpack.c.l.b16 %v63
    %v128 = vunpack.c.l.b16 %v64
    %v129 = vunpack.c.l.b16 %v65
    %v130 = vunpack.c.l.b16 %v66
    %v131 = vunpack.c.l.b16 %v67
    %v132 = vunpack.c.l.b16 %v68
    %v133 = vpack.c.b16 %v102, %v101
    %v134 = vpack.c.b16 %v104, %v103
    %v135 = vpack.c.b16 %v106, %v105
    %v136 = vpack.c.b16 %v108, %v107
    %v137 = vpack.c.b16 %v110, %v109
    %v138 = vpack.c.b16 %v112, %v111
    %v139 = vpack.c.b16 %v114, %v113
    %v140 = vpack.c.b16 %v116, %v115
    %v141 = vpack.c.b16 %v118, %v117
    %v142 = vpack.c.b16 %v120, %v119
    %v143 = vpack.c.b16 %v122, %v121
    %v144 = vpack.c.b16 %v124, %v123
    %v145 = vpack.c.b16 %v126, %v125
    %v146 = vpack.c.b16 %v128, %v127
    %v147 = vpack.c.b16 %v130, %v129
    %v148 = vpack.c.b16 %v132, %v131
    %s165 = scalar_lea.vmem [#allocation2], 16
    %166 = vst.msk [vmem:[%s165] sm:$0xff] %vm34, %v133
    %167 = vst.msk [vmem:[%s165 + $0x8] sm:$0xff] %vm34, %v134
    %168 = vst.msk [vmem:[%s165 + $0x10] sm:$0xff] %vm34, %v135
    %169 = vst.msk [vmem:[%s165 + $0x18] sm:$0xff] %vm34, %v136
    %170 = vst.msk [vmem:[%s165 + $0x20] sm:$0xff] %vm34, %v137
    %171 = vst.msk [vmem:[%s165 + $0x28] sm:$0xff] %vm34, %v138
    %172 = vst.msk [vmem:[%s165 + $0x30] sm:$0xff] %vm34, %v139
    %173 = vst.msk [vmem:[%s165 + $0x38] sm:$0xff] %vm34, %v140
    %174 = vst.msk [vmem:[%s165 + $0x40] sm:$0xff] %vm34, %v141
    %175 = vst.msk [vmem:[%s165 + $0x48] sm:$0xff] %vm34, %v142
    %176 = vst.msk [vmem:[%s165 + $0x50] sm:$0xff] %vm34, %v143
    %177 = vst.msk [vmem:[%s165 + $0x58] sm:$0xff] %vm34, %v144
    %178 = vst.msk [vmem:[%s165 + $0x60] sm:$0xff] %vm34, %v145
    %179 = vst.msk [vmem:[%s165 + $0x68] sm:$0xff] %vm34, %v146
    %180 = vst.msk [vmem:[%s165 + $0x70] sm:$0xff] %vm34, %v147
    %181 = vst.msk [vmem:[%s165 + $0x78] sm:$0xff] %vm34, %v148
    %v182 = vld [vmem:[#allocation2] sm:$0xff]
    %v183 = vld [vmem:[#allocation2 + $0x8] sm:$0xff]
    %v184 = vld [vmem:[#allocation2 + $0x10] sm:$0xff]
    %v185 = vld [vmem:[#allocation2 + $0x18] sm:$0xff]
    %v186 = vld [vmem:[#allocation2 + $0x20] sm:$0xff]
    %v187 = vld [vmem:[#allocation2 + $0x28] sm:$0xff]
    %v188 = vld [vmem:[#allocation2 + $0x30] sm:$0xff]
    %v189 = vld [vmem:[#allocation2 + $0x38] sm:$0xff]
    %v190 = vld [vmem:[#allocation2 + $0x40] sm:$0xff]
    %v191 = vld [vmem:[#allocation2 + $0x48] sm:$0xff]
    %v192 = vld [vmem:[#allocation2 + $0x50] sm:$0xff]
    %v193 = vld [vmem:[#allocation2 + $0x58] sm:$0xff]
    %v194 = vld [vmem:[#allocation2 + $0x60] sm:$0xff]
    %v195 = vld [vmem:[#allocation2 + $0x68] sm:$0xff]
    %v196 = vld [vmem:[#allocation2 + $0x70] sm:$0xff]
    %v197 = vld [vmem:[#allocation2 + $0x78] sm:$0xff]
    %v198 = vld [vmem:[%s1] sm:$0xf]
    %s199 = scalar_lea.vmem [#allocation2], 8
    %v200 = vld [vmem:[%s199] sm:$0xff]
    %v201 = vld [vmem:[%s199 + $0x8] sm:$0xff]
    %v202 = vld [vmem:[%s199 + $0x10] sm:$0xff]
    %v203 = vld [vmem:[%s199 + $0x18] sm:$0xff]
    %v204 = vld [vmem:[%s199 + $0x20] sm:$0xff]
    %v205 = vld [vmem:[%s199 + $0x28] sm:$0xff]
    %v206 = vld [vmem:[%s199 + $0x30] sm:$0xff]
    %v207 = vld [vmem:[%s199 + $0x38] sm:$0xff]
    %v208 = vld [vmem:[%s199 + $0x40] sm:$0xff]
    %v209 = vld [vmem:[%s199 + $0x48] sm:$0xff]
    %v210 = vld [vmem:[%s199 + $0x50] sm:$0xff]
    %v211 = vld [vmem:[%s199 + $0x58] sm:$0xff]
    %v212 = vld [vmem:[%s199 + $0x60] sm:$0xff]
    %v213 = vld [vmem:[%s199 + $0x68] sm:$0xff]
    %v214 = vld [vmem:[%s199 + $0x70] sm:$0xff]
    %v215 = vld [vmem:[%s199 + $0x78] sm:$0xff]
    %s216 = scalar_lea.vmem %s1, 4
    %v217 = vld [vmem:[%s216] sm:$0xf]
    %v219 = vsel %vm34, %v200, 0
    %v222 = vsel %vm34, %v201, 0
    %v225 = vsel %vm34, %v202, 0
    %v228 = vsel %vm34, %v203, 0
    %v231 = vsel %vm34, %v204, 0
    %v234 = vsel %vm34, %v205, 0
    %v237 = vsel %vm34, %v206, 0
    %v240 = vsel %vm34, %v207, 0
    %v243 = vsel %vm34, %v208, 0
    %v246 = vsel %vm34, %v209, 0
    %v249 = vsel %vm34, %v210, 0
    %v252 = vsel %vm34, %v211, 0
    %v255 = vsel %vm34, %v212, 0
    %v258 = vsel %vm34, %v213, 0
    %v261 = vsel %vm34, %v214, 0
    %v264 = vsel %vm34, %v215, 0
    %vm266 = vcmask 1043456
    %v268 = vsel %vm266, %v217, 0
    %270 = vmatprep.subr.bf16.mxu0 0
    %271 = vmatpush1.bf16.msra.mxu0 %v268
    %272 = vmatprep.subr.bf16.mxu0 0
    %273 = vmatpush1.bf16.msra.mxu0 0
    %274 = vmatprep.subr.bf16.mxu0 0
    %275 = vmatpush1.bf16.msra.mxu0 0
    %276 = vmatprep.subr.bf16.mxu0 0
    %277 = vmatpush1.bf16.msra.mxu0 0
    %278 = vmatprep.subr.bf16.mxu0 0
    %279 = vmatpush1.bf16.msra.mxu0 0
    %280 = vmatprep.subr.bf16.mxu0 0
    %281 = vmatpush1.bf16.msra.mxu0 0
    %282 = vmatprep.subr.bf16.mxu0 0
    %283 = vmatpush1.bf16.msra.mxu0 0
    %284 = vmatprep.subr.bf16.mxu0 0
    %285 = vmatpush1.bf16.msra.mxu0 0
    %286 = vmatprep.subr.bf16.mxu0 0
    %287 = vmatpush1.bf16.msra.mxu0 0
    %288 = vmatprep.subr.bf16.mxu0 0
    %289 = vmatpush1.bf16.msra.mxu0 0
    %290 = vmatprep.subr.bf16.mxu0 0
    %291 = vmatpush1.bf16.msra.mxu0 0
    %292 = vmatprep.subr.bf16.mxu0 0
    %293 = vmatpush1.bf16.msra.mxu0 0
    %294 = vmatprep.subr.bf16.mxu0 0
    %295 = vmatpush1.bf16.msra.mxu0 0
    %296 = vmatprep.subr.bf16.mxu0 0
    %297 = vmatpush1.bf16.msra.mxu0 0
    %298 = vmatprep.subr.bf16.mxu0 0
    %299 = vmatpush1.bf16.msra.mxu0 0
    %300 = vmatprep.subr.bf16.mxu0 0
    %301 = vmatpush1.bf16.msra.mxu0 0
    %302 = vmatprep.mubr.bf16.mxu0 0
    %303 = vmatmul.mubr.bf16.gmra.mrb[0].mxu0 %v219
    %v304 = vpop.f32.mrb[0].mxu0
    %v305 = vadd.f32 0.0, %v304
    %v306 = vpop.f32.mrb[0].mxu0
    %v307 = vpop.f32.mrb[0].mxu0
    %v308 = vadd.f32 0.0, %v307
    %v309 = vpop.f32.mrb[0].mxu0
    %310 = vmatprep.mubr.bf16.mxu0 0
    %311 = vmatmul.mubr.bf16.gmra.mrb[0].mxu0 %v222
    %v312 = vpop.f32.mrb[0].mxu0
    %v313 = vadd.f32 0.0, %v312
    %v314 = vpop.f32.mrb[0].mxu0
    %v315 = vpop.f32.mrb[0].mxu0
    %v316 = vadd.f32 0.0, %v315
    %v317 = vpop.f32.mrb[0].mxu0
    %318 = vmatprep.mubr.bf16.mxu0 0
    %319 = vmatmul.mubr.bf16.gmra.mrb[0].mxu0 %v225
    %v320 = vpop.f32.mrb[0].mxu0
    %v321 = vadd.f32 0.0, %v320
    %v322 = vpop.f32.mrb[0].mxu0
    %v323 = vpop.f32.mrb[0].mxu0
    %v324 = vadd.f32 0.0, %v323
    %v325 = vpop.f32.mrb[0].mxu0
    %326 = vmatprep.mubr.bf16.mxu0 0
    %327 = vmatmul.mubr.bf16.gmra.mrb[0].mxu0 %v228
    %v328 = vpop.f32.mrb[0].mxu0
    %v329 = vadd.f32 0.0, %v328
    %v330 = vpop.f32.mrb[0].mxu0
    %v331 = vpop.f32.mrb[0].mxu0
    %v332 = vadd.f32 0.0, %v331
    %v333 = vpop.f32.mrb[0].mxu0
    %334 = vmatprep.mubr.bf16.mxu0 0
    %335 = vmatmul.mubr.bf16.gmra.mrb[0].mxu0 %v231
    %v336 = vpop.f32.mrb[0].mxu0
    %v337 = vadd.f32 0.0, %v336
    %v338 = vpop.f32.mrb[0].mxu0
    %v339 = vpop.f32.mrb[0].mxu0
    %v340 = vadd.f32 0.0, %v339
    %v341 = vpop.f32.mrb[0].mxu0
    %342 = vmatprep.mubr.bf16.mxu0 0
    %343 = vmatmul.mubr.bf16.gmra.mrb[0].mxu0 %v234
    %v344 = vpop.f32.mrb[0].mxu0
    %v345 = vadd.f32 0.0, %v344
    %v346 = vpop.f32.mrb[0].mxu0
    %v347 = vpop.f32.mrb[0].mxu0
    %v348 = vadd.f32 0.0, %v347
    %v349 = vpop.f32.mrb[0].mxu0
    %350 = vmatprep.mubr.bf16.mxu0 0
    %351 = vmatmul.mubr.bf16.gmra.mrb[0].mxu0 %v237
    %v352 = vpop.f32.mrb[0].mxu0
    %v353 = vadd.f32 0.0, %v352
    %v354 = vpop.f32.mrb[0].mxu0
    %v355 = vpop.f32.mrb[0].mxu0
    %v356 = vadd.f32 0.0, %v355
    %v357 = vpop.f32.mrb[0].mxu0
    %358 = vmatprep.mubr.bf16.mxu0 0
    %359 = vmatmul.mubr.bf16.gmra.mrb[0].mxu0 %v240
    %v360 = vpop.f32.mrb[0].mxu0
    %v361 = vadd.f32 0.0, %v360
    %v362 = vpop.f32.mrb[0].mxu0
    %v363 = vpop.f32.mrb[0].mxu0
    %v364 = vadd.f32 0.0, %v363
    %v365 = vpop.f32.mrb[0].mxu0
    %366 = vmatprep.mubr.bf16.mxu0 0
    %367 = vmatmul.mubr.bf16.gmra.mrb[0].mxu0 %v243
    %v368 = vpop.f32.mrb[0].mxu0
    %v369 = vadd.f32 0.0, %v368
    %v370 = vpop.f32.mrb[0].mxu0
    %v371 = vpop.f32.mrb[0].mxu0
    %v372 = vadd.f32 0.0, %v371
    %v373 = vpop.f32.mrb[0].mxu0
    %374 = vmatprep.mubr.bf16.mxu0 0
    %375 = vmatmul.mubr.bf16.gmra.mrb[0].mxu0 %v246
    %v376 = vpop.f32.mrb[0].mxu0
    %v377 = vadd.f32 0.0, %v376
    %v378 = vpop.f32.mrb[0].mxu0
    %v379 = vpop.f32.mrb[0].mxu0
    %v380 = vadd.f32 0.0, %v379
    %v381 = vpop.f32.mrb[0].mxu0
    %382 = vmatprep.mubr.bf16.mxu0 0
    %383 = vmatmul.mubr.bf16.gmra.mrb[0].mxu0 %v249
    %v384 = vpop.f32.mrb[0].mxu0
    %v385 = vadd.f32 0.0, %v384
    %v386 = vpop.f32.mrb[0].mxu0
    %v387 = vpop.f32.mrb[0].mxu0
    %v388 = vadd.f32 0.0, %v387
    %v389 = vpop.f32.mrb[0].mxu0
    %390 = vmatprep.mubr.bf16.mxu0 0
    %391 = vmatmul.mubr.bf16.gmra.mrb[0].mxu0 %v252
    %v392 = vpop.f32.mrb[0].mxu0
    %v393 = vadd.f32 0.0, %v392
    %v394 = vpop.f32.mrb[0].mxu0
    %v395 = vpop.f32.mrb[0].mxu0
    %v396 = vadd.f32 0.0, %v395
    %v397 = vpop.f32.mrb[0].mxu0
    %398 = vmatprep.mubr.bf16.mxu0 0
    %399 = vmatmul.mubr.bf16.gmra.mrb[0].mxu0 %v255
    %v400 = vpop.f32.mrb[0].mxu0
    %v401 = vadd.f32 0.0, %v400
    %v402 = vpop.f32.mrb[0].mxu0
    %v403 = vpop.f32.mrb[0].mxu0
    %v404 = vadd.f32 0.0, %v403
    %v405 = vpop.f32.mrb[0].mxu0
    %406 = vmatprep.mubr.bf16.mxu0 0
    %407 = vmatmul.mubr.bf16.gmra.mrb[0].mxu0 %v258
    %v408 = vpop.f32.mrb[0].mxu0
    %v409 = vadd.f32 0.0, %v408
    %v410 = vpop.f32.mrb[0].mxu0
    %v411 = vpop.f32.mrb[0].mxu0
    %v412 = vadd.f32 0.0, %v411
    %v413 = vpop.f32.mrb[0].mxu0
    %414 = vmatprep.mubr.bf16.mxu0 0
    %415 = vmatmul.mubr.bf16.gmra.mrb[0].mxu0 %v261
    %v416 = vpop.f32.mrb[0].mxu0
    %v417 = vadd.f32 0.0, %v416
    %v418 = vpop.f32.mrb[0].mxu0
    %v419 = vpop.f32.mrb[0].mxu0
    %v420 = vadd.f32 0.0, %v419
    %v421 = vpop.f32.mrb[0].mxu0
    %422 = vmatprep.mubr.bf16.mxu0 0
    %423 = vmatmul.mubr.bf16.gmra.mrb[0].mxu0 %v264
    %v424 = vpop.f32.mrb[0].mxu0
    %v425 = vadd.f32 0.0, %v424
    %v426 = vpop.f32.mrb[0].mxu0
    %v427 = vpop.f32.mrb[0].mxu0
    %v428 = vadd.f32 0.0, %v427
    %v429 = vpop.f32.mrb[0].mxu0
    %430 = vdwg.mxu0
    %v432 = vsel %vm34, %v182, 0
    %v435 = vsel %vm34, %v183, 0
    %v438 = vsel %vm34, %v184, 0
    %v441 = vsel %vm34, %v185, 0
    %v444 = vsel %vm34, %v186, 0
    %v447 = vsel %vm34, %v187, 0
    %v450 = vsel %vm34, %v188, 0
    %v453 = vsel %vm34, %v189, 0
    %v456 = vsel %vm34, %v190, 0
    %v459 = vsel %vm34, %v191, 0
    %v462 = vsel %vm34, %v192, 0
    %v465 = vsel %vm34, %v193, 0
    %v468 = vsel %vm34, %v194, 0
    %v471 = vsel %vm34, %v195, 0
    %v474 = vsel %vm34, %v196, 0
    %v477 = vsel %vm34, %v197, 0
    %v480 = vsel %vm266, %v198, 0
    %482 = vmatprep.subr.bf16.mxu0 0
    %483 = vmatpush1.bf16.msra.mxu0 %v480
    %484 = vmatprep.subr.bf16.mxu0 0
    %485 = vmatpush1.bf16.msra.mxu0 0
    %486 = vmatprep.subr.bf16.mxu0 0
    %487 = vmatpush1.bf16.msra.mxu0 0
    %488 = vmatprep.subr.bf16.mxu0 0
    %489 = vmatpush1.bf16.msra.mxu0 0
    %490 = vmatprep.subr.bf16.mxu0 0
    %491 = vmatpush1.bf16.msra.mxu0 0
    %492 = vmatprep.subr.bf16.mxu0 0
    %493 = vmatpush1.bf16.msra.mxu0 0
    %494 = vmatprep.subr.bf16.mxu0 0
    %495 = vmatpush1.bf16.msra.mxu0 0
    %496 = vmatprep.subr.bf16.mxu0 0
    %497 = vmatpush1.bf16.msra.mxu0 0
    %498 = vmatprep.subr.bf16.mxu0 0
    %499 = vmatpush1.bf16.msra.mxu0 0
    %500 = vmatprep.subr.bf16.mxu0 0
    %501 = vmatpush1.bf16.msra.mxu0 0
    %502 = vmatprep.subr.bf16.mxu0 0
    %503 = vmatpush1.bf16.msra.mxu0 0
    %504 = vmatprep.subr.bf16.mxu0 0
    %505 = vmatpush1.bf16.msra.mxu0 0
    %506 = vmatprep.subr.bf16.mxu0 0
    %507 = vmatpush1.bf16.msra.mxu0 0
    %508 = vmatprep.subr.bf16.mxu0 0
    %509 = vmatpush1.bf16.msra.mxu0 0
    %510 = vmatprep.subr.bf16.mxu0 0
    %511 = vmatpush1.bf16.msra.mxu0 0
    %512 = vmatprep.subr.bf16.mxu0 0
    %513 = vmatpush1.bf16.msra.mxu0 0
    %514 = vmatprep.mubr.bf16.mxu0 0
    %515 = vmatmul.mubr.bf16.gmra.mrb[0].mxu0 %v432
    %v516 = vpop.f32.mrb[0].mxu0
    %v517 = vadd.f32 %v305, %v516
    %v518 = vpop.f32.mrb[0].mxu0
    %v519 = vpop.f32.mrb[0].mxu0
    %v520 = vadd.f32 %v308, %v519
    %v521 = vpop.f32.mrb[0].mxu0
    %522 = vmatprep.mubr.bf16.mxu0 0
    %523 = vmatmul.mubr.bf16.gmra.mrb[0].mxu0 %v435
    %v524 = vpop.f32.mrb[0].mxu0
    %v525 = vadd.f32 %v313, %v524
    %v526 = vpop.f32.mrb[0].mxu0
    %v527 = vpop.f32.mrb[0].mxu0
    %v528 = vadd.f32 %v316, %v527
    %v529 = vpop.f32.mrb[0].mxu0
    %530 = vmatprep.mubr.bf16.mxu0 0
    %531 = vmatmul.mubr.bf16.gmra.mrb[0].mxu0 %v438
    %v532 = vpop.f32.mrb[0].mxu0
    %v533 = vadd.f32 %v321, %v532
    %v534 = vpop.f32.mrb[0].mxu0
    %v535 = vpop.f32.mrb[0].mxu0
    %v536 = vadd.f32 %v324, %v535
    %v537 = vpop.f32.mrb[0].mxu0
    %538 = vmatprep.mubr.bf16.mxu0 0
    %539 = vmatmul.mubr.bf16.gmra.mrb[0].mxu0 %v441
    %v540 = vpop.f32.mrb[0].mxu0
    %v541 = vadd.f32 %v329, %v540
    %v542 = vpop.f32.mrb[0].mxu0
    %v543 = vpop.f32.mrb[0].mxu0
    %v544 = vadd.f32 %v332, %v543
    %v545 = vpop.f32.mrb[0].mxu0
    %546 = vmatprep.mubr.bf16.mxu0 0
    %547 = vmatmul.mubr.bf16.gmra.mrb[0].mxu0 %v444
    %v548 = vpop.f32.mrb[0].mxu0
    %v549 = vadd.f32 %v337, %v548
    %v550 = vpop.f32.mrb[0].mxu0
    %v551 = vpop.f32.mrb[0].mxu0
    %v552 = vadd.f32 %v340, %v551
    %v553 = vpop.f32.mrb[0].mxu0
    %554 = vmatprep.mubr.bf16.mxu0 0
    %555 = vmatmul.mubr.bf16.gmra.mrb[0].mxu0 %v447
    %v556 = vpop.f32.mrb[0].mxu0
    %v557 = vadd.f32 %v345, %v556
    %v558 = vpop.f32.mrb[0].mxu0
    %v559 = vpop.f32.mrb[0].mxu0
    %v560 = vadd.f32 %v348, %v559
    %v561 = vpop.f32.mrb[0].mxu0
    %562 = vmatprep.mubr.bf16.mxu0 0
    %563 = vmatmul.mubr.bf16.gmra.mrb[0].mxu0 %v450
    %v564 = vpop.f32.mrb[0].mxu0
    %v565 = vadd.f32 %v353, %v564
    %v566 = vpop.f32.mrb[0].mxu0
    %v567 = vpop.f32.mrb[0].mxu0
    %v568 = vadd.f32 %v356, %v567
    %v569 = vpop.f32.mrb[0].mxu0
    %570 = vmatprep.mubr.bf16.mxu0 0
    %571 = vmatmul.mubr.bf16.gmra.mrb[0].mxu0 %v453
    %v572 = vpop.f32.mrb[0].mxu0
    %v573 = vadd.f32 %v361, %v572
    %v574 = vpop.f32.mrb[0].mxu0
    %v575 = vpop.f32.mrb[0].mxu0
    %v576 = vadd.f32 %v364, %v575
    %v577 = vpop.f32.mrb[0].mxu0
    %578 = vmatprep.mubr.bf16.mxu0 0
    %579 = vmatmul.mubr.bf16.gmra.mrb[0].mxu0 %v456
    %v580 = vpop.f32.mrb[0].mxu0
    %v581 = vadd.f32 %v369, %v580
    %v582 = vpop.f32.mrb[0].mxu0
    %v583 = vpop.f32.mrb[0].mxu0
    %v584 = vadd.f32 %v372, %v583
    %v585 = vpop.f32.mrb[0].mxu0
    %586 = vmatprep.mubr.bf16.mxu0 0
    %587 = vmatmul.mubr.bf16.gmra.mrb[0].mxu0 %v459
    %v588 = vpop.f32.mrb[0].mxu0
    %v589 = vadd.f32 %v377, %v588
    %v590 = vpop.f32.mrb[0].mxu0
    %v591 = vpop.f32.mrb[0].mxu0
    %v592 = vadd.f32 %v380, %v591
    %v593 = vpop.f32.mrb[0].mxu0
    %594 = vmatprep.mubr.bf16.mxu0 0
    %595 = vmatmul.mubr.bf16.gmra.mrb[0].mxu0 %v462
    %v596 = vpop.f32.mrb[0].mxu0
    %v597 = vadd.f32 %v385, %v596
    %v598 = vpop.f32.mrb[0].mxu0
    %v599 = vpop.f32.mrb[0].mxu0
    %v600 = vadd.f32 %v388, %v599
    %v601 = vpop.f32.mrb[0].mxu0
    %602 = vmatprep.mubr.bf16.mxu0 0
    %603 = vmatmul.mubr.bf16.gmra.mrb[0].mxu0 %v465
    %v604 = vpop.f32.mrb[0].mxu0
    %v605 = vadd.f32 %v393, %v604
    %v606 = vpop.f32.mrb[0].mxu0
    %v607 = vpop.f32.mrb[0].mxu0
    %v608 = vadd.f32 %v396, %v607
    %v609 = vpop.f32.mrb[0].mxu0
    %610 = vmatprep.mubr.bf16.mxu0 0
    %611 = vmatmul.mubr.bf16.gmra.mrb[0].mxu0 %v468
    %v612 = vpop.f32.mrb[0].mxu0
    %v613 = vadd.f32 %v401, %v612
    %v614 = vpop.f32.mrb[0].mxu0
    %v615 = vpop.f32.mrb[0].mxu0
    %v616 = vadd.f32 %v404, %v615
    %v617 = vpop.f32.mrb[0].mxu0
    %618 = vmatprep.mubr.bf16.mxu0 0
    %619 = vmatmul.mubr.bf16.gmra.mrb[0].mxu0 %v471
    %v620 = vpop.f32.mrb[0].mxu0
    %v621 = vadd.f32 %v409, %v620
    %v622 = vpop.f32.mrb[0].mxu0
    %v623 = vpop.f32.mrb[0].mxu0
    %v624 = vadd.f32 %v412, %v623
    %v625 = vpop.f32.mrb[0].mxu0
    %626 = vmatprep.mubr.bf16.mxu0 0
    %627 = vmatmul.mubr.bf16.gmra.mrb[0].mxu0 %v474
    %v628 = vpop.f32.mrb[0].mxu0
    %v629 = vadd.f32 %v417, %v628
    %v630 = vpop.f32.mrb[0].mxu0
    %v631 = vpop.f32.mrb[0].mxu0
    %v632 = vadd.f32 %v420, %v631
    %v633 = vpop.f32.mrb[0].mxu0
    %634 = vmatprep.mubr.bf16.mxu0 0
    %635 = vmatmul.mubr.bf16.gmra.mrb[0].mxu0 %v477
    %v636 = vpop.f32.mrb[0].mxu0
    %v637 = vadd.f32 %v425, %v636
    %v638 = vpop.f32.mrb[0].mxu0
    %v639 = vpop.f32.mrb[0].mxu0
    %v640 = vadd.f32 %v428, %v639
    %v641 = vpop.f32.mrb[0].mxu0
    %642 = vdwg.mxu0
    %v643 = vld [vmem:[%s165] sm:$0xff]
    %v644 = vld [vmem:[%s165 + $0x8] sm:$0xff]
    %v645 = vld [vmem:[%s165 + $0x10] sm:$0xff]
    %v646 = vld [vmem:[%s165 + $0x18] sm:$0xff]
    %v647 = vld [vmem:[%s165 + $0x20] sm:$0xff]
    %v648 = vld [vmem:[%s165 + $0x28] sm:$0xff]
    %v649 = vld [vmem:[%s165 + $0x30] sm:$0xff]
    %v650 = vld [vmem:[%s165 + $0x38] sm:$0xff]
    %v651 = vld [vmem:[%s165 + $0x40] sm:$0xff]
    %v652 = vld [vmem:[%s165 + $0x48] sm:$0xff]
    %v653 = vld [vmem:[%s165 + $0x50] sm:$0xff]
    %v654 = vld [vmem:[%s165 + $0x58] sm:$0xff]
    %v655 = vld [vmem:[%s165 + $0x60] sm:$0xff]
    %v656 = vld [vmem:[%s165 + $0x68] sm:$0xff]
    %v657 = vld [vmem:[%s165 + $0x70] sm:$0xff]
    %v658 = vld [vmem:[%s165 + $0x78] sm:$0xff]
    %s659 = scalar_lea.vmem %s1, 8
    %v660 = vld [vmem:[%s659] sm:$0xf]
    %v662 = vsel %vm34, %v643, 0
    %v665 = vsel %vm34, %v644, 0
    %v668 = vsel %vm34, %v645, 0
    %v671 = vsel %vm34, %v646, 0
    %v674 = vsel %vm34, %v647, 0
    %v677 = vsel %vm34, %v648, 0
    %v680 = vsel %vm34, %v649, 0
    %v683 = vsel %vm34, %v650, 0
    %v686 = vsel %vm34, %v651, 0
    %v689 = vsel %vm34, %v652, 0
    %v692 = vsel %vm34, %v653, 0
    %v695 = vsel %vm34, %v654, 0
    %v698 = vsel %vm34, %v655, 0
    %v701 = vsel %vm34, %v656, 0
    %v704 = vsel %vm34, %v657, 0
    %v707 = vsel %vm34, %v658, 0
    %v710 = vsel %vm266, %v660, 0
    %712 = vmatprep.subr.bf16.mxu0 0
    %713 = vmatpush1.bf16.msra.mxu0 %v710
    %714 = vmatprep.subr.bf16.mxu0 0
    %715 = vmatpush1.bf16.msra.mxu0 0
    %716 = vmatprep.subr.bf16.mxu0 0
    %717 = vmatpush1.bf16.msra.mxu0 0
    %718 = vmatprep.subr.bf16.mxu0 0
    %719 = vmatpush1.bf16.msra.mxu0 0
    %720 = vmatprep.subr.bf16.mxu0 0
    %721 = vmatpush1.bf16.msra.mxu0 0
    %722 = vmatprep.subr.bf16.mxu0 0
    %723 = vmatpush1.bf16.msra.mxu0 0
    %724 = vmatprep.subr.bf16.mxu0 0
    %725 = vmatpush1.bf16.msra.mxu0 0
    %726 = vmatprep.subr.bf16.mxu0 0
    %727 = vmatpush1.bf16.msra.mxu0 0
    %728 = vmatprep.subr.bf16.mxu0 0
    %729 = vmatpush1.bf16.msra.mxu0 0
    %730 = vmatprep.subr.bf16.mxu0 0
    %731 = vmatpush1.bf16.msra.mxu0 0
    %732 = vmatprep.subr.bf16.mxu0 0
    %733 = vmatpush1.bf16.msra.mxu0 0
    %734 = vmatprep.subr.bf16.mxu0 0
    %735 = vmatpush1.bf16.msra.mxu0 0
    %736 = vmatprep.subr.bf16.mxu0 0
    %737 = vmatpush1.bf16.msra.mxu0 0
    %738 = vmatprep.subr.bf16.mxu0 0
    %739 = vmatpush1.bf16.msra.mxu0 0
    %740 = vmatprep.subr.bf16.mxu0 0
    %741 = vmatpush1.bf16.msra.mxu0 0
    %742 = vmatprep.subr.bf16.mxu0 0
    %743 = vmatpush1.bf16.msra.mxu0 0
    %744 = vmatprep.mubr.bf16.mxu0 0
    %745 = vmatmul.mubr.bf16.gmra.mrb[0].mxu0 %v662
    %v746 = vpop.f32.mrb[0].mxu0
    %v747 = vadd.f32 0.0, %v746
    %v748 = vpop.f32.mrb[0].mxu0
    %v749 = vpop.f32.mrb[0].mxu0
    %v750 = vadd.f32 0.0, %v749
    %v751 = vpop.f32.mrb[0].mxu0
    %752 = vmatprep.mubr.bf16.mxu0 0
    %753 = vmatmul.mubr.bf16.gmra.mrb[0].mxu0 %v665
    %v754 = vpop.f32.mrb[0].mxu0
    %v755 = vadd.f32 0.0, %v754
    %v756 = vpop.f32.mrb[0].mxu0
    %v757 = vpop.f32.mrb[0].mxu0
    %v758 = vadd.f32 0.0, %v757
    %v759 = vpop.f32.mrb[0].mxu0
    %760 = vmatprep.mubr.bf16.mxu0 0
    %761 = vmatmul.mubr.bf16.gmra.mrb[0].mxu0 %v668
    %v762 = vpop.f32.mrb[0].mxu0
    %v763 = vadd.f32 0.0, %v762
    %v764 = vpop.f32.mrb[0].mxu0
    %v765 = vpop.f32.mrb[0].mxu0
    %v766 = vadd.f32 0.0, %v765
    %v767 = vpop.f32.mrb[0].mxu0
    %768 = vmatprep.mubr.bf16.mxu0 0
    %769 = vmatmul.mubr.bf16.gmra.mrb[0].mxu0 %v671
    %v770 = vpop.f32.mrb[0].mxu0
    %v771 = vadd.f32 0.0, %v770
    %v772 = vpop.f32.mrb[0].mxu0
    %v773 = vpop.f32.mrb[0].mxu0
    %v774 = vadd.f32 0.0, %v773
    %v775 = vpop.f32.mrb[0].mxu0
    %776 = vmatprep.mubr.bf16.mxu0 0
    %777 = vmatmul.mubr.bf16.gmra.mrb[0].mxu0 %v674
    %v778 = vpop.f32.mrb[0].mxu0
    %v779 = vadd.f32 0.0, %v778
    %v780 = vpop.f32.mrb[0].mxu0
    %v781 = vpop.f32.mrb[0].mxu0
    %v782 = vadd.f32 0.0, %v781
    %v783 = vpop.f32.mrb[0].mxu0
    %784 = vmatprep.mubr.bf16.mxu0 0
    %785 = vmatmul.mubr.bf16.gmra.mrb[0].mxu0 %v677
    %v786 = vpop.f32.mrb[0].mxu0
    %v787 = vadd.f32 0.0, %v786
    %v788 = vpop.f32.mrb[0].mxu0
    %v789 = vpop.f32.mrb[0].mxu0
    %v790 = vadd.f32 0.0, %v789
    %v791 = vpop.f32.mrb[0].mxu0
    %792 = vmatprep.mubr.bf16.mxu0 0
    %793 = vmatmul.mubr.bf16.gmra.mrb[0].mxu0 %v680
    %v794 = vpop.f32.mrb[0].mxu0
    %v795 = vadd.f32 0.0, %v794
    %v796 = vpop.f32.mrb[0].mxu0
    %v797 = vpop.f32.mrb[0].mxu0
    %v798 = vadd.f32 0.0, %v797
    %v799 = vpop.f32.mrb[0].mxu0
    %800 = vmatprep.mubr.bf16.mxu0 0
    %801 = vmatmul.mubr.bf16.gmra.mrb[0].mxu0 %v683
    %v802 = vpop.f32.mrb[0].mxu0
    %v803 = vadd.f32 0.0, %v802
    %v804 = vpop.f32.mrb[0].mxu0
    %v805 = vpop.f32.mrb[0].mxu0
    %v806 = vadd.f32 0.0, %v805
    %v807 = vpop.f32.mrb[0].mxu0
    %808 = vmatprep.mubr.bf16.mxu0 0
    %809 = vmatmul.mubr.bf16.gmra.mrb[0].mxu0 %v686
    %v810 = vpop.f32.mrb[0].mxu0
    %v811 = vadd.f32 0.0, %v810
    %v812 = vpop.f32.mrb[0].mxu0
    %v813 = vpop.f32.mrb[0].mxu0
    %v814 = vadd.f32 0.0, %v813
    %v815 = vpop.f32.mrb[0].mxu0
    %816 = vmatprep.mubr.bf16.mxu0 0
    %817 = vmatmul.mubr.bf16.gmra.mrb[0].mxu0 %v689
    %v818 = vpop.f32.mrb[0].mxu0
    %v819 = vadd.f32 0.0, %v818
    %v820 = vpop.f32.mrb[0].mxu0
    %v821 = vpop.f32.mrb[0].mxu0
    %v822 = vadd.f32 0.0, %v821
    %v823 = vpop.f32.mrb[0].mxu0
    %824 = vmatprep.mubr.bf16.mxu0 0
    %825 = vmatmul.mubr.bf16.gmra.mrb[0].mxu0 %v692
    %v826 = vpop.f32.mrb[0].mxu0
    %v827 = vadd.f32 0.0, %v826
    %v828 = vpop.f32.mrb[0].mxu0
    %v829 = vpop.f32.mrb[0].mxu0
    %v830 = vadd.f32 0.0, %v829
    %v831 = vpop.f32.mrb[0].mxu0
    %832 = vmatprep.mubr.bf16.mxu0 0
    %833 = vmatmul.mubr.bf16.gmra.mrb[0].mxu0 %v695
    %v834 = vpop.f32.mrb[0].mxu0
    %v835 = vadd.f32 0.0, %v834
    %v836 = vpop.f32.mrb[0].mxu0
    %v837 = vpop.f32.mrb[0].mxu0
    %v838 = vadd.f32 0.0, %v837
    %v839 = vpop.f32.mrb[0].mxu0
    %840 = vmatprep.mubr.bf16.mxu0 0
    %841 = vmatmul.mubr.bf16.gmra.mrb[0].mxu0 %v698
    %v842 = vpop.f32.mrb[0].mxu0
    %v843 = vadd.f32 0.0, %v842
    %v844 = vpop.f32.mrb[0].mxu0
    %v845 = vpop.f32.mrb[0].mxu0
    %v846 = vadd.f32 0.0, %v845
    %v847 = vpop.f32.mrb[0].mxu0
    %848 = vmatprep.mubr.bf16.mxu0 0
    %849 = vmatmul.mubr.bf16.gmra.mrb[0].mxu0 %v701
    %v850 = vpop.f32.mrb[0].mxu0
    %v851 = vadd.f32 0.0, %v850
    %v852 = vpop.f32.mrb[0].mxu0
    %v853 = vpop.f32.mrb[0].mxu0
    %v854 = vadd.f32 0.0, %v853
    %v855 = vpop.f32.mrb[0].mxu0
    %856 = vmatprep.mubr.bf16.mxu0 0
    %857 = vmatmul.mubr.bf16.gmra.mrb[0].mxu0 %v704
    %v858 = vpop.f32.mrb[0].mxu0
    %v859 = vadd.f32 0.0, %v858
    %v860 = vpop.f32.mrb[0].mxu0
    %v861 = vpop.f32.mrb[0].mxu0
    %v862 = vadd.f32 0.0, %v861
    %v863 = vpop.f32.mrb[0].mxu0
    %864 = vmatprep.mubr.bf16.mxu0 0
    %865 = vmatmul.mubr.bf16.gmra.mrb[0].mxu0 %v707
    %v866 = vpop.f32.mrb[0].mxu0
    %v867 = vadd.f32 0.0, %v866
    %v868 = vpop.f32.mrb[0].mxu0
    %v869 = vpop.f32.mrb[0].mxu0
    %v870 = vadd.f32 0.0, %v869
    %v871 = vpop.f32.mrb[0].mxu0
    %872 = vdwg.mxu0
    %v873 = vadd.f32 %v517, %v747
    %v874 = vadd.f32 %v520, %v750
    %v875 = vadd.f32 %v525, %v755
    %v876 = vadd.f32 %v528, %v758
    %v877 = vadd.f32 %v533, %v763
    %v878 = vadd.f32 %v536, %v766
    %v879 = vadd.f32 %v541, %v771
    %v880 = vadd.f32 %v544, %v774
    %v881 = vadd.f32 %v549, %v779
    %v882 = vadd.f32 %v552, %v782
    %v883 = vadd.f32 %v557, %v787
    %v884 = vadd.f32 %v560, %v790
    %v885 = vadd.f32 %v565, %v795
    %v886 = vadd.f32 %v568, %v798
    %v887 = vadd.f32 %v573, %v803
    %v888 = vadd.f32 %v576, %v806
    %v889 = vadd.f32 %v581, %v811
    %v890 = vadd.f32 %v584, %v814
    %v891 = vadd.f32 %v589, %v819
    %v892 = vadd.f32 %v592, %v822
    %v893 = vadd.f32 %v597, %v827
    %v894 = vadd.f32 %v600, %v830
    %v895 = vadd.f32 %v605, %v835
    %v896 = vadd.f32 %v608, %v838
    %v897 = vadd.f32 %v613, %v843
    %v898 = vadd.f32 %v616, %v846
    %v899 = vadd.f32 %v621, %v851
    %v900 = vadd.f32 %v624, %v854
    %v901 = vadd.f32 %v629, %v859
    %v902 = vadd.f32 %v632, %v862
    %v903 = vadd.f32 %v637, %v867
    %v904 = vadd.f32 %v640, %v870
    %v905 = vld [vmem:[%s2] sm:$0x1]
    %v907 = vlaneseq
    %v908 = vshrl.u32 %v907, 7
    %v909 = vsub.s32 0, %v908
    %v910 = vrot.slane %v905, %v909
    %v912 = vadd.f32 %v873, %v910
    %v913 = vadd.f32 %v874, %v910
    %v914 = vadd.f32 %v875, %v910
    %v915 = vadd.f32 %v876, %v910
    %v916 = vadd.f32 %v877, %v910
    %v917 = vadd.f32 %v878, %v910
    %v918 = vadd.f32 %v879, %v910
    %v919 = vadd.f32 %v880, %v910
    %v920 = vadd.f32 %v881, %v910
    %v921 = vadd.f32 %v882, %v910
    %v922 = vadd.f32 %v883, %v910
    %v923 = vadd.f32 %v884, %v910
    %v924 = vadd.f32 %v885, %v910
    %v925 = vadd.f32 %v886, %v910
    %v926 = vadd.f32 %v887, %v910
    %v927 = vadd.f32 %v888, %v910
    %v928 = vadd.f32 %v889, %v910
    %v929 = vadd.f32 %v890, %v910
    %v930 = vadd.f32 %v891, %v910
    %v931 = vadd.f32 %v892, %v910
    %v932 = vadd.f32 %v893, %v910
    %v933 = vadd.f32 %v894, %v910
    %v934 = vadd.f32 %v895, %v910
    %v935 = vadd.f32 %v896, %v910
    %v936 = vadd.f32 %v897, %v910
    %v937 = vadd.f32 %v898, %v910
    %v938 = vadd.f32 %v899, %v910
    %v939 = vadd.f32 %v900, %v910
    %v940 = vadd.f32 %v901, %v910
    %v941 = vadd.f32 %v902, %v910
    %v942 = vadd.f32 %v903, %v910
    %v943 = vadd.f32 %v904, %v910
    %v944 = vmax.f32 %v912, 0.0
    %v945 = vmax.f32 %v913, 0.0
    %v946 = vmax.f32 %v914, 0.0
    %v947 = vmax.f32 %v915, 0.0
    %v948 = vmax.f32 %v916, 0.0
    %v949 = vmax.f32 %v917, 0.0
    %v950 = vmax.f32 %v918, 0.0
    %v951 = vmax.f32 %v919, 0.0
    %v952 = vmax.f32 %v920, 0.0
    %v953 = vmax.f32 %v921, 0.0
    %v954 = vmax.f32 %v922, 0.0
    %v955 = vmax.f32 %v923, 0.0
    %v956 = vmax.f32 %v924, 0.0
    %v957 = vmax.f32 %v925, 0.0
    %v958 = vmax.f32 %v926, 0.0
    %v959 = vmax.f32 %v927, 0.0
    %v960 = vmax.f32 %v928, 0.0
    %v961 = vmax.f32 %v929, 0.0
    %v962 = vmax.f32 %v930, 0.0
    %v963 = vmax.f32 %v931, 0.0
    %v964 = vmax.f32 %v932, 0.0
    %v965 = vmax.f32 %v933, 0.0
    %v966 = vmax.f32 %v934, 0.0
    %v967 = vmax.f32 %v935, 0.0
    %v968 = vmax.f32 %v936, 0.0
    %v969 = vmax.f32 %v937, 0.0
    %v970 = vmax.f32 %v938, 0.0
    %v971 = vmax.f32 %v939, 0.0
    %v972 = vmax.f32 %v940, 0.0
    %v973 = vmax.f32 %v941, 0.0
    %v974 = vmax.f32 %v942, 0.0
    %v975 = vmax.f32 %v943, 0.0
    %vm976 = vcmask 261120
    %977 = vst.msk [vmem:[#allocation3] sm:$0xff] %vm976, 0
    %978 = vst.msk [vmem:[#allocation3 + $0x8] sm:$0xff] %vm976, 0
    %v979 = vpack.c.bf16 %v945, %v944
    %v980 = vpack.c.bf16 %v947, %v946
    %v981 = vpack.c.bf16 %v949, %v948
    %v982 = vpack.c.bf16 %v951, %v950
    %v983 = vpack.c.bf16 %v953, %v952
    %v984 = vpack.c.bf16 %v955, %v954
    %v985 = vpack.c.bf16 %v957, %v956
    %v986 = vpack.c.bf16 %v959, %v958
    %v987 = vpack.c.bf16 %v961, %v960
    %v988 = vpack.c.bf16 %v963, %v962
    %v989 = vpack.c.bf16 %v965, %v964
    %v990 = vpack.c.bf16 %v967, %v966
    %v991 = vpack.c.bf16 %v969, %v968
    %v992 = vpack.c.bf16 %v971, %v970
    %v993 = vpack.c.bf16 %v973, %v972
    %v994 = vpack.c.bf16 %v975, %v974
    %s995 = scalar_lea.vmem [#allocation3], 16
    %996 = vst.msk [vmem:[%s995] sm:$0xff] %vm976, %v979
    %997 = vst.msk [vmem:[%s995 + $0x8] sm:$0xff] %vm976, %v980
    %998 = vst.msk [vmem:[%s995 + $0x10] sm:$0xff] %vm976, %v981
    %999 = vst.msk [vmem:[%s995 + $0x18] sm:$0xff] %vm976, %v982
    %1000 = vst.msk [vmem:[%s995 + $0x20] sm:$0xff] %vm976, %v983
    %1001 = vst.msk [vmem:[%s995 + $0x28] sm:$0xff] %vm976, %v984
    %1002 = vst.msk [vmem:[%s995 + $0x30] sm:$0xff] %vm976, %v985
    %1003 = vst.msk [vmem:[%s995 + $0x38] sm:$0xff] %vm976, %v986
    %1004 = vst.msk [vmem:[%s995 + $0x40] sm:$0xff] %vm976, %v987
    %1005 = vst.msk [vmem:[%s995 + $0x48] sm:$0xff] %vm976, %v988
    %1006 = vst.msk [vmem:[%s995 + $0x50] sm:$0xff] %vm976, %v989
    %1007 = vst.msk [vmem:[%s995 + $0x58] sm:$0xff] %vm976, %v990
    %1008 = vst.msk [vmem:[%s995 + $0x60] sm:$0xff] %vm976, %v991
    %1009 = vst.msk [vmem:[%s995 + $0x68] sm:$0xff] %vm976, %v992
    %1010 = vst.msk [vmem:[%s995 + $0x70] sm:$0xff] %vm976, %v993
    %1011 = vst.msk [vmem:[%s995 + $0x78] sm:$0xff] %vm976, %v994
    %v1012 = vld [vmem:[#allocation3] sm:$0xff]
    %v1013 = vld [vmem:[#allocation3 + $0x8] sm:$0xff]
    %v1014 = vld [vmem:[#allocation3 + $0x10] sm:$0xff]
    %v1015 = vld [vmem:[#allocation3 + $0x18] sm:$0xff]
    %v1016 = vld [vmem:[#allocation3 + $0x20] sm:$0xff]
    %v1017 = vld [vmem:[#allocation3 + $0x28] sm:$0xff]
    %v1018 = vld [vmem:[#allocation3 + $0x30] sm:$0xff]
    %v1019 = vld [vmem:[#allocation3 + $0x38] sm:$0xff]
    %v1020 = vld [vmem:[#allocation3 + $0x40] sm:$0xff]
    %v1021 = vld [vmem:[#allocation3 + $0x48] sm:$0xff]
    %v1022 = vld [vmem:[#allocation3 + $0x50] sm:$0xff]
    %v1023 = vld [vmem:[#allocation3 + $0x58] sm:$0xff]
    %v1024 = vld [vmem:[#allocation3 + $0x60] sm:$0xff]
    %v1025 = vld [vmem:[#allocation3 + $0x68] sm:$0xff]
    %v1026 = vld [vmem:[#allocation3 + $0x70] sm:$0xff]
    %v1027 = vld [vmem:[#allocation3 + $0x78] sm:$0xff]
    %v1028 = vld [vmem:[%s3] sm:$0xf]
    %v1029 = vld [vmem:[%s3 + $0x4] sm:$0xf]
    %v1030 = vld [vmem:[%s3 + $0x8] sm:$0xf]
    %v1031 = vld [vmem:[%s3 + $0xc] sm:$0xf]
    %s1032 = scalar_lea.vmem [#allocation3], 8
    %v1033 = vld [vmem:[%s1032] sm:$0xff]
    %v1034 = vld [vmem:[%s1032 + $0x8] sm:$0xff]
    %v1035 = vld [vmem:[%s1032 + $0x10] sm:$0xff]
    %v1036 = vld [vmem:[%s1032 + $0x18] sm:$0xff]
    %v1037 = vld [vmem:[%s1032 + $0x20] sm:$0xff]
    %v1038 = vld [vmem:[%s1032 + $0x28] sm:$0xff]
    %v1039 = vld [vmem:[%s1032 + $0x30] sm:$0xff]
    %v1040 = vld [vmem:[%s1032 + $0x38] sm:$0xff]
    %v1041 = vld [vmem:[%s1032 + $0x40] sm:$0xff]
    %v1042 = vld [vmem:[%s1032 + $0x48] sm:$0xff]
    %v1043 = vld [vmem:[%s1032 + $0x50] sm:$0xff]
    %v1044 = vld [vmem:[%s1032 + $0x58] sm:$0xff]
    %v1045 = vld [vmem:[%s1032 + $0x60] sm:$0xff]
    %v1046 = vld [vmem:[%s1032 + $0x68] sm:$0xff]
    %v1047 = vld [vmem:[%s1032 + $0x70] sm:$0xff]
    %v1048 = vld [vmem:[%s1032 + $0x78] sm:$0xff]
    %s1049 = scalar_lea.vmem %s3, 16
    %v1050 = vld [vmem:[%s1049] sm:$0xf]
    %v1051 = vld [vmem:[%s1049 + $0x4] sm:$0xf]
    %v1052 = vld [vmem:[%s1049 + $0x8] sm:$0xf]
    %v1053 = vld [vmem:[%s1049 + $0xc] sm:$0xf]
    %v1058 = vunpack.c.l.b16 %v1050
    %v1059 = vunpack.c.l.b16 %v1051
    %v1060 = vunpack.c.l.b16 %v1052
    %v1061 = vunpack.c.l.b16 %v1053
    %v1062 = vpack.c.b16 %v1059, %v1058
    %v1063 = vpack.c.b16 %v1061, %v1060
    %v1067 = vsel %vm976, %v1033, 0
    %v1070 = vsel %vm976, %v1034, 0
    %v1073 = vsel %vm976, %v1035, 0
    %v1076 = vsel %vm976, %v1036, 0
    %v1079 = vsel %vm976, %v1037, 0
    %v1082 = vsel %vm976, %v1038, 0
    %v1085 = vsel %vm976, %v1039, 0
    %v1088 = vsel %vm976, %v1040, 0
    %v1091 = vsel %vm976, %v1041, 0
    %v1094 = vsel %vm976, %v1042, 0
    %v1097 = vsel %vm976, %v1043, 0
    %v1100 = vsel %vm976, %v1044, 0
    %v1103 = vsel %vm976, %v1045, 0
    %v1106 = vsel %vm976, %v1046, 0
    %v1109 = vsel %vm976, %v1047, 0
    %v1112 = vsel %vm976, %v1048, 0
    %1114 = vmatprep.subr.bf16.mxu0 0
    %1115 = vmatpush1.bf16.msra.mxu0 %v1062
    %1116 = vmatprep.subr.bf16.mxu0 0
    %1117 = vmatpush1.bf16.msra.mxu0 %v1063
    %1118 = vmatprep.subr.bf16.mxu0 0
    %1119 = vmatpush1.bf16.msra.mxu0 0
    %1120 = vmatprep.subr.bf16.mxu0 0
    %1121 = vmatpush1.bf16.msra.mxu0 0
    %1122 = vmatprep.subr.bf16.mxu0 0
    %1123 = vmatpush1.bf16.msra.mxu0 0
    %1124 = vmatprep.subr.bf16.mxu0 0
    %1125 = vmatpush1.bf16.msra.mxu0 0
    %1126 = vmatprep.subr.bf16.mxu0 0
    %1127 = vmatpush1.bf16.msra.mxu0 0
    %1128 = vmatprep.subr.bf16.mxu0 0
    %1129 = vmatpush1.bf16.msra.mxu0 0
    %1130 = vmatprep.subr.bf16.mxu0 0
    %1131 = vmatpush1.bf16.msra.mxu0 0
    %1132 = vmatprep.subr.bf16.mxu0 0
    %1133 = vmatpush1.bf16.msra.mxu0 0
    %1134 = vmatprep.subr.bf16.mxu0 0
    %1135 = vmatpush1.bf16.msra.mxu0 0
    %1136 = vmatprep.subr.bf16.mxu0 0
    %1137 = vmatpush1.bf16.msra.mxu0 0
    %1138 = vmatprep.subr.bf16.mxu0 0
    %1139 = vmatpush1.bf16.msra.mxu0 0
    %1140 = vmatprep.subr.bf16.mxu0 0
    %1141 = vmatpush1.bf16.msra.mxu0 0
    %1142 = vmatprep.subr.bf16.mxu0 0
    %1143 = vmatpush1.bf16.msra.mxu0 0
    %1144 = vmatprep.subr.bf16.mxu0 0
    %1145 = vmatpush1.bf16.msra.mxu0 0
    %1146 = vmatprep.mubr.bf16.mxu0 0
    %1147 = vmatmul.mubr.bf16.gmra.mrb[0].mxu0 %v1067
    %v1148 = vpop.f32.mrb[0].mxu0
    %v1149 = vadd.f32 0.0, %v1148
    %v1150 = vpop.f32.mrb[0].mxu0
    %v1151 = vpop.f32.mrb[0].mxu0
    %v1152 = vadd.f32 0.0, %v1151
    %v1153 = vpop.f32.mrb[0].mxu0
    %1154 = vmatprep.mubr.bf16.mxu0 0
    %1155 = vmatmul.mubr.bf16.gmra.mrb[0].mxu0 %v1070
    %v1156 = vpop.f32.mrb[0].mxu0
    %v1157 = vadd.f32 0.0, %v1156
    %v1158 = vpop.f32.mrb[0].mxu0
    %v1159 = vpop.f32.mrb[0].mxu0
    %v1160 = vadd.f32 0.0, %v1159
    %v1161 = vpop.f32.mrb[0].mxu0
    %1162 = vmatprep.mubr.bf16.mxu0 0
    %1163 = vmatmul.mubr.bf16.gmra.mrb[0].mxu0 %v1073
    %v1164 = vpop.f32.mrb[0].mxu0
    %v1165 = vadd.f32 0.0, %v1164
    %v1166 = vpop.f32.mrb[0].mxu0
    %v1167 = vpop.f32.mrb[0].mxu0
    %v1168 = vadd.f32 0.0, %v1167
    %v1169 = vpop.f32.mrb[0].mxu0
    %1170 = vmatprep.mubr.bf16.mxu0 0
    %1171 = vmatmul.mubr.bf16.gmra.mrb[0].mxu0 %v1076
    %v1172 = vpop.f32.mrb[0].mxu0
    %v1173 = vadd.f32 0.0, %v1172
    %v1174 = vpop.f32.mrb[0].mxu0
    %v1175 = vpop.f32.mrb[0].mxu0
    %v1176 = vadd.f32 0.0, %v1175
    %v1177 = vpop.f32.mrb[0].mxu0
    %1178 = vmatprep.mubr.bf16.mxu0 0
    %1179 = vmatmul.mubr.bf16.gmra.mrb[0].mxu0 %v1079
    %v1180 = vpop.f32.mrb[0].mxu0
    %v1181 = vadd.f32 0.0, %v1180
    %v1182 = vpop.f32.mrb[0].mxu0
    %v1183 = vpop.f32.mrb[0].mxu0
    %v1184 = vadd.f32 0.0, %v1183
    %v1185 = vpop.f32.mrb[0].mxu0
    %1186 = vmatprep.mubr.bf16.mxu0 0
    %1187 = vmatmul.mubr.bf16.gmra.mrb[0].mxu0 %v1082
    %v1188 = vpop.f32.mrb[0].mxu0
    %v1189 = vadd.f32 0.0, %v1188
    %v1190 = vpop.f32.mrb[0].mxu0
    %v1191 = vpop.f32.mrb[0].mxu0
    %v1192 = vadd.f32 0.0, %v1191
    %v1193 = vpop.f32.mrb[0].mxu0
    %1194 = vmatprep.mubr.bf16.mxu0 0
    %1195 = vmatmul.mubr.bf16.gmra.mrb[0].mxu0 %v1085
    %v1196 = vpop.f32.mrb[0].mxu0
    %v1197 = vadd.f32 0.0, %v1196
    %v1198 = vpop.f32.mrb[0].mxu0
    %v1199 = vpop.f32.mrb[0].mxu0
    %v1200 = vadd.f32 0.0, %v1199
    %v1201 = vpop.f32.mrb[0].mxu0
    %1202 = vmatprep.mubr.bf16.mxu0 0
    %1203 = vmatmul.mubr.bf16.gmra.mrb[0].mxu0 %v1088
    %v1204 = vpop.f32.mrb[0].mxu0
    %v1205 = vadd.f32 0.0, %v1204
    %v1206 = vpop.f32.mrb[0].mxu0
    %v1207 = vpop.f32.mrb[0].mxu0
    %v1208 = vadd.f32 0.0, %v1207
    %v1209 = vpop.f32.mrb[0].mxu0
    %1210 = vmatprep.mubr.bf16.mxu0 0
    %1211 = vmatmul.mubr.bf16.gmra.mrb[0].mxu0 %v1091
    %v1212 = vpop.f32.mrb[0].mxu0
    %v1213 = vadd.f32 0.0, %v1212
    %v1214 = vpop.f32.mrb[0].mxu0
    %v1215 = vpop.f32.mrb[0].mxu0
    %v1216 = vadd.f32 0.0, %v1215
    %v1217 = vpop.f32.mrb[0].mxu0
    %1218 = vmatprep.mubr.bf16.mxu0 0
    %1219 = vmatmul.mubr.bf16.gmra.mrb[0].mxu0 %v1094
    %v1220 = vpop.f32.mrb[0].mxu0
    %v1221 = vadd.f32 0.0, %v1220
    %v1222 = vpop.f32.mrb[0].mxu0
    %v1223 = vpop.f32.mrb[0].mxu0
    %v1224 = vadd.f32 0.0, %v1223
    %v1225 = vpop.f32.mrb[0].mxu0
    %1226 = vmatprep.mubr.bf16.mxu0 0
    %1227 = vmatmul.mubr.bf16.gmra.mrb[0].mxu0 %v1097
    %v1228 = vpop.f32.mrb[0].mxu0
    %v1229 = vadd.f32 0.0, %v1228
    %v1230 = vpop.f32.mrb[0].mxu0
    %v1231 = vpop.f32.mrb[0].mxu0
    %v1232 = vadd.f32 0.0, %v1231
    %v1233 = vpop.f32.mrb[0].mxu0
    %1234 = vmatprep.mubr.bf16.mxu0 0
    %1235 = vmatmul.mubr.bf16.gmra.mrb[0].mxu0 %v1100
    %v1236 = vpop.f32.mrb[0].mxu0
    %v1237 = vadd.f32 0.0, %v1236
    %v1238 = vpop.f32.mrb[0].mxu0
    %v1239 = vpop.f32.mrb[0].mxu0
    %v1240 = vadd.f32 0.0, %v1239
    %v1241 = vpop.f32.mrb[0].mxu0
    %1242 = vmatprep.mubr.bf16.mxu0 0
    %1243 = vmatmul.mubr.bf16.gmra.mrb[0].mxu0 %v1103
    %v1244 = vpop.f32.mrb[0].mxu0
    %v1245 = vadd.f32 0.0, %v1244
    %v1246 = vpop.f32.mrb[0].mxu0
    %v1247 = vpop.f32.mrb[0].mxu0
    %v1248 = vadd.f32 0.0, %v1247
    %v1249 = vpop.f32.mrb[0].mxu0
    %1250 = vmatprep.mubr.bf16.mxu0 0
    %1251 = vmatmul.mubr.bf16.gmra.mrb[0].mxu0 %v1106
    %v1252 = vpop.f32.mrb[0].mxu0
    %v1253 = vadd.f32 0.0, %v1252
    %v1254 = vpop.f32.mrb[0].mxu0
    %v1255 = vpop.f32.mrb[0].mxu0
    %v1256 = vadd.f32 0.0, %v1255
    %v1257 = vpop.f32.mrb[0].mxu0
    %1258 = vmatprep.mubr.bf16.mxu0 0
    %1259 = vmatmul.mubr.bf16.gmra.mrb[0].mxu0 %v1109
    %v1260 = vpop.f32.mrb[0].mxu0
    %v1261 = vadd.f32 0.0, %v1260
    %v1262 = vpop.f32.mrb[0].mxu0
    %v1263 = vpop.f32.mrb[0].mxu0
    %v1264 = vadd.f32 0.0, %v1263
    %v1265 = vpop.f32.mrb[0].mxu0
    %1266 = vmatprep.mubr.bf16.mxu0 0
    %1267 = vmatmul.mubr.bf16.gmra.mrb[0].mxu0 %v1112
    %v1268 = vpop.f32.mrb[0].mxu0
    %v1269 = vadd.f32 0.0, %v1268
    %v1270 = vpop.f32.mrb[0].mxu0
    %v1271 = vpop.f32.mrb[0].mxu0
    %v1272 = vadd.f32 0.0, %v1271
    %v1273 = vpop.f32.mrb[0].mxu0
    %1274 = vdwg.mxu0
    %v1279 = vunpack.c.l.b16 %v1028
    %v1280 = vunpack.c.l.b16 %v1029
    %v1281 = vunpack.c.l.b16 %v1030
    %v1282 = vunpack.c.l.b16 %v1031
    %v1283 = vpack.c.b16 %v1280, %v1279
    %v1284 = vpack.c.b16 %v1282, %v1281
    %v1288 = vsel %vm976, %v1012, 0
    %v1291 = vsel %vm976, %v1013, 0
    %v1294 = vsel %vm976, %v1014, 0
    %v1297 = vsel %vm976, %v1015, 0
    %v1300 = vsel %vm976, %v1016, 0
    %v1303 = vsel %vm976, %v1017, 0
    %v1306 = vsel %vm976, %v1018, 0
    %v1309 = vsel %vm976, %v1019, 0
    %v1312 = vsel %vm976, %v1020, 0
    %v1315 = vsel %vm976, %v1021, 0
    %v1318 = vsel %vm976, %v1022, 0
    %v1321 = vsel %vm976, %v1023, 0
    %v1324 = vsel %vm976, %v1024, 0
    %v1327 = vsel %vm976, %v1025, 0
    %v1330 = vsel %vm976, %v1026, 0
    %v1333 = vsel %vm976, %v1027, 0
    %1335 = vmatprep.subr.bf16.mxu0 0
    %1336 = vmatpush1.bf16.msra.mxu0 %v1283
    %1337 = vmatprep.subr.bf16.mxu0 0
    %1338 = vmatpush1.bf16.msra.mxu0 %v1284
    %1339 = vmatprep.subr.bf16.mxu0 0
    %1340 = vmatpush1.bf16.msra.mxu0 0
    %1341 = vmatprep.subr.bf16.mxu0 0
    %1342 = vmatpush1.bf16.msra.mxu0 0
    %1343 = vmatprep.subr.bf16.mxu0 0
    %1344 = vmatpush1.bf16.msra.mxu0 0
    %1345 = vmatprep.subr.bf16.mxu0 0
    %1346 = vmatpush1.bf16.msra.mxu0 0
    %1347 = vmatprep.subr.bf16.mxu0 0
    %1348 = vmatpush1.bf16.msra.mxu0 0
    %1349 = vmatprep.subr.bf16.mxu0 0
    %1350 = vmatpush1.bf16.msra.mxu0 0
    %1351 = vmatprep.subr.bf16.mxu0 0
    %1352 = vmatpush1.bf16.msra.mxu0 0
    %1353 = vmatprep.subr.bf16.mxu0 0
    %1354 = vmatpush1.bf16.msra.mxu0 0
    %1355 = vmatprep.subr.bf16.mxu0 0
    %1356 = vmatpush1.bf16.msra.mxu0 0
    %1357 = vmatprep.subr.bf16.mxu0 0
    %1358 = vmatpush1.bf16.msra.mxu0 0
    %1359 = vmatprep.subr.bf16.mxu0 0
    %1360 = vmatpush1.bf16.msra.mxu0 0
    %1361 = vmatprep.subr.bf16.mxu0 0
    %1362 = vmatpush1.bf16.msra.mxu0 0
    %1363 = vmatprep.subr.bf16.mxu0 0
    %1364 = vmatpush1.bf16.msra.mxu0 0
    %1365 = vmatprep.subr.bf16.mxu0 0
    %1366 = vmatpush1.bf16.msra.mxu0 0
    %1367 = vmatprep.mubr.bf16.mxu0 0
    %1368 = vmatmul.mubr.bf16.gmra.mrb[0].mxu0 %v1288
    %v1369 = vpop.f32.mrb[0].mxu0
    %v1370 = vadd.f32 %v1149, %v1369
    %v1371 = vpop.f32.mrb[0].mxu0
    %v1372 = vpop.f32.mrb[0].mxu0
    %v1373 = vadd.f32 %v1152, %v1372
    %v1374 = vpop.f32.mrb[0].mxu0
    %1375 = vmatprep.mubr.bf16.mxu0 0
    %1376 = vmatmul.mubr.bf16.gmra.mrb[0].mxu0 %v1291
    %v1377 = vpop.f32.mrb[0].mxu0
    %v1378 = vadd.f32 %v1157, %v1377
    %v1379 = vpop.f32.mrb[0].mxu0
    %v1380 = vpop.f32.mrb[0].mxu0
    %v1381 = vadd.f32 %v1160, %v1380
    %v1382 = vpop.f32.mrb[0].mxu0
    %1383 = vmatprep.mubr.bf16.mxu0 0
    %1384 = vmatmul.mubr.bf16.gmra.mrb[0].mxu0 %v1294
    %v1385 = vpop.f32.mrb[0].mxu0
    %v1386 = vadd.f32 %v1165, %v1385
    %v1387 = vpop.f32.mrb[0].mxu0
    %v1388 = vpop.f32.mrb[0].mxu0
    %v1389 = vadd.f32 %v1168, %v1388
    %v1390 = vpop.f32.mrb[0].mxu0
    %1391 = vmatprep.mubr.bf16.mxu0 0
    %1392 = vmatmul.mubr.bf16.gmra.mrb[0].mxu0 %v1297
    %v1393 = vpop.f32.mrb[0].mxu0
    %v1394 = vadd.f32 %v1173, %v1393
    %v1395 = vpop.f32.mrb[0].mxu0
    %v1396 = vpop.f32.mrb[0].mxu0
    %v1397 = vadd.f32 %v1176, %v1396
    %v1398 = vpop.f32.mrb[0].mxu0
    %1399 = vmatprep.mubr.bf16.mxu0 0
    %1400 = vmatmul.mubr.bf16.gmra.mrb[0].mxu0 %v1300
    %v1401 = vpop.f32.mrb[0].mxu0
    %v1402 = vadd.f32 %v1181, %v1401
    %v1403 = vpop.f32.mrb[0].mxu0
    %v1404 = vpop.f32.mrb[0].mxu0
    %v1405 = vadd.f32 %v1184, %v1404
    %v1406 = vpop.f32.mrb[0].mxu0
    %1407 = vmatprep.mubr.bf16.mxu0 0
    %1408 = vmatmul.mubr.bf16.gmra.mrb[0].mxu0 %v1303
    %v1409 = vpop.f32.mrb[0].mxu0
    %v1410 = vadd.f32 %v1189, %v1409
    %v1411 = vpop.f32.mrb[0].mxu0
    %v1412 = vpop.f32.mrb[0].mxu0
    %v1413 = vadd.f32 %v1192, %v1412
    %v1414 = vpop.f32.mrb[0].mxu0
    %1415 = vmatprep.mubr.bf16.mxu0 0
    %1416 = vmatmul.mubr.bf16.gmra.mrb[0].mxu0 %v1306
    %v1417 = vpop.f32.mrb[0].mxu0
    %v1418 = vadd.f32 %v1197, %v1417
    %v1419 = vpop.f32.mrb[0].mxu0
    %v1420 = vpop.f32.mrb[0].mxu0
    %v1421 = vadd.f32 %v1200, %v1420
    %v1422 = vpop.f32.mrb[0].mxu0
    %1423 = vmatprep.mubr.bf16.mxu0 0
    %1424 = vmatmul.mubr.bf16.gmra.mrb[0].mxu0 %v1309
    %v1425 = vpop.f32.mrb[0].mxu0
    %v1426 = vadd.f32 %v1205, %v1425
    %v1427 = vpop.f32.mrb[0].mxu0
    %v1428 = vpop.f32.mrb[0].mxu0
    %v1429 = vadd.f32 %v1208, %v1428
    %v1430 = vpop.f32.mrb[0].mxu0
    %1431 = vmatprep.mubr.bf16.mxu0 0
    %1432 = vmatmul.mubr.bf16.gmra.mrb[0].mxu0 %v1312
    %v1433 = vpop.f32.mrb[0].mxu0
    %v1434 = vadd.f32 %v1213, %v1433
    %v1435 = vpop.f32.mrb[0].mxu0
    %v1436 = vpop.f32.mrb[0].mxu0
    %v1437 = vadd.f32 %v1216, %v1436
    %v1438 = vpop.f32.mrb[0].mxu0
    %1439 = vmatprep.mubr.bf16.mxu0 0
    %1440 = vmatmul.mubr.bf16.gmra.mrb[0].mxu0 %v1315
    %v1441 = vpop.f32.mrb[0].mxu0
    %v1442 = vadd.f32 %v1221, %v1441
    %v1443 = vpop.f32.mrb[0].mxu0
    %v1444 = vpop.f32.mrb[0].mxu0
    %v1445 = vadd.f32 %v1224, %v1444
    %v1446 = vpop.f32.mrb[0].mxu0
    %1447 = vmatprep.mubr.bf16.mxu0 0
    %1448 = vmatmul.mubr.bf16.gmra.mrb[0].mxu0 %v1318
    %v1449 = vpop.f32.mrb[0].mxu0
    %v1450 = vadd.f32 %v1229, %v1449
    %v1451 = vpop.f32.mrb[0].mxu0
    %v1452 = vpop.f32.mrb[0].mxu0
    %v1453 = vadd.f32 %v1232, %v1452
    %v1454 = vpop.f32.mrb[0].mxu0
    %1455 = vmatprep.mubr.bf16.mxu0 0
    %1456 = vmatmul.mubr.bf16.gmra.mrb[0].mxu0 %v1321
    %v1457 = vpop.f32.mrb[0].mxu0
    %v1458 = vadd.f32 %v1237, %v1457
    %v1459 = vpop.f32.mrb[0].mxu0
    %v1460 = vpop.f32.mrb[0].mxu0
    %v1461 = vadd.f32 %v1240, %v1460
    %v1462 = vpop.f32.mrb[0].mxu0
    %1463 = vmatprep.mubr.bf16.mxu0 0
    %1464 = vmatmul.mubr.bf16.gmra.mrb[0].mxu0 %v1324
    %v1465 = vpop.f32.mrb[0].mxu0
    %v1466 = vadd.f32 %v1245, %v1465
    %v1467 = vpop.f32.mrb[0].mxu0
    %v1468 = vpop.f32.mrb[0].mxu0
    %v1469 = vadd.f32 %v1248, %v1468
    %v1470 = vpop.f32.mrb[0].mxu0
    %1471 = vmatprep.mubr.bf16.mxu0 0
    %1472 = vmatmul.mubr.bf16.gmra.mrb[0].mxu0 %v1327
    %v1473 = vpop.f32.mrb[0].mxu0
    %v1474 = vadd.f32 %v1253, %v1473
    %v1475 = vpop.f32.mrb[0].mxu0
    %v1476 = vpop.f32.mrb[0].mxu0
    %v1477 = vadd.f32 %v1256, %v1476
    %v1478 = vpop.f32.mrb[0].mxu0
    %1479 = vmatprep.mubr.bf16.mxu0 0
    %1480 = vmatmul.mubr.bf16.gmra.mrb[0].mxu0 %v1330
    %v1481 = vpop.f32.mrb[0].mxu0
    %v1482 = vadd.f32 %v1261, %v1481
    %v1483 = vpop.f32.mrb[0].mxu0
    %v1484 = vpop.f32.mrb[0].mxu0
    %v1485 = vadd.f32 %v1264, %v1484
    %v1486 = vpop.f32.mrb[0].mxu0
    %1487 = vmatprep.mubr.bf16.mxu0 0
    %1488 = vmatmul.mubr.bf16.gmra.mrb[0].mxu0 %v1333
    %v1489 = vpop.f32.mrb[0].mxu0
    %v1490 = vadd.f32 %v1269, %v1489
    %v1491 = vpop.f32.mrb[0].mxu0
    %v1492 = vpop.f32.mrb[0].mxu0
    %v1493 = vadd.f32 %v1272, %v1492
    %v1494 = vpop.f32.mrb[0].mxu0
    %1495 = vdwg.mxu0
    %v1496 = vld [vmem:[%s995] sm:$0xff]
    %v1497 = vld [vmem:[%s995 + $0x8] sm:$0xff]
    %v1498 = vld [vmem:[%s995 + $0x10] sm:$0xff]
    %v1499 = vld [vmem:[%s995 + $0x18] sm:$0xff]
    %v1500 = vld [vmem:[%s995 + $0x20] sm:$0xff]
    %v1501 = vld [vmem:[%s995 + $0x28] sm:$0xff]
    %v1502 = vld [vmem:[%s995 + $0x30] sm:$0xff]
    %v1503 = vld [vmem:[%s995 + $0x38] sm:$0xff]
    %v1504 = vld [vmem:[%s995 + $0x40] sm:$0xff]
    %v1505 = vld [vmem:[%s995 + $0x48] sm:$0xff]
    %v1506 = vld [vmem:[%s995 + $0x50] sm:$0xff]
    %v1507 = vld [vmem:[%s995 + $0x58] sm:$0xff]
    %v1508 = vld [vmem:[%s995 + $0x60] sm:$0xff]
    %v1509 = vld [vmem:[%s995 + $0x68] sm:$0xff]
    %v1510 = vld [vmem:[%s995 + $0x70] sm:$0xff]
    %v1511 = vld [vmem:[%s995 + $0x78] sm:$0xff]
    %s1512 = scalar_lea.vmem %s3, 32
    %v1513 = vld [vmem:[%s1512] sm:$0xf]
    %v1514 = vld [vmem:[%s1512 + $0x4] sm:$0xf]
    %v1515 = vld [vmem:[%s1512 + $0x8] sm:$0xf]
    %v1516 = vld [vmem:[%s1512 + $0xc] sm:$0xf]
    %v1521 = vunpack.c.l.b16 %v1513
    %v1522 = vunpack.c.l.b16 %v1514
    %v1523 = vunpack.c.l.b16 %v1515
    %v1524 = vunpack.c.l.b16 %v1516
    %v1525 = vpack.c.b16 %v1522, %v1521
    %v1526 = vpack.c.b16 %v1524, %v1523
    %v1530 = vsel %vm976, %v1496, 0
    %v1533 = vsel %vm976, %v1497, 0
    %v1536 = vsel %vm976, %v1498, 0
    %v1539 = vsel %vm976, %v1499, 0
    %v1542 = vsel %vm976, %v1500, 0
    %v1545 = vsel %vm976, %v1501, 0
    %v1548 = vsel %vm976, %v1502, 0
    %v1551 = vsel %vm976, %v1503, 0
    %v1554 = vsel %vm976, %v1504, 0
    %v1557 = vsel %vm976, %v1505, 0
    %v1560 = vsel %vm976, %v1506, 0
    %v1563 = vsel %vm976, %v1507, 0
    %v1566 = vsel %vm976, %v1508, 0
    %v1569 = vsel %vm976, %v1509, 0
    %v1572 = vsel %vm976, %v1510, 0
    %v1575 = vsel %vm976, %v1511, 0
    %1577 = vmatprep.subr.bf16.mxu0 0
    %1578 = vmatpush1.bf16.msra.mxu0 %v1525
    %1579 = vmatprep.subr.bf16.mxu0 0
    %1580 = vmatpush1.bf16.msra.mxu0 %v1526
    %1581 = vmatprep.subr.bf16.mxu0 0
    %1582 = vmatpush1.bf16.msra.mxu0 0
    %1583 = vmatprep.subr.bf16.mxu0 0
    %1584 = vmatpush1.bf16.msra.mxu0 0
    %1585 = vmatprep.subr.bf16.mxu0 0
    %1586 = vmatpush1.bf16.msra.mxu0 0
    %1587 = vmatprep.subr.bf16.mxu0 0
    %1588 = vmatpush1.bf16.msra.mxu0 0
    %1589 = vmatprep.subr.bf16.mxu0 0
    %1590 = vmatpush1.bf16.msra.mxu0 0
    %1591 = vmatprep.subr.bf16.mxu0 0
    %1592 = vmatpush1.bf16.msra.mxu0 0
    %1593 = vmatprep.subr.bf16.mxu0 0
    %1594 = vmatpush1.bf16.msra.mxu0 0
    %1595 = vmatprep.subr.bf16.mxu0 0
    %1596 = vmatpush1.bf16.msra.mxu0 0
    %1597 = vmatprep.subr.bf16.mxu0 0
    %1598 = vmatpush1.bf16.msra.mxu0 0
    %1599 = vmatprep.subr.bf16.mxu0 0
    %1600 = vmatpush1.bf16.msra.mxu0 0
    %1601 = vmatprep.subr.bf16.mxu0 0
    %1602 = vmatpush1.bf16.msra.mxu0 0
    %1603 = vmatprep.subr.bf16.mxu0 0
    %1604 = vmatpush1.bf16.msra.mxu0 0
    %1605 = vmatprep.subr.bf16.mxu0 0
    %1606 = vmatpush1.bf16.msra.mxu0 0
    %1607 = vmatprep.subr.bf16.mxu0 0
    %1608 = vmatpush1.bf16.msra.mxu0 0
    %1609 = vmatprep.mubr.bf16.mxu0 0
    %1610 = vmatmul.mubr.bf16.gmra.mrb[0].mxu0 %v1530
    %v1611 = vpop.f32.mrb[0].mxu0
    %v1612 = vadd.f32 0.0, %v1611
    %v1613 = vpop.f32.mrb[0].mxu0
    %v1614 = vpop.f32.mrb[0].mxu0
    %v1615 = vadd.f32 0.0, %v1614
    %v1616 = vpop.f32.mrb[0].mxu0
    %1617 = vmatprep.mubr.bf16.mxu0 0
    %1618 = vmatmul.mubr.bf16.gmra.mrb[0].mxu0 %v1533
    %v1619 = vpop.f32.mrb[0].mxu0
    %v1620 = vadd.f32 0.0, %v1619
    %v1621 = vpop.f32.mrb[0].mxu0
    %v1622 = vpop.f32.mrb[0].mxu0
    %v1623 = vadd.f32 0.0, %v1622
    %v1624 = vpop.f32.mrb[0].mxu0
    %1625 = vmatprep.mubr.bf16.mxu0 0
    %1626 = vmatmul.mubr.bf16.gmra.mrb[0].mxu0 %v1536
    %v1627 = vpop.f32.mrb[0].mxu0
    %v1628 = vadd.f32 0.0, %v1627
    %v1629 = vpop.f32.mrb[0].mxu0
    %v1630 = vpop.f32.mrb[0].mxu0
    %v1631 = vadd.f32 0.0, %v1630
    %v1632 = vpop.f32.mrb[0].mxu0
    %1633 = vmatprep.mubr.bf16.mxu0 0
    %1634 = vmatmul.mubr.bf16.gmra.mrb[0].mxu0 %v1539
    %v1635 = vpop.f32.mrb[0].mxu0
    %v1636 = vadd.f32 0.0, %v1635
    %v1637 = vpop.f32.mrb[0].mxu0
    %v1638 = vpop.f32.mrb[0].mxu0
    %v1639 = vadd.f32 0.0, %v1638
    %v1640 = vpop.f32.mrb[0].mxu0
    %1641 = vmatprep.mubr.bf16.mxu0 0
    %1642 = vmatmul.mubr.bf16.gmra.mrb[0].mxu0 %v1542
    %v1643 = vpop.f32.mrb[0].mxu0
    %v1644 = vadd.f32 0.0, %v1643
    %v1645 = vpop.f32.mrb[0].mxu0
    %v1646 = vpop.f32.mrb[0].mxu0
    %v1647 = vadd.f32 0.0, %v1646
    %v1648 = vpop.f32.mrb[0].mxu0
    %1649 = vmatprep.mubr.bf16.mxu0 0
    %1650 = vmatmul.mubr.bf16.gmra.mrb[0].mxu0 %v1545
    %v1651 = vpop.f32.mrb[0].mxu0
    %v1652 = vadd.f32 0.0, %v1651
    %v1653 = vpop.f32.mrb[0].mxu0
    %v1654 = vpop.f32.mrb[0].mxu0
    %v1655 = vadd.f32 0.0, %v1654
    %v1656 = vpop.f32.mrb[0].mxu0
    %1657 = vmatprep.mubr.bf16.mxu0 0
    %1658 = vmatmul.mubr.bf16.gmra.mrb[0].mxu0 %v1548
    %v1659 = vpop.f32.mrb[0].mxu0
    %v1660 = vadd.f32 0.0, %v1659
    %v1661 = vpop.f32.mrb[0].mxu0
    %v1662 = vpop.f32.mrb[0].mxu0
    %v1663 = vadd.f32 0.0, %v1662
    %v1664 = vpop.f32.mrb[0].mxu0
    %1665 = vmatprep.mubr.bf16.mxu0 0
    %1666 = vmatmul.mubr.bf16.gmra.mrb[0].mxu0 %v1551
    %v1667 = vpop.f32.mrb[0].mxu0
    %v1668 = vadd.f32 0.0, %v1667
    %v1669 = vpop.f32.mrb[0].mxu0
    %v1670 = vpop.f32.mrb[0].mxu0
    %v1671 = vadd.f32 0.0, %v1670
    %v1672 = vpop.f32.mrb[0].mxu0
    %1673 = vmatprep.mubr.bf16.mxu0 0
    %1674 = vmatmul.mubr.bf16.gmra.mrb[0].mxu0 %v1554
    %v1675 = vpop.f32.mrb[0].mxu0
    %v1676 = vadd.f32 0.0, %v1675
    %v1677 = vpop.f32.mrb[0].mxu0
    %v1678 = vpop.f32.mrb[0].mxu0
    %v1679 = vadd.f32 0.0, %v1678
    %v1680 = vpop.f32.mrb[0].mxu0
    %1681 = vmatprep.mubr.bf16.mxu0 0
    %1682 = vmatmul.mubr.bf16.gmra.mrb[0].mxu0 %v1557
    %v1683 = vpop.f32.mrb[0].mxu0
    %v1684 = vadd.f32 0.0, %v1683
    %v1685 = vpop.f32.mrb[0].mxu0
    %v1686 = vpop.f32.mrb[0].mxu0
    %v1687 = vadd.f32 0.0, %v1686
    %v1688 = vpop.f32.mrb[0].mxu0
    %1689 = vmatprep.mubr.bf16.mxu0 0
    %1690 = vmatmul.mubr.bf16.gmra.mrb[0].mxu0 %v1560
    %v1691 = vpop.f32.mrb[0].mxu0
    %v1692 = vadd.f32 0.0, %v1691
    %v1693 = vpop.f32.mrb[0].mxu0
    %v1694 = vpop.f32.mrb[0].mxu0
    %v1695 = vadd.f32 0.0, %v1694
    %v1696 = vpop.f32.mrb[0].mxu0
    %1697 = vmatprep.mubr.bf16.mxu0 0
    %1698 = vmatmul.mubr.bf16.gmra.mrb[0].mxu0 %v1563
    %v1699 = vpop.f32.mrb[0].mxu0
    %v1700 = vadd.f32 0.0, %v1699
    %v1701 = vpop.f32.mrb[0].mxu0
    %v1702 = vpop.f32.mrb[0].mxu0
    %v1703 = vadd.f32 0.0, %v1702
    %v1704 = vpop.f32.mrb[0].mxu0
    %1705 = vmatprep.mubr.bf16.mxu0 0
    %1706 = vmatmul.mubr.bf16.gmra.mrb[0].mxu0 %v1566
    %v1707 = vpop.f32.mrb[0].mxu0
    %v1708 = vadd.f32 0.0, %v1707
    %v1709 = vpop.f32.mrb[0].mxu0
    %v1710 = vpop.f32.mrb[0].mxu0
    %v1711 = vadd.f32 0.0, %v1710
    %v1712 = vpop.f32.mrb[0].mxu0
    %1713 = vmatprep.mubr.bf16.mxu0 0
    %1714 = vmatmul.mubr.bf16.gmra.mrb[0].mxu0 %v1569
    %v1715 = vpop.f32.mrb[0].mxu0
    %v1716 = vadd.f32 0.0, %v1715
    %v1717 = vpop.f32.mrb[0].mxu0
    %v1718 = vpop.f32.mrb[0].mxu0
    %v1719 = vadd.f32 0.0, %v1718
    %v1720 = vpop.f32.mrb[0].mxu0
    %1721 = vmatprep.mubr.bf16.mxu0 0
    %1722 = vmatmul.mubr.bf16.gmra.mrb[0].mxu0 %v1572
    %v1723 = vpop.f32.mrb[0].mxu0
    %v1724 = vadd.f32 0.0, %v1723
    %v1725 = vpop.f32.mrb[0].mxu0
    %v1726 = vpop.f32.mrb[0].mxu0
    %v1727 = vadd.f32 0.0, %v1726
    %v1728 = vpop.f32.mrb[0].mxu0
    %1729 = vmatprep.mubr.bf16.mxu0 0
    %1730 = vmatmul.mubr.bf16.gmra.mrb[0].mxu0 %v1575
    %v1731 = vpop.f32.mrb[0].mxu0
    %v1732 = vadd.f32 0.0, %v1731
    %v1733 = vpop.f32.mrb[0].mxu0
    %v1734 = vpop.f32.mrb[0].mxu0
    %v1735 = vadd.f32 0.0, %v1734
    %v1736 = vpop.f32.mrb[0].mxu0
    %1737 = vdwg.mxu0
    %v1738 = vadd.f32 %v1370, %v1612
    %v1739 = vadd.f32 %v1373, %v1615
    %v1740 = vadd.f32 %v1378, %v1620
    %v1741 = vadd.f32 %v1381, %v1623
    %v1742 = vadd.f32 %v1386, %v1628
    %v1743 = vadd.f32 %v1389, %v1631
    %v1744 = vadd.f32 %v1394, %v1636
    %v1745 = vadd.f32 %v1397, %v1639
    %v1746 = vadd.f32 %v1402, %v1644
    %v1747 = vadd.f32 %v1405, %v1647
    %v1748 = vadd.f32 %v1410, %v1652
    %v1749 = vadd.f32 %v1413, %v1655
    %v1750 = vadd.f32 %v1418, %v1660
    %v1751 = vadd.f32 %v1421, %v1663
    %v1752 = vadd.f32 %v1426, %v1668
    %v1753 = vadd.f32 %v1429, %v1671
    %v1754 = vadd.f32 %v1434, %v1676
    %v1755 = vadd.f32 %v1437, %v1679
    %v1756 = vadd.f32 %v1442, %v1684
    %v1757 = vadd.f32 %v1445, %v1687
    %v1758 = vadd.f32 %v1450, %v1692
    %v1759 = vadd.f32 %v1453, %v1695
    %v1760 = vadd.f32 %v1458, %v1700
    %v1761 = vadd.f32 %v1461, %v1703
    %v1762 = vadd.f32 %v1466, %v1708
    %v1763 = vadd.f32 %v1469, %v1711
    %v1764 = vadd.f32 %v1474, %v1716
    %v1765 = vadd.f32 %v1477, %v1719
    %v1766 = vadd.f32 %v1482, %v1724
    %v1767 = vadd.f32 %v1485, %v1727
    %v1768 = vadd.f32 %v1490, %v1732
    %v1769 = vadd.f32 %v1493, %v1735
    %v1770 = vld [vmem:[%s4] sm:$0x1]
    %v1772 = vlaneseq
    %v1773 = vshrl.u32 %v1772, 7
    %v1774 = vsub.s32 0, %v1773
    %v1775 = vrot.slane %v1770, %v1774
    %v1777 = vadd.f32 %v1738, %v1775
    %v1778 = vadd.f32 %v1739, %v1775
    %v1779 = vadd.f32 %v1740, %v1775
    %v1780 = vadd.f32 %v1741, %v1775
    %v1781 = vadd.f32 %v1742, %v1775
    %v1782 = vadd.f32 %v1743, %v1775
    %v1783 = vadd.f32 %v1744, %v1775
    %v1784 = vadd.f32 %v1745, %v1775
    %v1785 = vadd.f32 %v1746, %v1775
    %v1786 = vadd.f32 %v1747, %v1775
    %v1787 = vadd.f32 %v1748, %v1775
    %v1788 = vadd.f32 %v1749, %v1775
    %v1789 = vadd.f32 %v1750, %v1775
    %v1790 = vadd.f32 %v1751, %v1775
    %v1791 = vadd.f32 %v1752, %v1775
    %v1792 = vadd.f32 %v1753, %v1775
    %v1793 = vadd.f32 %v1754, %v1775
    %v1794 = vadd.f32 %v1755, %v1775
    %v1795 = vadd.f32 %v1756, %v1775
    %v1796 = vadd.f32 %v1757, %v1775
    %v1797 = vadd.f32 %v1758, %v1775
    %v1798 = vadd.f32 %v1759, %v1775
    %v1799 = vadd.f32 %v1760, %v1775
    %v1800 = vadd.f32 %v1761, %v1775
    %v1801 = vadd.f32 %v1762, %v1775
    %v1802 = vadd.f32 %v1763, %v1775
    %v1803 = vadd.f32 %v1764, %v1775
    %v1804 = vadd.f32 %v1765, %v1775
    %v1805 = vadd.f32 %v1766, %v1775
    %v1806 = vadd.f32 %v1767, %v1775
    %v1807 = vadd.f32 %v1768, %v1775
    %v1808 = vadd.f32 %v1769, %v1775
    %v1809 = vmax.f32 %v1777, 0.0
    %v1810 = vmax.f32 %v1778, 0.0
    %v1811 = vmax.f32 %v1779, 0.0
    %v1812 = vmax.f32 %v1780, 0.0
    %v1813 = vmax.f32 %v1781, 0.0
    %v1814 = vmax.f32 %v1782, 0.0
    %v1815 = vmax.f32 %v1783, 0.0
    %v1816 = vmax.f32 %v1784, 0.0
    %v1817 = vmax.f32 %v1785, 0.0
    %v1818 = vmax.f32 %v1786, 0.0
    %v1819 = vmax.f32 %v1787, 0.0
    %v1820 = vmax.f32 %v1788, 0.0
    %v1821 = vmax.f32 %v1789, 0.0
    %v1822 = vmax.f32 %v1790, 0.0
    %v1823 = vmax.f32 %v1791, 0.0
    %v1824 = vmax.f32 %v1792, 0.0
    %v1825 = vmax.f32 %v1793, 0.0
    %v1826 = vmax.f32 %v1794, 0.0
    %v1827 = vmax.f32 %v1795, 0.0
    %v1828 = vmax.f32 %v1796, 0.0
    %v1829 = vmax.f32 %v1797, 0.0
    %v1830 = vmax.f32 %v1798, 0.0
    %v1831 = vmax.f32 %v1799, 0.0
    %v1832 = vmax.f32 %v1800, 0.0
    %v1833 = vmax.f32 %v1801, 0.0
    %v1834 = vmax.f32 %v1802, 0.0
    %v1835 = vmax.f32 %v1803, 0.0
    %v1836 = vmax.f32 %v1804, 0.0
    %v1837 = vmax.f32 %v1805, 0.0
    %v1838 = vmax.f32 %v1806, 0.0
    %v1839 = vmax.f32 %v1807, 0.0
    %v1840 = vmax.f32 %v1808, 0.0
    %1841 = vst.msk [vmem:[#allocation2] sm:$0xff] %vm976, 0
    %1842 = vst.msk [vmem:[#allocation2 + $0x8] sm:$0xff] %vm976, 0
    %1843 = vst.msk [vmem:[#allocation2 + $0x10] sm:$0xff] %vm976, 0
    %1844 = vst.msk [vmem:[#allocation2 + $0x18] sm:$0xff] %vm976, 0
    %v1845 = vpack.c.bf16 %v1810, %v1809
    %v1846 = vpack.c.bf16 %v1812, %v1811
    %v1847 = vpack.c.bf16 %v1814, %v1813
    %v1848 = vpack.c.bf16 %v1816, %v1815
    %v1849 = vpack.c.bf16 %v1818, %v1817
    %v1850 = vpack.c.bf16 %v1820, %v1819
    %v1851 = vpack.c.bf16 %v1822, %v1821
    %v1852 = vpack.c.bf16 %v1824, %v1823
    %v1853 = vpack.c.bf16 %v1826, %v1825
    %v1854 = vpack.c.bf16 %v1828, %v1827
    %v1855 = vpack.c.bf16 %v1830, %v1829
    %v1856 = vpack.c.bf16 %v1832, %v1831
    %v1857 = vpack.c.bf16 %v1834, %v1833
    %v1858 = vpack.c.bf16 %v1836, %v1835
    %v1859 = vpack.c.bf16 %v1838, %v1837
    %v1860 = vpack.c.bf16 %v1840, %v1839
    %s1861 = scalar_lea.vmem [#allocation2], 32
    %1862 = vst.msk [vmem:[%s1861] sm:$0xff] %vm976, %v1845
    %1863 = vst.msk [vmem:[%s1861 + $0x8] sm:$0xff] %vm976, %v1846
    %1864 = vst.msk [vmem:[%s1861 + $0x10] sm:$0xff] %vm976, %v1847
    %1865 = vst.msk [vmem:[%s1861 + $0x18] sm:$0xff] %vm976, %v1848
    %1866 = vst.msk [vmem:[%s1861 + $0x20] sm:$0xff] %vm976, %v1849
    %1867 = vst.msk [vmem:[%s1861 + $0x28] sm:$0xff] %vm976, %v1850
    %1868 = vst.msk [vmem:[%s1861 + $0x30] sm:$0xff] %vm976, %v1851
    %1869 = vst.msk [vmem:[%s1861 + $0x38] sm:$0xff] %vm976, %v1852
    %1870 = vst.msk [vmem:[%s1861 + $0x40] sm:$0xff] %vm976, %v1853
    %1871 = vst.msk [vmem:[%s1861 + $0x48] sm:$0xff] %vm976, %v1854
    %1872 = vst.msk [vmem:[%s1861 + $0x50] sm:$0xff] %vm976, %v1855
    %1873 = vst.msk [vmem:[%s1861 + $0x58] sm:$0xff] %vm976, %v1856
    %1874 = vst.msk [vmem:[%s1861 + $0x60] sm:$0xff] %vm976, %v1857
    %1875 = vst.msk [vmem:[%s1861 + $0x68] sm:$0xff] %vm976, %v1858
    %1876 = vst.msk [vmem:[%s1861 + $0x70] sm:$0xff] %vm976, %v1859
    %1877 = vst.msk [vmem:[%s1861 + $0x78] sm:$0xff] %vm976, %v1860
    %v1878 = vld [vmem:[#allocation2] sm:$0xff]
    %v1879 = vld [vmem:[#allocation2 + $0x8] sm:$0xff]
    %v1880 = vld [vmem:[#allocation2 + $0x10] sm:$0xff]
    %v1881 = vld [vmem:[#allocation2 + $0x18] sm:$0xff]
    %v1882 = vld [vmem:[#allocation2 + $0x20] sm:$0xff]
    %v1883 = vld [vmem:[#allocation2 + $0x28] sm:$0xff]
    %v1884 = vld [vmem:[#allocation2 + $0x30] sm:$0xff]
    %v1885 = vld [vmem:[#allocation2 + $0x38] sm:$0xff]
    %v1886 = vld [vmem:[#allocation2 + $0x40] sm:$0xff]
    %v1887 = vld [vmem:[#allocation2 + $0x48] sm:$0xff]
    %v1888 = vld [vmem:[#allocation2 + $0x50] sm:$0xff]
    %v1889 = vld [vmem:[#allocation2 + $0x58] sm:$0xff]
    %v1890 = vld [vmem:[#allocation2 + $0x60] sm:$0xff]
    %v1891 = vld [vmem:[#allocation2 + $0x68] sm:$0xff]
    %v1892 = vld [vmem:[#allocation2 + $0x70] sm:$0xff]
    %v1893 = vld [vmem:[#allocation2 + $0x78] sm:$0xff]
    %v1894 = vld [vmem:[%s5] sm:$0xf]
    %v1895 = vld [vmem:[%s5 + $0x4] sm:$0xf]
    %v1896 = vld [vmem:[%s5 + $0x8] sm:$0xf]
    %v1897 = vld [vmem:[%s5 + $0xc] sm:$0xf]
    %v1898 = vld [vmem:[%s165] sm:$0xff]
    %v1899 = vld [vmem:[%s165 + $0x8] sm:$0xff]
    %v1900 = vld [vmem:[%s165 + $0x10] sm:$0xff]
    %v1901 = vld [vmem:[%s165 + $0x18] sm:$0xff]
    %v1902 = vld [vmem:[%s165 + $0x20] sm:$0xff]
    %v1903 = vld [vmem:[%s165 + $0x28] sm:$0xff]
    %v1904 = vld [vmem:[%s165 + $0x30] sm:$0xff]
    %v1905 = vld [vmem:[%s165 + $0x38] sm:$0xff]
    %v1906 = vld [vmem:[%s165 + $0x40] sm:$0xff]
    %v1907 = vld [vmem:[%s165 + $0x48] sm:$0xff]
    %v1908 = vld [vmem:[%s165 + $0x50] sm:$0xff]
    %v1909 = vld [vmem:[%s165 + $0x58] sm:$0xff]
    %v1910 = vld [vmem:[%s165 + $0x60] sm:$0xff]
    %v1911 = vld [vmem:[%s165 + $0x68] sm:$0xff]
    %v1912 = vld [vmem:[%s165 + $0x70] sm:$0xff]
    %v1913 = vld [vmem:[%s165 + $0x78] sm:$0xff]
    %s1914 = scalar_lea.vmem %s5, 16
    %v1915 = vld [vmem:[%s1914] sm:$0xf]
    %v1916 = vld [vmem:[%s1914 + $0x4] sm:$0xf]
    %v1917 = vld [vmem:[%s1914 + $0x8] sm:$0xf]
    %v1918 = vld [vmem:[%s1914 + $0xc] sm:$0xf]
    %v1923 = vunpack.c.l.b16 %v1915
    %v1924 = vunpack.c.l.b16 %v1916
    %v1925 = vunpack.c.l.b16 %v1917
    %v1926 = vunpack.c.l.b16 %v1918
    %v1927 = vpack.c.b16 %v1924, %v1923
    %v1928 = vpack.c.b16 %v1926, %v1925
    %v1932 = vsel %vm976, %v1898, 0
    %v1935 = vsel %vm976, %v1899, 0
    %v1938 = vsel %vm976, %v1900, 0
    %v1941 = vsel %vm976, %v1901, 0
    %v1944 = vsel %vm976, %v1902, 0
    %v1947 = vsel %vm976, %v1903, 0
    %v1950 = vsel %vm976, %v1904, 0
    %v1953 = vsel %vm976, %v1905, 0
    %v1956 = vsel %vm976, %v1906, 0
    %v1959 = vsel %vm976, %v1907, 0
    %v1962 = vsel %vm976, %v1908, 0
    %v1965 = vsel %vm976, %v1909, 0
    %v1968 = vsel %vm976, %v1910, 0
    %v1971 = vsel %vm976, %v1911, 0
    %v1974 = vsel %vm976, %v1912, 0
    %v1977 = vsel %vm976, %v1913, 0
    %1979 = vmatprep.subr.bf16.mxu0 0
    %1980 = vmatpush1.bf16.msra.mxu0 %v1927
    %1981 = vmatprep.subr.bf16.mxu0 0
    %1982 = vmatpush1.bf16.msra.mxu0 %v1928
    %1983 = vmatprep.subr.bf16.mxu0 0
    %1984 = vmatpush1.bf16.msra.mxu0 0
    %1985 = vmatprep.subr.bf16.mxu0 0
    %1986 = vmatpush1.bf16.msra.mxu0 0
    %1987 = vmatprep.subr.bf16.mxu0 0
    %1988 = vmatpush1.bf16.msra.mxu0 0
    %1989 = vmatprep.subr.bf16.mxu0 0
    %1990 = vmatpush1.bf16.msra.mxu0 0
    %1991 = vmatprep.subr.bf16.mxu0 0
    %1992 = vmatpush1.bf16.msra.mxu0 0
    %1993 = vmatprep.subr.bf16.mxu0 0
    %1994 = vmatpush1.bf16.msra.mxu0 0
    %1995 = vmatprep.subr.bf16.mxu0 0
    %1996 = vmatpush1.bf16.msra.mxu0 0
    %1997 = vmatprep.subr.bf16.mxu0 0
    %1998 = vmatpush1.bf16.msra.mxu0 0
    %1999 = vmatprep.subr.bf16.mxu0 0
    %2000 = vmatpush1.bf16.msra.mxu0 0
    %2001 = vmatprep.subr.bf16.mxu0 0
    %2002 = vmatpush1.bf16.msra.mxu0 0
    %2003 = vmatprep.subr.bf16.mxu0 0
    %2004 = vmatpush1.bf16.msra.mxu0 0
    %2005 = vmatprep.subr.bf16.mxu0 0
    %2006 = vmatpush1.bf16.msra.mxu0 0
    %2007 = vmatprep.subr.bf16.mxu0 0
    %2008 = vmatpush1.bf16.msra.mxu0 0
    %2009 = vmatprep.subr.bf16.mxu0 0
    %2010 = vmatpush1.bf16.msra.mxu0 0
    %2011 = vmatprep.mubr.bf16.mxu0 0
    %2012 = vmatmul.mubr.bf16.gmra.mrb[0].mxu0 %v1932
    %v2013 = vpop.f32.mrb[0].mxu0
    %v2014 = vadd.f32 0.0, %v2013
    %v2015 = vpop.f32.mrb[0].mxu0
    %v2016 = vpop.f32.mrb[0].mxu0
    %v2017 = vadd.f32 0.0, %v2016
    %v2018 = vpop.f32.mrb[0].mxu0
    %2019 = vmatprep.mubr.bf16.mxu0 0
    %2020 = vmatmul.mubr.bf16.gmra.mrb[0].mxu0 %v1935
    %v2021 = vpop.f32.mrb[0].mxu0
    %v2022 = vadd.f32 0.0, %v2021
    %v2023 = vpop.f32.mrb[0].mxu0
    %v2024 = vpop.f32.mrb[0].mxu0
    %v2025 = vadd.f32 0.0, %v2024
    %v2026 = vpop.f32.mrb[0].mxu0
    %2027 = vmatprep.mubr.bf16.mxu0 0
    %2028 = vmatmul.mubr.bf16.gmra.mrb[0].mxu0 %v1938
    %v2029 = vpop.f32.mrb[0].mxu0
    %v2030 = vadd.f32 0.0, %v2029
    %v2031 = vpop.f32.mrb[0].mxu0
    %v2032 = vpop.f32.mrb[0].mxu0
    %v2033 = vadd.f32 0.0, %v2032
    %v2034 = vpop.f32.mrb[0].mxu0
    %2035 = vmatprep.mubr.bf16.mxu0 0
    %2036 = vmatmul.mubr.bf16.gmra.mrb[0].mxu0 %v1941
    %v2037 = vpop.f32.mrb[0].mxu0
    %v2038 = vadd.f32 0.0, %v2037
    %v2039 = vpop.f32.mrb[0].mxu0
    %v2040 = vpop.f32.mrb[0].mxu0
    %v2041 = vadd.f32 0.0, %v2040
    %v2042 = vpop.f32.mrb[0].mxu0
    %2043 = vmatprep.mubr.bf16.mxu0 0
    %2044 = vmatmul.mubr.bf16.gmra.mrb[0].mxu0 %v1944
    %v2045 = vpop.f32.mrb[0].mxu0
    %v2046 = vadd.f32 0.0, %v2045
    %v2047 = vpop.f32.mrb[0].mxu0
    %v2048 = vpop.f32.mrb[0].mxu0
    %v2049 = vadd.f32 0.0, %v2048
    %v2050 = vpop.f32.mrb[0].mxu0
    %2051 = vmatprep.mubr.bf16.mxu0 0
    %2052 = vmatmul.mubr.bf16.gmra.mrb[0].mxu0 %v1947
    %v2053 = vpop.f32.mrb[0].mxu0
    %v2054 = vadd.f32 0.0, %v2053
    %v2055 = vpop.f32.mrb[0].mxu0
    %v2056 = vpop.f32.mrb[0].mxu0
    %v2057 = vadd.f32 0.0, %v2056
    %v2058 = vpop.f32.mrb[0].mxu0
    %2059 = vmatprep.mubr.bf16.mxu0 0
    %2060 = vmatmul.mubr.bf16.gmra.mrb[0].mxu0 %v1950
    %v2061 = vpop.f32.mrb[0].mxu0
    %v2062 = vadd.f32 0.0, %v2061
    %v2063 = vpop.f32.mrb[0].mxu0
    %v2064 = vpop.f32.mrb[0].mxu0
    %v2065 = vadd.f32 0.0, %v2064
    %v2066 = vpop.f32.mrb[0].mxu0
    %2067 = vmatprep.mubr.bf16.mxu0 0
    %2068 = vmatmul.mubr.bf16.gmra.mrb[0].mxu0 %v1953
    %v2069 = vpop.f32.mrb[0].mxu0
    %v2070 = vadd.f32 0.0, %v2069
    %v2071 = vpop.f32.mrb[0].mxu0
    %v2072 = vpop.f32.mrb[0].mxu0
    %v2073 = vadd.f32 0.0, %v2072
    %v2074 = vpop.f32.mrb[0].mxu0
    %2075 = vmatprep.mubr.bf16.mxu0 0
    %2076 = vmatmul.mubr.bf16.gmra.mrb[0].mxu0 %v1956
    %v2077 = vpop.f32.mrb[0].mxu0
    %v2078 = vadd.f32 0.0, %v2077
    %v2079 = vpop.f32.mrb[0].mxu0
    %v2080 = vpop.f32.mrb[0].mxu0
    %v2081 = vadd.f32 0.0, %v2080
    %v2082 = vpop.f32.mrb[0].mxu0
    %2083 = vmatprep.mubr.bf16.mxu0 0
    %2084 = vmatmul.mubr.bf16.gmra.mrb[0].mxu0 %v1959
    %v2085 = vpop.f32.mrb[0].mxu0
    %v2086 = vadd.f32 0.0, %v2085
    %v2087 = vpop.f32.mrb[0].mxu0
    %v2088 = vpop.f32.mrb[0].mxu0
    %v2089 = vadd.f32 0.0, %v2088
    %v2090 = vpop.f32.mrb[0].mxu0
    %2091 = vmatprep.mubr.bf16.mxu0 0
    %2092 = vmatmul.mubr.bf16.gmra.mrb[0].mxu0 %v1962
    %v2093 = vpop.f32.mrb[0].mxu0
    %v2094 = vadd.f32 0.0, %v2093
    %v2095 = vpop.f32.mrb[0].mxu0
    %v2096 = vpop.f32.mrb[0].mxu0
    %v2097 = vadd.f32 0.0, %v2096
    %v2098 = vpop.f32.mrb[0].mxu0
    %2099 = vmatprep.mubr.bf16.mxu0 0
    %2100 = vmatmul.mubr.bf16.gmra.mrb[0].mxu0 %v1965
    %v2101 = vpop.f32.mrb[0].mxu0
    %v2102 = vadd.f32 0.0, %v2101
    %v2103 = vpop.f32.mrb[0].mxu0
    %v2104 = vpop.f32.mrb[0].mxu0
    %v2105 = vadd.f32 0.0, %v2104
    %v2106 = vpop.f32.mrb[0].mxu0
    %2107 = vmatprep.mubr.bf16.mxu0 0
    %2108 = vmatmul.mubr.bf16.gmra.mrb[0].mxu0 %v1968
    %v2109 = vpop.f32.mrb[0].mxu0
    %v2110 = vadd.f32 0.0, %v2109
    %v2111 = vpop.f32.mrb[0].mxu0
    %v2112 = vpop.f32.mrb[0].mxu0
    %v2113 = vadd.f32 0.0, %v2112
    %v2114 = vpop.f32.mrb[0].mxu0
    %2115 = vmatprep.mubr.bf16.mxu0 0
    %2116 = vmatmul.mubr.bf16.gmra.mrb[0].mxu0 %v1971
    %v2117 = vpop.f32.mrb[0].mxu0
    %v2118 = vadd.f32 0.0, %v2117
    %v2119 = vpop.f32.mrb[0].mxu0
    %v2120 = vpop.f32.mrb[0].mxu0
    %v2121 = vadd.f32 0.0, %v2120
    %v2122 = vpop.f32.mrb[0].mxu0
    %2123 = vmatprep.mubr.bf16.mxu0 0
    %2124 = vmatmul.mubr.bf16.gmra.mrb[0].mxu0 %v1974
    %v2125 = vpop.f32.mrb[0].mxu0
    %v2126 = vadd.f32 0.0, %v2125
    %v2127 = vpop.f32.mrb[0].mxu0
    %v2128 = vpop.f32.mrb[0].mxu0
    %v2129 = vadd.f32 0.0, %v2128
    %v2130 = vpop.f32.mrb[0].mxu0
    %2131 = vmatprep.mubr.bf16.mxu0 0
    %2132 = vmatmul.mubr.bf16.gmra.mrb[0].mxu0 %v1977
    %v2133 = vpop.f32.mrb[0].mxu0
    %v2134 = vadd.f32 0.0, %v2133
    %v2135 = vpop.f32.mrb[0].mxu0
    %v2136 = vpop.f32.mrb[0].mxu0
    %v2137 = vadd.f32 0.0, %v2136
    %v2138 = vpop.f32.mrb[0].mxu0
    %2139 = vdwg.mxu0
    %v2144 = vunpack.c.l.b16 %v1894
    %v2145 = vunpack.c.l.b16 %v1895
    %v2146 = vunpack.c.l.b16 %v1896
    %v2147 = vunpack.c.l.b16 %v1897
    %v2148 = vpack.c.b16 %v2145, %v2144
    %v2149 = vpack.c.b16 %v2147, %v2146
    %v2153 = vsel %vm976, %v1878, 0
    %v2156 = vsel %vm976, %v1879, 0
    %v2159 = vsel %vm976, %v1880, 0
    %v2162 = vsel %vm976, %v1881, 0
    %v2165 = vsel %vm976, %v1882, 0
    %v2168 = vsel %vm976, %v1883, 0
    %v2171 = vsel %vm976, %v1884, 0
    %v2174 = vsel %vm976, %v1885, 0
    %v2177 = vsel %vm976, %v1886, 0
    %v2180 = vsel %vm976, %v1887, 0
    %v2183 = vsel %vm976, %v1888, 0
    %v2186 = vsel %vm976, %v1889, 0
    %v2189 = vsel %vm976, %v1890, 0
    %v2192 = vsel %vm976, %v1891, 0
    %v2195 = vsel %vm976, %v1892, 0
    %v2198 = vsel %vm976, %v1893, 0
    %2200 = vmatprep.subr.bf16.mxu0 0
    %2201 = vmatpush1.bf16.msra.mxu0 %v2148
    %2202 = vmatprep.subr.bf16.mxu0 0
    %2203 = vmatpush1.bf16.msra.mxu0 %v2149
    %2204 = vmatprep.subr.bf16.mxu0 0
    %2205 = vmatpush1.bf16.msra.mxu0 0
    %2206 = vmatprep.subr.bf16.mxu0 0
    %2207 = vmatpush1.bf16.msra.mxu0 0
    %2208 = vmatprep.subr.bf16.mxu0 0
    %2209 = vmatpush1.bf16.msra.mxu0 0
    %2210 = vmatprep.subr.bf16.mxu0 0
    %2211 = vmatpush1.bf16.msra.mxu0 0
    %2212 = vmatprep.subr.bf16.mxu0 0
    %2213 = vmatpush1.bf16.msra.mxu0 0
    %2214 = vmatprep.subr.bf16.mxu0 0
    %2215 = vmatpush1.bf16.msra.mxu0 0
    %2216 = vmatprep.subr.bf16.mxu0 0
    %2217 = vmatpush1.bf16.msra.mxu0 0
    %2218 = vmatprep.subr.bf16.mxu0 0
    %2219 = vmatpush1.bf16.msra.mxu0 0
    %2220 = vmatprep.subr.bf16.mxu0 0
    %2221 = vmatpush1.bf16.msra.mxu0 0
    %2222 = vmatprep.subr.bf16.mxu0 0
    %2223 = vmatpush1.bf16.msra.mxu0 0
    %2224 = vmatprep.subr.bf16.mxu0 0
    %2225 = vmatpush1.bf16.msra.mxu0 0
    %2226 = vmatprep.subr.bf16.mxu0 0
    %2227 = vmatpush1.bf16.msra.mxu0 0
    %2228 = vmatprep.subr.bf16.mxu0 0
    %2229 = vmatpush1.bf16.msra.mxu0 0
    %2230 = vmatprep.subr.bf16.mxu0 0
    %2231 = vmatpush1.bf16.msra.mxu0 0
    %2232 = vmatprep.mubr.bf16.mxu0 0
    %2233 = vmatmul.mubr.bf16.gmra.mrb[0].mxu0 %v2153
    %v2234 = vpop.f32.mrb[0].mxu0
    %v2235 = vadd.f32 %v2014, %v2234
    %v2236 = vpop.f32.mrb[0].mxu0
    %v2237 = vpop.f32.mrb[0].mxu0
    %v2238 = vadd.f32 %v2017, %v2237
    %v2239 = vpop.f32.mrb[0].mxu0
    %2240 = vmatprep.mubr.bf16.mxu0 0
    %2241 = vmatmul.mubr.bf16.gmra.mrb[0].mxu0 %v2156
    %v2242 = vpop.f32.mrb[0].mxu0
    %v2243 = vadd.f32 %v2022, %v2242
    %v2244 = vpop.f32.mrb[0].mxu0
    %v2245 = vpop.f32.mrb[0].mxu0
    %v2246 = vadd.f32 %v2025, %v2245
    %v2247 = vpop.f32.mrb[0].mxu0
    %2248 = vmatprep.mubr.bf16.mxu0 0
    %2249 = vmatmul.mubr.bf16.gmra.mrb[0].mxu0 %v2159
    %v2250 = vpop.f32.mrb[0].mxu0
    %v2251 = vadd.f32 %v2030, %v2250
    %v2252 = vpop.f32.mrb[0].mxu0
    %v2253 = vpop.f32.mrb[0].mxu0
    %v2254 = vadd.f32 %v2033, %v2253
    %v2255 = vpop.f32.mrb[0].mxu0
    %2256 = vmatprep.mubr.bf16.mxu0 0
    %2257 = vmatmul.mubr.bf16.gmra.mrb[0].mxu0 %v2162
    %v2258 = vpop.f32.mrb[0].mxu0
    %v2259 = vadd.f32 %v2038, %v2258
    %v2260 = vpop.f32.mrb[0].mxu0
    %v2261 = vpop.f32.mrb[0].mxu0
    %v2262 = vadd.f32 %v2041, %v2261
    %v2263 = vpop.f32.mrb[0].mxu0
    %2264 = vmatprep.mubr.bf16.mxu0 0
    %2265 = vmatmul.mubr.bf16.gmra.mrb[0].mxu0 %v2165
    %v2266 = vpop.f32.mrb[0].mxu0
    %v2267 = vadd.f32 %v2046, %v2266
    %v2268 = vpop.f32.mrb[0].mxu0
    %v2269 = vpop.f32.mrb[0].mxu0
    %v2270 = vadd.f32 %v2049, %v2269
    %v2271 = vpop.f32.mrb[0].mxu0
    %2272 = vmatprep.mubr.bf16.mxu0 0
    %2273 = vmatmul.mubr.bf16.gmra.mrb[0].mxu0 %v2168
    %v2274 = vpop.f32.mrb[0].mxu0
    %v2275 = vadd.f32 %v2054, %v2274
    %v2276 = vpop.f32.mrb[0].mxu0
    %v2277 = vpop.f32.mrb[0].mxu0
    %v2278 = vadd.f32 %v2057, %v2277
    %v2279 = vpop.f32.mrb[0].mxu0
    %2280 = vmatprep.mubr.bf16.mxu0 0
    %2281 = vmatmul.mubr.bf16.gmra.mrb[0].mxu0 %v2171
    %v2282 = vpop.f32.mrb[0].mxu0
    %v2283 = vadd.f32 %v2062, %v2282
    %v2284 = vpop.f32.mrb[0].mxu0
    %v2285 = vpop.f32.mrb[0].mxu0
    %v2286 = vadd.f32 %v2065, %v2285
    %v2287 = vpop.f32.mrb[0].mxu0
    %2288 = vmatprep.mubr.bf16.mxu0 0
    %2289 = vmatmul.mubr.bf16.gmra.mrb[0].mxu0 %v2174
    %v2290 = vpop.f32.mrb[0].mxu0
    %v2291 = vadd.f32 %v2070, %v2290
    %v2292 = vpop.f32.mrb[0].mxu0
    %v2293 = vpop.f32.mrb[0].mxu0
    %v2294 = vadd.f32 %v2073, %v2293
    %v2295 = vpop.f32.mrb[0].mxu0
    %2296 = vmatprep.mubr.bf16.mxu0 0
    %2297 = vmatmul.mubr.bf16.gmra.mrb[0].mxu0 %v2177
    %v2298 = vpop.f32.mrb[0].mxu0
    %v2299 = vadd.f32 %v2078, %v2298
    %v2300 = vpop.f32.mrb[0].mxu0
    %v2301 = vpop.f32.mrb[0].mxu0
    %v2302 = vadd.f32 %v2081, %v2301
    %v2303 = vpop.f32.mrb[0].mxu0
    %2304 = vmatprep.mubr.bf16.mxu0 0
    %2305 = vmatmul.mubr.bf16.gmra.mrb[0].mxu0 %v2180
    %v2306 = vpop.f32.mrb[0].mxu0
    %v2307 = vadd.f32 %v2086, %v2306
    %v2308 = vpop.f32.mrb[0].mxu0
    %v2309 = vpop.f32.mrb[0].mxu0
    %v2310 = vadd.f32 %v2089, %v2309
    %v2311 = vpop.f32.mrb[0].mxu0
    %2312 = vmatprep.mubr.bf16.mxu0 0
    %2313 = vmatmul.mubr.bf16.gmra.mrb[0].mxu0 %v2183
    %v2314 = vpop.f32.mrb[0].mxu0
    %v2315 = vadd.f32 %v2094, %v2314
    %v2316 = vpop.f32.mrb[0].mxu0
    %v2317 = vpop.f32.mrb[0].mxu0
    %v2318 = vadd.f32 %v2097, %v2317
    %v2319 = vpop.f32.mrb[0].mxu0
    %2320 = vmatprep.mubr.bf16.mxu0 0
    %2321 = vmatmul.mubr.bf16.gmra.mrb[0].mxu0 %v2186
    %v2322 = vpop.f32.mrb[0].mxu0
    %v2323 = vadd.f32 %v2102, %v2322
    %v2324 = vpop.f32.mrb[0].mxu0
    %v2325 = vpop.f32.mrb[0].mxu0
    %v2326 = vadd.f32 %v2105, %v2325
    %v2327 = vpop.f32.mrb[0].mxu0
    %2328 = vmatprep.mubr.bf16.mxu0 0
    %2329 = vmatmul.mubr.bf16.gmra.mrb[0].mxu0 %v2189
    %v2330 = vpop.f32.mrb[0].mxu0
    %v2331 = vadd.f32 %v2110, %v2330
    %v2332 = vpop.f32.mrb[0].mxu0
    %v2333 = vpop.f32.mrb[0].mxu0
    %v2334 = vadd.f32 %v2113, %v2333
    %v2335 = vpop.f32.mrb[0].mxu0
    %2336 = vmatprep.mubr.bf16.mxu0 0
    %2337 = vmatmul.mubr.bf16.gmra.mrb[0].mxu0 %v2192
    %v2338 = vpop.f32.mrb[0].mxu0
    %v2339 = vadd.f32 %v2118, %v2338
    %v2340 = vpop.f32.mrb[0].mxu0
    %v2341 = vpop.f32.mrb[0].mxu0
    %v2342 = vadd.f32 %v2121, %v2341
    %v2343 = vpop.f32.mrb[0].mxu0
    %2344 = vmatprep.mubr.bf16.mxu0 0
    %2345 = vmatmul.mubr.bf16.gmra.mrb[0].mxu0 %v2195
    %v2346 = vpop.f32.mrb[0].mxu0
    %v2347 = vadd.f32 %v2126, %v2346
    %v2348 = vpop.f32.mrb[0].mxu0
    %v2349 = vpop.f32.mrb[0].mxu0
    %v2350 = vadd.f32 %v2129, %v2349
    %v2351 = vpop.f32.mrb[0].mxu0
    %2352 = vmatprep.mubr.bf16.mxu0 0
    %2353 = vmatmul.mubr.bf16.gmra.mrb[0].mxu0 %v2198
    %v2354 = vpop.f32.mrb[0].mxu0
    %v2355 = vadd.f32 %v2134, %v2354
    %v2356 = vpop.f32.mrb[0].mxu0
    %v2357 = vpop.f32.mrb[0].mxu0
    %v2358 = vadd.f32 %v2137, %v2357
    %v2359 = vpop.f32.mrb[0].mxu0
    %2360 = vdwg.mxu0
    %v2361 = vld [vmem:[%s1861] sm:$0xff]
    %v2362 = vld [vmem:[%s1861 + $0x8] sm:$0xff]
    %v2363 = vld [vmem:[%s1861 + $0x10] sm:$0xff]
    %v2364 = vld [vmem:[%s1861 + $0x18] sm:$0xff]
    %v2365 = vld [vmem:[%s1861 + $0x20] sm:$0xff]
    %v2366 = vld [vmem:[%s1861 + $0x28] sm:$0xff]
    %v2367 = vld [vmem:[%s1861 + $0x30] sm:$0xff]
    %v2368 = vld [vmem:[%s1861 + $0x38] sm:$0xff]
    %v2369 = vld [vmem:[%s1861 + $0x40] sm:$0xff]
    %v2370 = vld [vmem:[%s1861 + $0x48] sm:$0xff]
    %v2371 = vld [vmem:[%s1861 + $0x50] sm:$0xff]
    %v2372 = vld [vmem:[%s1861 + $0x58] sm:$0xff]
    %v2373 = vld [vmem:[%s1861 + $0x60] sm:$0xff]
    %v2374 = vld [vmem:[%s1861 + $0x68] sm:$0xff]
    %v2375 = vld [vmem:[%s1861 + $0x70] sm:$0xff]
    %v2376 = vld [vmem:[%s1861 + $0x78] sm:$0xff]
    %s2377 = scalar_lea.vmem %s5, 32
    %v2378 = vld [vmem:[%s2377] sm:$0xf]
    %v2379 = vld [vmem:[%s2377 + $0x4] sm:$0xf]
    %v2380 = vld [vmem:[%s2377 + $0x8] sm:$0xf]
    %v2381 = vld [vmem:[%s2377 + $0xc] sm:$0xf]
    %v2386 = vunpack.c.l.b16 %v2378
    %v2387 = vunpack.c.l.b16 %v2379
    %v2388 = vunpack.c.l.b16 %v2380
    %v2389 = vunpack.c.l.b16 %v2381
    %v2390 = vpack.c.b16 %v2387, %v2386
    %v2391 = vpack.c.b16 %v2389, %v2388
    %v2395 = vsel %vm976, %v2361, 0
    %v2398 = vsel %vm976, %v2362, 0
    %v2401 = vsel %vm976, %v2363, 0
    %v2404 = vsel %vm976, %v2364, 0
    %v2407 = vsel %vm976, %v2365, 0
    %v2410 = vsel %vm976, %v2366, 0
    %v2413 = vsel %vm976, %v2367, 0
    %v2416 = vsel %vm976, %v2368, 0
    %v2419 = vsel %vm976, %v2369, 0
    %v2422 = vsel %vm976, %v2370, 0
    %v2425 = vsel %vm976, %v2371, 0
    %v2428 = vsel %vm976, %v2372, 0
    %v2431 = vsel %vm976, %v2373, 0
    %v2434 = vsel %vm976, %v2374, 0
    %v2437 = vsel %vm976, %v2375, 0
    %v2440 = vsel %vm976, %v2376, 0
    %2442 = vmatprep.subr.bf16.mxu0 0
    %2443 = vmatpush1.bf16.msra.mxu0 %v2390
    %2444 = vmatprep.subr.bf16.mxu0 0
    %2445 = vmatpush1.bf16.msra.mxu0 %v2391
    %2446 = vmatprep.subr.bf16.mxu0 0
    %2447 = vmatpush1.bf16.msra.mxu0 0
    %2448 = vmatprep.subr.bf16.mxu0 0
    %2449 = vmatpush1.bf16.msra.mxu0 0
    %2450 = vmatprep.subr.bf16.mxu0 0
    %2451 = vmatpush1.bf16.msra.mxu0 0
    %2452 = vmatprep.subr.bf16.mxu0 0
    %2453 = vmatpush1.bf16.msra.mxu0 0
    %2454 = vmatprep.subr.bf16.mxu0 0
    %2455 = vmatpush1.bf16.msra.mxu0 0
    %2456 = vmatprep.subr.bf16.mxu0 0
    %2457 = vmatpush1.bf16.msra.mxu0 0
    %2458 = vmatprep.subr.bf16.mxu0 0
    %2459 = vmatpush1.bf16.msra.mxu0 0
    %2460 = vmatprep.subr.bf16.mxu0 0
    %2461 = vmatpush1.bf16.msra.mxu0 0
    %2462 = vmatprep.subr.bf16.mxu0 0
    %2463 = vmatpush1.bf16.msra.mxu0 0
    %2464 = vmatprep.subr.bf16.mxu0 0
    %2465 = vmatpush1.bf16.msra.mxu0 0
    %2466 = vmatprep.subr.bf16.mxu0 0
    %2467 = vmatpush1.bf16.msra.mxu0 0
    %2468 = vmatprep.subr.bf16.mxu0 0
    %2469 = vmatpush1.bf16.msra.mxu0 0
    %2470 = vmatprep.subr.bf16.mxu0 0
    %2471 = vmatpush1.bf16.msra.mxu0 0
    %2472 = vmatprep.subr.bf16.mxu0 0
    %2473 = vmatpush1.bf16.msra.mxu0 0
    %2474 = vmatprep.mubr.bf16.mxu0 0
    %2475 = vmatmul.mubr.bf16.gmra.mrb[0].mxu0 %v2395
    %v2476 = vpop.f32.mrb[0].mxu0
    %v2477 = vadd.f32 0.0, %v2476
    %v2478 = vpop.f32.mrb[0].mxu0
    %v2479 = vpop.f32.mrb[0].mxu0
    %v2480 = vadd.f32 0.0, %v2479
    %v2481 = vpop.f32.mrb[0].mxu0
    %2482 = vmatprep.mubr.bf16.mxu0 0
    %2483 = vmatmul.mubr.bf16.gmra.mrb[0].mxu0 %v2398
    %v2484 = vpop.f32.mrb[0].mxu0
    %v2485 = vadd.f32 0.0, %v2484
    %v2486 = vpop.f32.mrb[0].mxu0
    %v2487 = vpop.f32.mrb[0].mxu0
    %v2488 = vadd.f32 0.0, %v2487
    %v2489 = vpop.f32.mrb[0].mxu0
    %2490 = vmatprep.mubr.bf16.mxu0 0
    %2491 = vmatmul.mubr.bf16.gmra.mrb[0].mxu0 %v2401
    %v2492 = vpop.f32.mrb[0].mxu0
    %v2493 = vadd.f32 0.0, %v2492
    %v2494 = vpop.f32.mrb[0].mxu0
    %v2495 = vpop.f32.mrb[0].mxu0
    %v2496 = vadd.f32 0.0, %v2495
    %v2497 = vpop.f32.mrb[0].mxu0
    %2498 = vmatprep.mubr.bf16.mxu0 0
    %2499 = vmatmul.mubr.bf16.gmra.mrb[0].mxu0 %v2404
    %v2500 = vpop.f32.mrb[0].mxu0
    %v2501 = vadd.f32 0.0, %v2500
    %v2502 = vpop.f32.mrb[0].mxu0
    %v2503 = vpop.f32.mrb[0].mxu0
    %v2504 = vadd.f32 0.0, %v2503
    %v2505 = vpop.f32.mrb[0].mxu0
    %2506 = vmatprep.mubr.bf16.mxu0 0
    %2507 = vmatmul.mubr.bf16.gmra.mrb[0].mxu0 %v2407
    %v2508 = vpop.f32.mrb[0].mxu0
    %v2509 = vadd.f32 0.0, %v2508
    %v2510 = vpop.f32.mrb[0].mxu0
    %v2511 = vpop.f32.mrb[0].mxu0
    %v2512 = vadd.f32 0.0, %v2511
    %v2513 = vpop.f32.mrb[0].mxu0
    %2514 = vmatprep.mubr.bf16.mxu0 0
    %2515 = vmatmul.mubr.bf16.gmra.mrb[0].mxu0 %v2410
    %v2516 = vpop.f32.mrb[0].mxu0
    %v2517 = vadd.f32 0.0, %v2516
    %v2518 = vpop.f32.mrb[0].mxu0
    %v2519 = vpop.f32.mrb[0].mxu0
    %v2520 = vadd.f32 0.0, %v2519
    %v2521 = vpop.f32.mrb[0].mxu0
    %2522 = vmatprep.mubr.bf16.mxu0 0
    %2523 = vmatmul.mubr.bf16.gmra.mrb[0].mxu0 %v2413
    %v2524 = vpop.f32.mrb[0].mxu0
    %v2525 = vadd.f32 0.0, %v2524
    %v2526 = vpop.f32.mrb[0].mxu0
    %v2527 = vpop.f32.mrb[0].mxu0
    %v2528 = vadd.f32 0.0, %v2527
    %v2529 = vpop.f32.mrb[0].mxu0
    %2530 = vmatprep.mubr.bf16.mxu0 0
    %2531 = vmatmul.mubr.bf16.gmra.mrb[0].mxu0 %v2416
    %v2532 = vpop.f32.mrb[0].mxu0
    %v2533 = vadd.f32 0.0, %v2532
    %v2534 = vpop.f32.mrb[0].mxu0
    %v2535 = vpop.f32.mrb[0].mxu0
    %v2536 = vadd.f32 0.0, %v2535
    %v2537 = vpop.f32.mrb[0].mxu0
    %2538 = vmatprep.mubr.bf16.mxu0 0
    %2539 = vmatmul.mubr.bf16.gmra.mrb[0].mxu0 %v2419
    %v2540 = vpop.f32.mrb[0].mxu0
    %v2541 = vadd.f32 0.0, %v2540
    %v2542 = vpop.f32.mrb[0].mxu0
    %v2543 = vpop.f32.mrb[0].mxu0
    %v2544 = vadd.f32 0.0, %v2543
    %v2545 = vpop.f32.mrb[0].mxu0
    %2546 = vmatprep.mubr.bf16.mxu0 0
    %2547 = vmatmul.mubr.bf16.gmra.mrb[0].mxu0 %v2422
    %v2548 = vpop.f32.mrb[0].mxu0
    %v2549 = vadd.f32 0.0, %v2548
    %v2550 = vpop.f32.mrb[0].mxu0
    %v2551 = vpop.f32.mrb[0].mxu0
    %v2552 = vadd.f32 0.0, %v2551
    %v2553 = vpop.f32.mrb[0].mxu0
    %2554 = vmatprep.mubr.bf16.mxu0 0
    %2555 = vmatmul.mubr.bf16.gmra.mrb[0].mxu0 %v2425
    %v2556 = vpop.f32.mrb[0].mxu0
    %v2557 = vadd.f32 0.0, %v2556
    %v2558 = vpop.f32.mrb[0].mxu0
    %v2559 = vpop.f32.mrb[0].mxu0
    %v2560 = vadd.f32 0.0, %v2559
    %v2561 = vpop.f32.mrb[0].mxu0
    %2562 = vmatprep.mubr.bf16.mxu0 0
    %2563 = vmatmul.mubr.bf16.gmra.mrb[0].mxu0 %v2428
    %v2564 = vpop.f32.mrb[0].mxu0
    %v2565 = vadd.f32 0.0, %v2564
    %v2566 = vpop.f32.mrb[0].mxu0
    %v2567 = vpop.f32.mrb[0].mxu0
    %v2568 = vadd.f32 0.0, %v2567
    %v2569 = vpop.f32.mrb[0].mxu0
    %2570 = vmatprep.mubr.bf16.mxu0 0
    %2571 = vmatmul.mubr.bf16.gmra.mrb[0].mxu0 %v2431
    %v2572 = vpop.f32.mrb[0].mxu0
    %v2573 = vadd.f32 0.0, %v2572
    %v2574 = vpop.f32.mrb[0].mxu0
    %v2575 = vpop.f32.mrb[0].mxu0
    %v2576 = vadd.f32 0.0, %v2575
    %v2577 = vpop.f32.mrb[0].mxu0
    %2578 = vmatprep.mubr.bf16.mxu0 0
    %2579 = vmatmul.mubr.bf16.gmra.mrb[0].mxu0 %v2434
    %v2580 = vpop.f32.mrb[0].mxu0
    %v2581 = vadd.f32 0.0, %v2580
    %v2582 = vpop.f32.mrb[0].mxu0
    %v2583 = vpop.f32.mrb[0].mxu0
    %v2584 = vadd.f32 0.0, %v2583
    %v2585 = vpop.f32.mrb[0].mxu0
    %2586 = vmatprep.mubr.bf16.mxu0 0
    %2587 = vmatmul.mubr.bf16.gmra.mrb[0].mxu0 %v2437
    %v2588 = vpop.f32.mrb[0].mxu0
    %v2589 = vadd.f32 0.0, %v2588
    %v2590 = vpop.f32.mrb[0].mxu0
    %v2591 = vpop.f32.mrb[0].mxu0
    %v2592 = vadd.f32 0.0, %v2591
    %v2593 = vpop.f32.mrb[0].mxu0
    %2594 = vmatprep.mubr.bf16.mxu0 0
    %2595 = vmatmul.mubr.bf16.gmra.mrb[0].mxu0 %v2440
    %v2596 = vpop.f32.mrb[0].mxu0
    %v2597 = vadd.f32 0.0, %v2596
    %v2598 = vpop.f32.mrb[0].mxu0
    %v2599 = vpop.f32.mrb[0].mxu0
    %v2600 = vadd.f32 0.0, %v2599
    %v2601 = vpop.f32.mrb[0].mxu0
    %2602 = vdwg.mxu0
    %v2603 = vadd.f32 %v2235, %v2477
    %v2604 = vadd.f32 %v2238, %v2480
    %v2605 = vadd.f32 %v2243, %v2485
    %v2606 = vadd.f32 %v2246, %v2488
    %v2607 = vadd.f32 %v2251, %v2493
    %v2608 = vadd.f32 %v2254, %v2496
    %v2609 = vadd.f32 %v2259, %v2501
    %v2610 = vadd.f32 %v2262, %v2504
    %v2611 = vadd.f32 %v2267, %v2509
    %v2612 = vadd.f32 %v2270, %v2512
    %v2613 = vadd.f32 %v2275, %v2517
    %v2614 = vadd.f32 %v2278, %v2520
    %v2615 = vadd.f32 %v2283, %v2525
    %v2616 = vadd.f32 %v2286, %v2528
    %v2617 = vadd.f32 %v2291, %v2533
    %v2618 = vadd.f32 %v2294, %v2536
    %v2619 = vadd.f32 %v2299, %v2541
    %v2620 = vadd.f32 %v2302, %v2544
    %v2621 = vadd.f32 %v2307, %v2549
    %v2622 = vadd.f32 %v2310, %v2552
    %v2623 = vadd.f32 %v2315, %v2557
    %v2624 = vadd.f32 %v2318, %v2560
    %v2625 = vadd.f32 %v2323, %v2565
    %v2626 = vadd.f32 %v2326, %v2568
    %v2627 = vadd.f32 %v2331, %v2573
    %v2628 = vadd.f32 %v2334, %v2576
    %v2629 = vadd.f32 %v2339, %v2581
    %v2630 = vadd.f32 %v2342, %v2584
    %v2631 = vadd.f32 %v2347, %v2589
    %v2632 = vadd.f32 %v2350, %v2592
    %v2633 = vadd.f32 %v2355, %v2597
    %v2634 = vadd.f32 %v2358, %v2600
    %v2635 = vld [vmem:[%s6] sm:$0x1]
    %v2637 = vlaneseq
    %v2638 = vshrl.u32 %v2637, 7
    %v2639 = vsub.s32 0, %v2638
    %v2640 = vrot.slane %v2635, %v2639
    %v2642 = vadd.f32 %v2603, %v2640
    %v2643 = vadd.f32 %v2604, %v2640
    %v2644 = vadd.f32 %v2605, %v2640
    %v2645 = vadd.f32 %v2606, %v2640
    %v2646 = vadd.f32 %v2607, %v2640
    %v2647 = vadd.f32 %v2608, %v2640
    %v2648 = vadd.f32 %v2609, %v2640
    %v2649 = vadd.f32 %v2610, %v2640
    %v2650 = vadd.f32 %v2611, %v2640
    %v2651 = vadd.f32 %v2612, %v2640
    %v2652 = vadd.f32 %v2613, %v2640
    %v2653 = vadd.f32 %v2614, %v2640
    %v2654 = vadd.f32 %v2615, %v2640
    %v2655 = vadd.f32 %v2616, %v2640
    %v2656 = vadd.f32 %v2617, %v2640
    %v2657 = vadd.f32 %v2618, %v2640
    %v2658 = vadd.f32 %v2619, %v2640
    %v2659 = vadd.f32 %v2620, %v2640
    %v2660 = vadd.f32 %v2621, %v2640
    %v2661 = vadd.f32 %v2622, %v2640
    %v2662 = vadd.f32 %v2623, %v2640
    %v2663 = vadd.f32 %v2624, %v2640
    %v2664 = vadd.f32 %v2625, %v2640
    %v2665 = vadd.f32 %v2626, %v2640
    %v2666 = vadd.f32 %v2627, %v2640
    %v2667 = vadd.f32 %v2628, %v2640
    %v2668 = vadd.f32 %v2629, %v2640
    %v2669 = vadd.f32 %v2630, %v2640
    %v2670 = vadd.f32 %v2631, %v2640
    %v2671 = vadd.f32 %v2632, %v2640
    %v2672 = vadd.f32 %v2633, %v2640
    %v2673 = vadd.f32 %v2634, %v2640
    %v2674 = vmax.f32 %v2642, 0.0
    %v2675 = vmax.f32 %v2643, 0.0
    %v2676 = vmax.f32 %v2644, 0.0
    %v2677 = vmax.f32 %v2645, 0.0
    %v2678 = vmax.f32 %v2646, 0.0
    %v2679 = vmax.f32 %v2647, 0.0
    %v2680 = vmax.f32 %v2648, 0.0
    %v2681 = vmax.f32 %v2649, 0.0
    %v2682 = vmax.f32 %v2650, 0.0
    %v2683 = vmax.f32 %v2651, 0.0
    %v2684 = vmax.f32 %v2652, 0.0
    %v2685 = vmax.f32 %v2653, 0.0
    %v2686 = vmax.f32 %v2654, 0.0
    %v2687 = vmax.f32 %v2655, 0.0
    %v2688 = vmax.f32 %v2656, 0.0
    %v2689 = vmax.f32 %v2657, 0.0
    %v2690 = vmax.f32 %v2658, 0.0
    %v2691 = vmax.f32 %v2659, 0.0
    %v2692 = vmax.f32 %v2660, 0.0
    %v2693 = vmax.f32 %v2661, 0.0
    %v2694 = vmax.f32 %v2662, 0.0
    %v2695 = vmax.f32 %v2663, 0.0
    %v2696 = vmax.f32 %v2664, 0.0
    %v2697 = vmax.f32 %v2665, 0.0
    %v2698 = vmax.f32 %v2666, 0.0
    %v2699 = vmax.f32 %v2667, 0.0
    %v2700 = vmax.f32 %v2668, 0.0
    %v2701 = vmax.f32 %v2669, 0.0
    %v2702 = vmax.f32 %v2670, 0.0
    %v2703 = vmax.f32 %v2671, 0.0
    %v2704 = vmax.f32 %v2672, 0.0
    %v2705 = vmax.f32 %v2673, 0.0
    %2706 = vst.msk [vmem:[#allocation3] sm:$0xff] %vm976, 0
    %2707 = vst.msk [vmem:[#allocation3 + $0x8] sm:$0xff] %vm976, 0
    %2708 = vst.msk [vmem:[#allocation3 + $0x10] sm:$0xff] %vm976, 0
    %2709 = vst.msk [vmem:[#allocation3 + $0x18] sm:$0xff] %vm976, 0
    %v2710 = vpack.c.bf16 %v2675, %v2674
    %v2711 = vpack.c.bf16 %v2677, %v2676
    %v2712 = vpack.c.bf16 %v2679, %v2678
    %v2713 = vpack.c.bf16 %v2681, %v2680
    %v2714 = vpack.c.bf16 %v2683, %v2682
    %v2715 = vpack.c.bf16 %v2685, %v2684
    %v2716 = vpack.c.bf16 %v2687, %v2686
    %v2717 = vpack.c.bf16 %v2689, %v2688
    %v2718 = vpack.c.bf16 %v2691, %v2690
    %v2719 = vpack.c.bf16 %v2693, %v2692
    %v2720 = vpack.c.bf16 %v2695, %v2694
    %v2721 = vpack.c.bf16 %v2697, %v2696
    %v2722 = vpack.c.bf16 %v2699, %v2698
    %v2723 = vpack.c.bf16 %v2701, %v2700
    %v2724 = vpack.c.bf16 %v2703, %v2702
    %v2725 = vpack.c.bf16 %v2705, %v2704
    %s2726 = scalar_lea.vmem [#allocation3], 32
    %2727 = vst.msk [vmem:[%s2726] sm:$0xff] %vm976, %v2710
    %2728 = vst.msk [vmem:[%s2726 + $0x8] sm:$0xff] %vm976, %v2711
    %2729 = vst.msk [vmem:[%s2726 + $0x10] sm:$0xff] %vm976, %v2712
    %2730 = vst.msk [vmem:[%s2726 + $0x18] sm:$0xff] %vm976, %v2713
    %2731 = vst.msk [vmem:[%s2726 + $0x20] sm:$0xff] %vm976, %v2714
    %2732 = vst.msk [vmem:[%s2726 + $0x28] sm:$0xff] %vm976, %v2715
    %2733 = vst.msk [vmem:[%s2726 + $0x30] sm:$0xff] %vm976, %v2716
    %2734 = vst.msk [vmem:[%s2726 + $0x38] sm:$0xff] %vm976, %v2717
    %2735 = vst.msk [vmem:[%s2726 + $0x40] sm:$0xff] %vm976, %v2718
    %2736 = vst.msk [vmem:[%s2726 + $0x48] sm:$0xff] %vm976, %v2719
    %2737 = vst.msk [vmem:[%s2726 + $0x50] sm:$0xff] %vm976, %v2720
    %2738 = vst.msk [vmem:[%s2726 + $0x58] sm:$0xff] %vm976, %v2721
    %2739 = vst.msk [vmem:[%s2726 + $0x60] sm:$0xff] %vm976, %v2722
    %2740 = vst.msk [vmem:[%s2726 + $0x68] sm:$0xff] %vm976, %v2723
    %2741 = vst.msk [vmem:[%s2726 + $0x70] sm:$0xff] %vm976, %v2724
    %2742 = vst.msk [vmem:[%s2726 + $0x78] sm:$0xff] %vm976, %v2725
    %v2743 = vld [vmem:[#allocation3] sm:$0xff]
    %v2744 = vld [vmem:[#allocation3 + $0x8] sm:$0xff]
    %v2745 = vld [vmem:[#allocation3 + $0x10] sm:$0xff]
    %v2746 = vld [vmem:[#allocation3 + $0x18] sm:$0xff]
    %v2747 = vld [vmem:[#allocation3 + $0x20] sm:$0xff]
    %v2748 = vld [vmem:[#allocation3 + $0x28] sm:$0xff]
    %v2749 = vld [vmem:[#allocation3 + $0x30] sm:$0xff]
    %v2750 = vld [vmem:[#allocation3 + $0x38] sm:$0xff]
    %v2751 = vld [vmem:[#allocation3 + $0x40] sm:$0xff]
    %v2752 = vld [vmem:[#allocation3 + $0x48] sm:$0xff]
    %v2753 = vld [vmem:[#allocation3 + $0x50] sm:$0xff]
    %v2754 = vld [vmem:[#allocation3 + $0x58] sm:$0xff]
    %v2755 = vld [vmem:[#allocation3 + $0x60] sm:$0xff]
    %v2756 = vld [vmem:[#allocation3 + $0x68] sm:$0xff]
    %v2757 = vld [vmem:[#allocation3 + $0x70] sm:$0xff]
    %v2758 = vld [vmem:[#allocation3 + $0x78] sm:$0xff]
    %v2759 = vld [vmem:[%s7] sm:$0xf]
    %v2760 = vld [vmem:[%s7 + $0x4] sm:$0xf]
    %v2761 = vld [vmem:[%s7 + $0x8] sm:$0xf]
    %v2762 = vld [vmem:[%s7 + $0xc] sm:$0xf]
    %v2763 = vld [vmem:[%s995] sm:$0xff]
    %v2764 = vld [vmem:[%s995 + $0x8] sm:$0xff]
    %v2765 = vld [vmem:[%s995 + $0x10] sm:$0xff]
    %v2766 = vld [vmem:[%s995 + $0x18] sm:$0xff]
    %v2767 = vld [vmem:[%s995 + $0x20] sm:$0xff]
    %v2768 = vld [vmem:[%s995 + $0x28] sm:$0xff]
    %v2769 = vld [vmem:[%s995 + $0x30] sm:$0xff]
    %v2770 = vld [vmem:[%s995 + $0x38] sm:$0xff]
    %v2771 = vld [vmem:[%s995 + $0x40] sm:$0xff]
    %v2772 = vld [vmem:[%s995 + $0x48] sm:$0xff]
    %v2773 = vld [vmem:[%s995 + $0x50] sm:$0xff]
    %v2774 = vld [vmem:[%s995 + $0x58] sm:$0xff]
    %v2775 = vld [vmem:[%s995 + $0x60] sm:$0xff]
    %v2776 = vld [vmem:[%s995 + $0x68] sm:$0xff]
    %v2777 = vld [vmem:[%s995 + $0x70] sm:$0xff]
    %v2778 = vld [vmem:[%s995 + $0x78] sm:$0xff]
    %s2779 = scalar_lea.vmem %s7, 16
    %v2780 = vld [vmem:[%s2779] sm:$0xf]
    %v2781 = vld [vmem:[%s2779 + $0x4] sm:$0xf]
    %v2782 = vld [vmem:[%s2779 + $0x8] sm:$0xf]
    %v2783 = vld [vmem:[%s2779 + $0xc] sm:$0xf]
    %v2788 = vunpack.c.l.b16 %v2780
    %v2789 = vunpack.c.l.b16 %v2781
    %v2790 = vunpack.c.l.b16 %v2782
    %v2791 = vunpack.c.l.b16 %v2783
    %v2792 = vpack.c.b16 %v2789, %v2788
    %v2793 = vpack.c.b16 %v2791, %v2790
    %v2797 = vsel %vm976, %v2763, 0
    %v2800 = vsel %vm976, %v2764, 0
    %v2803 = vsel %vm976, %v2765, 0
    %v2806 = vsel %vm976, %v2766, 0
    %v2809 = vsel %vm976, %v2767, 0
    %v2812 = vsel %vm976, %v2768, 0
    %v2815 = vsel %vm976, %v2769, 0
    %v2818 = vsel %vm976, %v2770, 0
    %v2821 = vsel %vm976, %v2771, 0
    %v2824 = vsel %vm976, %v2772, 0
    %v2827 = vsel %vm976, %v2773, 0
    %v2830 = vsel %vm976, %v2774, 0
    %v2833 = vsel %vm976, %v2775, 0
    %v2836 = vsel %vm976, %v2776, 0
    %v2839 = vsel %vm976, %v2777, 0
    %v2842 = vsel %vm976, %v2778, 0
    %2844 = vmatprep.subr.bf16.mxu0 0
    %2845 = vmatpush1.bf16.msra.mxu0 %v2792
    %2846 = vmatprep.subr.bf16.mxu0 0
    %2847 = vmatpush1.bf16.msra.mxu0 %v2793
    %2848 = vmatprep.subr.bf16.mxu0 0
    %2849 = vmatpush1.bf16.msra.mxu0 0
    %2850 = vmatprep.subr.bf16.mxu0 0
    %2851 = vmatpush1.bf16.msra.mxu0 0
    %2852 = vmatprep.subr.bf16.mxu0 0
    %2853 = vmatpush1.bf16.msra.mxu0 0
    %2854 = vmatprep.subr.bf16.mxu0 0
    %2855 = vmatpush1.bf16.msra.mxu0 0
    %2856 = vmatprep.subr.bf16.mxu0 0
    %2857 = vmatpush1.bf16.msra.mxu0 0
    %2858 = vmatprep.subr.bf16.mxu0 0
    %2859 = vmatpush1.bf16.msra.mxu0 0
    %2860 = vmatprep.subr.bf16.mxu0 0
    %2861 = vmatpush1.bf16.msra.mxu0 0
    %2862 = vmatprep.subr.bf16.mxu0 0
    %2863 = vmatpush1.bf16.msra.mxu0 0
    %2864 = vmatprep.subr.bf16.mxu0 0
    %2865 = vmatpush1.bf16.msra.mxu0 0
    %2866 = vmatprep.subr.bf16.mxu0 0
    %2867 = vmatpush1.bf16.msra.mxu0 0
    %2868 = vmatprep.subr.bf16.mxu0 0
    %2869 = vmatpush1.bf16.msra.mxu0 0
    %2870 = vmatprep.subr.bf16.mxu0 0
    %2871 = vmatpush1.bf16.msra.mxu0 0
    %2872 = vmatprep.subr.bf16.mxu0 0
    %2873 = vmatpush1.bf16.msra.mxu0 0
    %2874 = vmatprep.subr.bf16.mxu0 0
    %2875 = vmatpush1.bf16.msra.mxu0 0
    %2876 = vmatprep.mubr.bf16.mxu0 0
    %2877 = vmatmul.mubr.bf16.gmra.mrb[0].mxu0 %v2797
    %v2878 = vpop.f32.mrb[0].mxu0
    %v2879 = vadd.f32 0.0, %v2878
    %v2880 = vpop.f32.mrb[0].mxu0
    %v2881 = vpop.f32.mrb[0].mxu0
    %v2882 = vadd.f32 0.0, %v2881
    %v2883 = vpop.f32.mrb[0].mxu0
    %2884 = vmatprep.mubr.bf16.mxu0 0
    %2885 = vmatmul.mubr.bf16.gmra.mrb[0].mxu0 %v2800
    %v2886 = vpop.f32.mrb[0].mxu0
    %v2887 = vadd.f32 0.0, %v2886
    %v2888 = vpop.f32.mrb[0].mxu0
    %v2889 = vpop.f32.mrb[0].mxu0
    %v2890 = vadd.f32 0.0, %v2889
    %v2891 = vpop.f32.mrb[0].mxu0
    %2892 = vmatprep.mubr.bf16.mxu0 0
    %2893 = vmatmul.mubr.bf16.gmra.mrb[0].mxu0 %v2803
    %v2894 = vpop.f32.mrb[0].mxu0
    %v2895 = vadd.f32 0.0, %v2894
    %v2896 = vpop.f32.mrb[0].mxu0
    %v2897 = vpop.f32.mrb[0].mxu0
    %v2898 = vadd.f32 0.0, %v2897
    %v2899 = vpop.f32.mrb[0].mxu0
    %2900 = vmatprep.mubr.bf16.mxu0 0
    %2901 = vmatmul.mubr.bf16.gmra.mrb[0].mxu0 %v2806
    %v2902 = vpop.f32.mrb[0].mxu0
    %v2903 = vadd.f32 0.0, %v2902
    %v2904 = vpop.f32.mrb[0].mxu0
    %v2905 = vpop.f32.mrb[0].mxu0
    %v2906 = vadd.f32 0.0, %v2905
    %v2907 = vpop.f32.mrb[0].mxu0
    %2908 = vmatprep.mubr.bf16.mxu0 0
    %2909 = vmatmul.mubr.bf16.gmra.mrb[0].mxu0 %v2809
    %v2910 = vpop.f32.mrb[0].mxu0
    %v2911 = vadd.f32 0.0, %v2910
    %v2912 = vpop.f32.mrb[0].mxu0
    %v2913 = vpop.f32.mrb[0].mxu0
    %v2914 = vadd.f32 0.0, %v2913
    %v2915 = vpop.f32.mrb[0].mxu0
    %2916 = vmatprep.mubr.bf16.mxu0 0
    %2917 = vmatmul.mubr.bf16.gmra.mrb[0].mxu0 %v2812
    %v2918 = vpop.f32.mrb[0].mxu0
    %v2919 = vadd.f32 0.0, %v2918
    %v2920 = vpop.f32.mrb[0].mxu0
    %v2921 = vpop.f32.mrb[0].mxu0
    %v2922 = vadd.f32 0.0, %v2921
    %v2923 = vpop.f32.mrb[0].mxu0
    %2924 = vmatprep.mubr.bf16.mxu0 0
    %2925 = vmatmul.mubr.bf16.gmra.mrb[0].mxu0 %v2815
    %v2926 = vpop.f32.mrb[0].mxu0
    %v2927 = vadd.f32 0.0, %v2926
    %v2928 = vpop.f32.mrb[0].mxu0
    %v2929 = vpop.f32.mrb[0].mxu0
    %v2930 = vadd.f32 0.0, %v2929
    %v2931 = vpop.f32.mrb[0].mxu0
    %2932 = vmatprep.mubr.bf16.mxu0 0
    %2933 = vmatmul.mubr.bf16.gmra.mrb[0].mxu0 %v2818
    %v2934 = vpop.f32.mrb[0].mxu0
    %v2935 = vadd.f32 0.0, %v2934
    %v2936 = vpop.f32.mrb[0].mxu0
    %v2937 = vpop.f32.mrb[0].mxu0
    %v2938 = vadd.f32 0.0, %v2937
    %v2939 = vpop.f32.mrb[0].mxu0
    %2940 = vmatprep.mubr.bf16.mxu0 0
    %2941 = vmatmul.mubr.bf16.gmra.mrb[0].mxu0 %v2821
    %v2942 = vpop.f32.mrb[0].mxu0
    %v2943 = vadd.f32 0.0, %v2942
    %v2944 = vpop.f32.mrb[0].mxu0
    %v2945 = vpop.f32.mrb[0].mxu0
    %v2946 = vadd.f32 0.0, %v2945
    %v2947 = vpop.f32.mrb[0].mxu0
    %2948 = vmatprep.mubr.bf16.mxu0 0
    %2949 = vmatmul.mubr.bf16.gmra.mrb[0].mxu0 %v2824
    %v2950 = vpop.f32.mrb[0].mxu0
    %v2951 = vadd.f32 0.0, %v2950
    %v2952 = vpop.f32.mrb[0].mxu0
    %v2953 = vpop.f32.mrb[0].mxu0
    %v2954 = vadd.f32 0.0, %v2953
    %v2955 = vpop.f32.mrb[0].mxu0
    %2956 = vmatprep.mubr.bf16.mxu0 0
    %2957 = vmatmul.mubr.bf16.gmra.mrb[0].mxu0 %v2827
    %v2958 = vpop.f32.mrb[0].mxu0
    %v2959 = vadd.f32 0.0, %v2958
    %v2960 = vpop.f32.mrb[0].mxu0
    %v2961 = vpop.f32.mrb[0].mxu0
    %v2962 = vadd.f32 0.0, %v2961
    %v2963 = vpop.f32.mrb[0].mxu0
    %2964 = vmatprep.mubr.bf16.mxu0 0
    %2965 = vmatmul.mubr.bf16.gmra.mrb[0].mxu0 %v2830
    %v2966 = vpop.f32.mrb[0].mxu0
    %v2967 = vadd.f32 0.0, %v2966
    %v2968 = vpop.f32.mrb[0].mxu0
    %v2969 = vpop.f32.mrb[0].mxu0
    %v2970 = vadd.f32 0.0, %v2969
    %v2971 = vpop.f32.mrb[0].mxu0
    %2972 = vmatprep.mubr.bf16.mxu0 0
    %2973 = vmatmul.mubr.bf16.gmra.mrb[0].mxu0 %v2833
    %v2974 = vpop.f32.mrb[0].mxu0
    %v2975 = vadd.f32 0.0, %v2974
    %v2976 = vpop.f32.mrb[0].mxu0
    %v2977 = vpop.f32.mrb[0].mxu0
    %v2978 = vadd.f32 0.0, %v2977
    %v2979 = vpop.f32.mrb[0].mxu0
    %2980 = vmatprep.mubr.bf16.mxu0 0
    %2981 = vmatmul.mubr.bf16.gmra.mrb[0].mxu0 %v2836
    %v2982 = vpop.f32.mrb[0].mxu0
    %v2983 = vadd.f32 0.0, %v2982
    %v2984 = vpop.f32.mrb[0].mxu0
    %v2985 = vpop.f32.mrb[0].mxu0
    %v2986 = vadd.f32 0.0, %v2985
    %v2987 = vpop.f32.mrb[0].mxu0
    %2988 = vmatprep.mubr.bf16.mxu0 0
    %2989 = vmatmul.mubr.bf16.gmra.mrb[0].mxu0 %v2839
    %v2990 = vpop.f32.mrb[0].mxu0
    %v2991 = vadd.f32 0.0, %v2990
    %v2992 = vpop.f32.mrb[0].mxu0
    %v2993 = vpop.f32.mrb[0].mxu0
    %v2994 = vadd.f32 0.0, %v2993
    %v2995 = vpop.f32.mrb[0].mxu0
    %2996 = vmatprep.mubr.bf16.mxu0 0
    %2997 = vmatmul.mubr.bf16.gmra.mrb[0].mxu0 %v2842
    %v2998 = vpop.f32.mrb[0].mxu0
    %v2999 = vadd.f32 0.0, %v2998
    %v3000 = vpop.f32.mrb[0].mxu0
    %v3001 = vpop.f32.mrb[0].mxu0
    %v3002 = vadd.f32 0.0, %v3001
    %v3003 = vpop.f32.mrb[0].mxu0
    %3004 = vdwg.mxu0
    %v3009 = vunpack.c.l.b16 %v2759
    %v3010 = vunpack.c.l.b16 %v2760
    %v3011 = vunpack.c.l.b16 %v2761
    %v3012 = vunpack.c.l.b16 %v2762
    %v3013 = vpack.c.b16 %v3010, %v3009
    %v3014 = vpack.c.b16 %v3012, %v3011
    %v3018 = vsel %vm976, %v2743, 0
    %v3021 = vsel %vm976, %v2744, 0
    %v3024 = vsel %vm976, %v2745, 0
    %v3027 = vsel %vm976, %v2746, 0
    %v3030 = vsel %vm976, %v2747, 0
    %v3033 = vsel %vm976, %v2748, 0
    %v3036 = vsel %vm976, %v2749, 0
    %v3039 = vsel %vm976, %v2750, 0
    %v3042 = vsel %vm976, %v2751, 0
    %v3045 = vsel %vm976, %v2752, 0
    %v3048 = vsel %vm976, %v2753, 0
    %v3051 = vsel %vm976, %v2754, 0
    %v3054 = vsel %vm976, %v2755, 0
    %v3057 = vsel %vm976, %v2756, 0
    %v3060 = vsel %vm976, %v2757, 0
    %v3063 = vsel %vm976, %v2758, 0
    %3065 = vmatprep.subr.bf16.mxu0 0
    %3066 = vmatpush1.bf16.msra.mxu0 %v3013
    %3067 = vmatprep.subr.bf16.mxu0 0
    %3068 = vmatpush1.bf16.msra.mxu0 %v3014
    %3069 = vmatprep.subr.bf16.mxu0 0
    %3070 = vmatpush1.bf16.msra.mxu0 0
    %3071 = vmatprep.subr.bf16.mxu0 0
    %3072 = vmatpush1.bf16.msra.mxu0 0
    %3073 = vmatprep.subr.bf16.mxu0 0
    %3074 = vmatpush1.bf16.msra.mxu0 0
    %3075 = vmatprep.subr.bf16.mxu0 0
    %3076 = vmatpush1.bf16.msra.mxu0 0
    %3077 = vmatprep.subr.bf16.mxu0 0
    %3078 = vmatpush1.bf16.msra.mxu0 0
    %3079 = vmatprep.subr.bf16.mxu0 0
    %3080 = vmatpush1.bf16.msra.mxu0 0
    %3081 = vmatprep.subr.bf16.mxu0 0
    %3082 = vmatpush1.bf16.msra.mxu0 0
    %3083 = vmatprep.subr.bf16.mxu0 0
    %3084 = vmatpush1.bf16.msra.mxu0 0
    %3085 = vmatprep.subr.bf16.mxu0 0
    %3086 = vmatpush1.bf16.msra.mxu0 0
    %3087 = vmatprep.subr.bf16.mxu0 0
    %3088 = vmatpush1.bf16.msra.mxu0 0
    %3089 = vmatprep.subr.bf16.mxu0 0
    %3090 = vmatpush1.bf16.msra.mxu0 0
    %3091 = vmatprep.subr.bf16.mxu0 0
    %3092 = vmatpush1.bf16.msra.mxu0 0
    %3093 = vmatprep.subr.bf16.mxu0 0
    %3094 = vmatpush1.bf16.msra.mxu0 0
    %3095 = vmatprep.subr.bf16.mxu0 0
    %3096 = vmatpush1.bf16.msra.mxu0 0
    %3097 = vmatprep.mubr.bf16.mxu0 0
    %3098 = vmatmul.mubr.bf16.gmra.mrb[0].mxu0 %v3018
    %v3099 = vpop.f32.mrb[0].mxu0
    %v3100 = vadd.f32 %v2879, %v3099
    %v3101 = vpop.f32.mrb[0].mxu0
    %v3102 = vpop.f32.mrb[0].mxu0
    %v3103 = vadd.f32 %v2882, %v3102
    %v3104 = vpop.f32.mrb[0].mxu0
    %3105 = vmatprep.mubr.bf16.mxu0 0
    %3106 = vmatmul.mubr.bf16.gmra.mrb[0].mxu0 %v3021
    %v3107 = vpop.f32.mrb[0].mxu0
    %v3108 = vadd.f32 %v2887, %v3107
    %v3109 = vpop.f32.mrb[0].mxu0
    %v3110 = vpop.f32.mrb[0].mxu0
    %v3111 = vadd.f32 %v2890, %v3110
    %v3112 = vpop.f32.mrb[0].mxu0
    %3113 = vmatprep.mubr.bf16.mxu0 0
    %3114 = vmatmul.mubr.bf16.gmra.mrb[0].mxu0 %v3024
    %v3115 = vpop.f32.mrb[0].mxu0
    %v3116 = vadd.f32 %v2895, %v3115
    %v3117 = vpop.f32.mrb[0].mxu0
    %v3118 = vpop.f32.mrb[0].mxu0
    %v3119 = vadd.f32 %v2898, %v3118
    %v3120 = vpop.f32.mrb[0].mxu0
    %3121 = vmatprep.mubr.bf16.mxu0 0
    %3122 = vmatmul.mubr.bf16.gmra.mrb[0].mxu0 %v3027
    %v3123 = vpop.f32.mrb[0].mxu0
    %v3124 = vadd.f32 %v2903, %v3123
    %v3125 = vpop.f32.mrb[0].mxu0
    %v3126 = vpop.f32.mrb[0].mxu0
    %v3127 = vadd.f32 %v2906, %v3126
    %v3128 = vpop.f32.mrb[0].mxu0
    %3129 = vmatprep.mubr.bf16.mxu0 0
    %3130 = vmatmul.mubr.bf16.gmra.mrb[0].mxu0 %v3030
    %v3131 = vpop.f32.mrb[0].mxu0
    %v3132 = vadd.f32 %v2911, %v3131
    %v3133 = vpop.f32.mrb[0].mxu0
    %v3134 = vpop.f32.mrb[0].mxu0
    %v3135 = vadd.f32 %v2914, %v3134
    %v3136 = vpop.f32.mrb[0].mxu0
    %3137 = vmatprep.mubr.bf16.mxu0 0
    %3138 = vmatmul.mubr.bf16.gmra.mrb[0].mxu0 %v3033
    %v3139 = vpop.f32.mrb[0].mxu0
    %v3140 = vadd.f32 %v2919, %v3139
    %v3141 = vpop.f32.mrb[0].mxu0
    %v3142 = vpop.f32.mrb[0].mxu0
    %v3143 = vadd.f32 %v2922, %v3142
    %v3144 = vpop.f32.mrb[0].mxu0
    %3145 = vmatprep.mubr.bf16.mxu0 0
    %3146 = vmatmul.mubr.bf16.gmra.mrb[0].mxu0 %v3036
    %v3147 = vpop.f32.mrb[0].mxu0
    %v3148 = vadd.f32 %v2927, %v3147
    %v3149 = vpop.f32.mrb[0].mxu0
    %v3150 = vpop.f32.mrb[0].mxu0
    %v3151 = vadd.f32 %v2930, %v3150
    %v3152 = vpop.f32.mrb[0].mxu0
    %3153 = vmatprep.mubr.bf16.mxu0 0
    %3154 = vmatmul.mubr.bf16.gmra.mrb[0].mxu0 %v3039
    %v3155 = vpop.f32.mrb[0].mxu0
    %v3156 = vadd.f32 %v2935, %v3155
    %v3157 = vpop.f32.mrb[0].mxu0
    %v3158 = vpop.f32.mrb[0].mxu0
    %v3159 = vadd.f32 %v2938, %v3158
    %v3160 = vpop.f32.mrb[0].mxu0
    %3161 = vmatprep.mubr.bf16.mxu0 0
    %3162 = vmatmul.mubr.bf16.gmra.mrb[0].mxu0 %v3042
    %v3163 = vpop.f32.mrb[0].mxu0
    %v3164 = vadd.f32 %v2943, %v3163
    %v3165 = vpop.f32.mrb[0].mxu0
    %v3166 = vpop.f32.mrb[0].mxu0
    %v3167 = vadd.f32 %v2946, %v3166
    %v3168 = vpop.f32.mrb[0].mxu0
    %3169 = vmatprep.mubr.bf16.mxu0 0
    %3170 = vmatmul.mubr.bf16.gmra.mrb[0].mxu0 %v3045
    %v3171 = vpop.f32.mrb[0].mxu0
    %v3172 = vadd.f32 %v2951, %v3171
    %v3173 = vpop.f32.mrb[0].mxu0
    %v3174 = vpop.f32.mrb[0].mxu0
    %v3175 = vadd.f32 %v2954, %v3174
    %v3176 = vpop.f32.mrb[0].mxu0
    %3177 = vmatprep.mubr.bf16.mxu0 0
    %3178 = vmatmul.mubr.bf16.gmra.mrb[0].mxu0 %v3048
    %v3179 = vpop.f32.mrb[0].mxu0
    %v3180 = vadd.f32 %v2959, %v3179
    %v3181 = vpop.f32.mrb[0].mxu0
    %v3182 = vpop.f32.mrb[0].mxu0
    %v3183 = vadd.f32 %v2962, %v3182
    %v3184 = vpop.f32.mrb[0].mxu0
    %3185 = vmatprep.mubr.bf16.mxu0 0
    %3186 = vmatmul.mubr.bf16.gmra.mrb[0].mxu0 %v3051
    %v3187 = vpop.f32.mrb[0].mxu0
    %v3188 = vadd.f32 %v2967, %v3187
    %v3189 = vpop.f32.mrb[0].mxu0
    %v3190 = vpop.f32.mrb[0].mxu0
    %v3191 = vadd.f32 %v2970, %v3190
    %v3192 = vpop.f32.mrb[0].mxu0
    %3193 = vmatprep.mubr.bf16.mxu0 0
    %3194 = vmatmul.mubr.bf16.gmra.mrb[0].mxu0 %v3054
    %v3195 = vpop.f32.mrb[0].mxu0
    %v3196 = vadd.f32 %v2975, %v3195
    %v3197 = vpop.f32.mrb[0].mxu0
    %v3198 = vpop.f32.mrb[0].mxu0
    %v3199 = vadd.f32 %v2978, %v3198
    %v3200 = vpop.f32.mrb[0].mxu0
    %3201 = vmatprep.mubr.bf16.mxu0 0
    %3202 = vmatmul.mubr.bf16.gmra.mrb[0].mxu0 %v3057
    %v3203 = vpop.f32.mrb[0].mxu0
    %v3204 = vadd.f32 %v2983, %v3203
    %v3205 = vpop.f32.mrb[0].mxu0
    %v3206 = vpop.f32.mrb[0].mxu0
    %v3207 = vadd.f32 %v2986, %v3206
    %v3208 = vpop.f32.mrb[0].mxu0
    %3209 = vmatprep.mubr.bf16.mxu0 0
    %3210 = vmatmul.mubr.bf16.gmra.mrb[0].mxu0 %v3060
    %v3211 = vpop.f32.mrb[0].mxu0
    %v3212 = vadd.f32 %v2991, %v3211
    %v3213 = vpop.f32.mrb[0].mxu0
    %v3214 = vpop.f32.mrb[0].mxu0
    %v3215 = vadd.f32 %v2994, %v3214
    %v3216 = vpop.f32.mrb[0].mxu0
    %3217 = vmatprep.mubr.bf16.mxu0 0
    %3218 = vmatmul.mubr.bf16.gmra.mrb[0].mxu0 %v3063
    %v3219 = vpop.f32.mrb[0].mxu0
    %v3220 = vadd.f32 %v2999, %v3219
    %v3221 = vpop.f32.mrb[0].mxu0
    %v3222 = vpop.f32.mrb[0].mxu0
    %v3223 = vadd.f32 %v3002, %v3222
    %v3224 = vpop.f32.mrb[0].mxu0
    %3225 = vdwg.mxu0
    %v3226 = vld [vmem:[%s2726] sm:$0xff]
    %v3227 = vld [vmem:[%s2726 + $0x8] sm:$0xff]
    %v3228 = vld [vmem:[%s2726 + $0x10] sm:$0xff]
    %v3229 = vld [vmem:[%s2726 + $0x18] sm:$0xff]
    %v3230 = vld [vmem:[%s2726 + $0x20] sm:$0xff]
    %v3231 = vld [vmem:[%s2726 + $0x28] sm:$0xff]
    %v3232 = vld [vmem:[%s2726 + $0x30] sm:$0xff]
    %v3233 = vld [vmem:[%s2726 + $0x38] sm:$0xff]
    %v3234 = vld [vmem:[%s2726 + $0x40] sm:$0xff]
    %v3235 = vld [vmem:[%s2726 + $0x48] sm:$0xff]
    %v3236 = vld [vmem:[%s2726 + $0x50] sm:$0xff]
    %v3237 = vld [vmem:[%s2726 + $0x58] sm:$0xff]
    %v3238 = vld [vmem:[%s2726 + $0x60] sm:$0xff]
    %v3239 = vld [vmem:[%s2726 + $0x68] sm:$0xff]
    %v3240 = vld [vmem:[%s2726 + $0x70] sm:$0xff]
    %v3241 = vld [vmem:[%s2726 + $0x78] sm:$0xff]
    %s3242 = scalar_lea.vmem %s7, 32
    %v3243 = vld [vmem:[%s3242] sm:$0xf]
    %v3244 = vld [vmem:[%s3242 + $0x4] sm:$0xf]
    %v3245 = vld [vmem:[%s3242 + $0x8] sm:$0xf]
    %v3246 = vld [vmem:[%s3242 + $0xc] sm:$0xf]
    %v3251 = vunpack.c.l.b16 %v3243
    %v3252 = vunpack.c.l.b16 %v3244
    %v3253 = vunpack.c.l.b16 %v3245
    %v3254 = vunpack.c.l.b16 %v3246
    %v3255 = vpack.c.b16 %v3252, %v3251
    %v3256 = vpack.c.b16 %v3254, %v3253
    %v3260 = vsel %vm976, %v3226, 0
    %v3263 = vsel %vm976, %v3227, 0
    %v3266 = vsel %vm976, %v3228, 0
    %v3269 = vsel %vm976, %v3229, 0
    %v3272 = vsel %vm976, %v3230, 0
    %v3275 = vsel %vm976, %v3231, 0
    %v3278 = vsel %vm976, %v3232, 0
    %v3281 = vsel %vm976, %v3233, 0
    %v3284 = vsel %vm976, %v3234, 0
    %v3287 = vsel %vm976, %v3235, 0
    %v3290 = vsel %vm976, %v3236, 0
    %v3293 = vsel %vm976, %v3237, 0
    %v3296 = vsel %vm976, %v3238, 0
    %v3299 = vsel %vm976, %v3239, 0
    %v3302 = vsel %vm976, %v3240, 0
    %v3305 = vsel %vm976, %v3241, 0
    %3307 = vmatprep.subr.bf16.mxu0 0
    %3308 = vmatpush1.bf16.msra.mxu0 %v3255
    %3309 = vmatprep.subr.bf16.mxu0 0
    %3310 = vmatpush1.bf16.msra.mxu0 %v3256
    %3311 = vmatprep.subr.bf16.mxu0 0
    %3312 = vmatpush1.bf16.msra.mxu0 0
    %3313 = vmatprep.subr.bf16.mxu0 0
    %3314 = vmatpush1.bf16.msra.mxu0 0
    %3315 = vmatprep.subr.bf16.mxu0 0
    %3316 = vmatpush1.bf16.msra.mxu0 0
    %3317 = vmatprep.subr.bf16.mxu0 0
    %3318 = vmatpush1.bf16.msra.mxu0 0
    %3319 = vmatprep.subr.bf16.mxu0 0
    %3320 = vmatpush1.bf16.msra.mxu0 0
    %3321 = vmatprep.subr.bf16.mxu0 0
    %3322 = vmatpush1.bf16.msra.mxu0 0
    %3323 = vmatprep.subr.bf16.mxu0 0
    %3324 = vmatpush1.bf16.msra.mxu0 0
    %3325 = vmatprep.subr.bf16.mxu0 0
    %3326 = vmatpush1.bf16.msra.mxu0 0
    %3327 = vmatprep.subr.bf16.mxu0 0
    %3328 = vmatpush1.bf16.msra.mxu0 0
    %3329 = vmatprep.subr.bf16.mxu0 0
    %3330 = vmatpush1.bf16.msra.mxu0 0
    %3331 = vmatprep.subr.bf16.mxu0 0
    %3332 = vmatpush1.bf16.msra.mxu0 0
    %3333 = vmatprep.subr.bf16.mxu0 0
    %3334 = vmatpush1.bf16.msra.mxu0 0
    %3335 = vmatprep.subr.bf16.mxu0 0
    %3336 = vmatpush1.bf16.msra.mxu0 0
    %3337 = vmatprep.subr.bf16.mxu0 0
    %3338 = vmatpush1.bf16.msra.mxu0 0
    %3339 = vmatprep.mubr.bf16.mxu0 0
    %3340 = vmatmul.mubr.bf16.gmra.mrb[0].mxu0 %v3260
    %v3341 = vpop.f32.mrb[0].mxu0
    %v3342 = vadd.f32 0.0, %v3341
    %v3343 = vpop.f32.mrb[0].mxu0
    %v3344 = vpop.f32.mrb[0].mxu0
    %v3345 = vadd.f32 0.0, %v3344
    %v3346 = vpop.f32.mrb[0].mxu0
    %3347 = vmatprep.mubr.bf16.mxu0 0
    %3348 = vmatmul.mubr.bf16.gmra.mrb[0].mxu0 %v3263
    %v3349 = vpop.f32.mrb[0].mxu0
    %v3350 = vadd.f32 0.0, %v3349
    %v3351 = vpop.f32.mrb[0].mxu0
    %v3352 = vpop.f32.mrb[0].mxu0
    %v3353 = vadd.f32 0.0, %v3352
    %v3354 = vpop.f32.mrb[0].mxu0
    %3355 = vmatprep.mubr.bf16.mxu0 0
    %3356 = vmatmul.mubr.bf16.gmra.mrb[0].mxu0 %v3266
    %v3357 = vpop.f32.mrb[0].mxu0
    %v3358 = vadd.f32 0.0, %v3357
    %v3359 = vpop.f32.mrb[0].mxu0
    %v3360 = vpop.f32.mrb[0].mxu0
    %v3361 = vadd.f32 0.0, %v3360
    %v3362 = vpop.f32.mrb[0].mxu0
    %3363 = vmatprep.mubr.bf16.mxu0 0
    %3364 = vmatmul.mubr.bf16.gmra.mrb[0].mxu0 %v3269
    %v3365 = vpop.f32.mrb[0].mxu0
    %v3366 = vadd.f32 0.0, %v3365
    %v3367 = vpop.f32.mrb[0].mxu0
    %v3368 = vpop.f32.mrb[0].mxu0
    %v3369 = vadd.f32 0.0, %v3368
    %v3370 = vpop.f32.mrb[0].mxu0
    %3371 = vmatprep.mubr.bf16.mxu0 0
    %3372 = vmatmul.mubr.bf16.gmra.mrb[0].mxu0 %v3272
    %v3373 = vpop.f32.mrb[0].mxu0
    %v3374 = vadd.f32 0.0, %v3373
    %v3375 = vpop.f32.mrb[0].mxu0
    %v3376 = vpop.f32.mrb[0].mxu0
    %v3377 = vadd.f32 0.0, %v3376
    %v3378 = vpop.f32.mrb[0].mxu0
    %3379 = vmatprep.mubr.bf16.mxu0 0
    %3380 = vmatmul.mubr.bf16.gmra.mrb[0].mxu0 %v3275
    %v3381 = vpop.f32.mrb[0].mxu0
    %v3382 = vadd.f32 0.0, %v3381
    %v3383 = vpop.f32.mrb[0].mxu0
    %v3384 = vpop.f32.mrb[0].mxu0
    %v3385 = vadd.f32 0.0, %v3384
    %v3386 = vpop.f32.mrb[0].mxu0
    %3387 = vmatprep.mubr.bf16.mxu0 0
    %3388 = vmatmul.mubr.bf16.gmra.mrb[0].mxu0 %v3278
    %v3389 = vpop.f32.mrb[0].mxu0
    %v3390 = vadd.f32 0.0, %v3389
    %v3391 = vpop.f32.mrb[0].mxu0
    %v3392 = vpop.f32.mrb[0].mxu0
    %v3393 = vadd.f32 0.0, %v3392
    %v3394 = vpop.f32.mrb[0].mxu0
    %3395 = vmatprep.mubr.bf16.mxu0 0
    %3396 = vmatmul.mubr.bf16.gmra.mrb[0].mxu0 %v3281
    %v3397 = vpop.f32.mrb[0].mxu0
    %v3398 = vadd.f32 0.0, %v3397
    %v3399 = vpop.f32.mrb[0].mxu0
    %v3400 = vpop.f32.mrb[0].mxu0
    %v3401 = vadd.f32 0.0, %v3400
    %v3402 = vpop.f32.mrb[0].mxu0
    %3403 = vmatprep.mubr.bf16.mxu0 0
    %3404 = vmatmul.mubr.bf16.gmra.mrb[0].mxu0 %v3284
    %v3405 = vpop.f32.mrb[0].mxu0
    %v3406 = vadd.f32 0.0, %v3405
    %v3407 = vpop.f32.mrb[0].mxu0
    %v3408 = vpop.f32.mrb[0].mxu0
    %v3409 = vadd.f32 0.0, %v3408
    %v3410 = vpop.f32.mrb[0].mxu0
    %3411 = vmatprep.mubr.bf16.mxu0 0
    %3412 = vmatmul.mubr.bf16.gmra.mrb[0].mxu0 %v3287
    %v3413 = vpop.f32.mrb[0].mxu0
    %v3414 = vadd.f32 0.0, %v3413
    %v3415 = vpop.f32.mrb[0].mxu0
    %v3416 = vpop.f32.mrb[0].mxu0
    %v3417 = vadd.f32 0.0, %v3416
    %v3418 = vpop.f32.mrb[0].mxu0
    %3419 = vmatprep.mubr.bf16.mxu0 0
    %3420 = vmatmul.mubr.bf16.gmra.mrb[0].mxu0 %v3290
    %v3421 = vpop.f32.mrb[0].mxu0
    %v3422 = vadd.f32 0.0, %v3421
    %v3423 = vpop.f32.mrb[0].mxu0
    %v3424 = vpop.f32.mrb[0].mxu0
    %v3425 = vadd.f32 0.0, %v3424
    %v3426 = vpop.f32.mrb[0].mxu0
    %3427 = vmatprep.mubr.bf16.mxu0 0
    %3428 = vmatmul.mubr.bf16.gmra.mrb[0].mxu0 %v3293
    %v3429 = vpop.f32.mrb[0].mxu0
    %v3430 = vadd.f32 0.0, %v3429
    %v3431 = vpop.f32.mrb[0].mxu0
    %v3432 = vpop.f32.mrb[0].mxu0
    %v3433 = vadd.f32 0.0, %v3432
    %v3434 = vpop.f32.mrb[0].mxu0
    %3435 = vmatprep.mubr.bf16.mxu0 0
    %3436 = vmatmul.mubr.bf16.gmra.mrb[0].mxu0 %v3296
    %v3437 = vpop.f32.mrb[0].mxu0
    %v3438 = vadd.f32 0.0, %v3437
    %v3439 = vpop.f32.mrb[0].mxu0
    %v3440 = vpop.f32.mrb[0].mxu0
    %v3441 = vadd.f32 0.0, %v3440
    %v3442 = vpop.f32.mrb[0].mxu0
    %3443 = vmatprep.mubr.bf16.mxu0 0
    %3444 = vmatmul.mubr.bf16.gmra.mrb[0].mxu0 %v3299
    %v3445 = vpop.f32.mrb[0].mxu0
    %v3446 = vadd.f32 0.0, %v3445
    %v3447 = vpop.f32.mrb[0].mxu0
    %v3448 = vpop.f32.mrb[0].mxu0
    %v3449 = vadd.f32 0.0, %v3448
    %v3450 = vpop.f32.mrb[0].mxu0
    %3451 = vmatprep.mubr.bf16.mxu0 0
    %3452 = vmatmul.mubr.bf16.gmra.mrb[0].mxu0 %v3302
    %v3453 = vpop.f32.mrb[0].mxu0
    %v3454 = vadd.f32 0.0, %v3453
    %v3455 = vpop.f32.mrb[0].mxu0
    %v3456 = vpop.f32.mrb[0].mxu0
    %v3457 = vadd.f32 0.0, %v3456
    %v3458 = vpop.f32.mrb[0].mxu0
    %3459 = vmatprep.mubr.bf16.mxu0 0
    %3460 = vmatmul.mubr.bf16.gmra.mrb[0].mxu0 %v3305
    %v3461 = vpop.f32.mrb[0].mxu0
    %v3462 = vadd.f32 0.0, %v3461
    %v3463 = vpop.f32.mrb[0].mxu0
    %v3464 = vpop.f32.mrb[0].mxu0
    %v3465 = vadd.f32 0.0, %v3464
    %v3466 = vpop.f32.mrb[0].mxu0
    %3467 = vdwg.mxu0
    %v3468 = vadd.f32 %v3100, %v3342
    %v3469 = vadd.f32 %v3103, %v3345
    %v3470 = vadd.f32 %v3108, %v3350
    %v3471 = vadd.f32 %v3111, %v3353
    %v3472 = vadd.f32 %v3116, %v3358
    %v3473 = vadd.f32 %v3119, %v3361
    %v3474 = vadd.f32 %v3124, %v3366
    %v3475 = vadd.f32 %v3127, %v3369
    %v3476 = vadd.f32 %v3132, %v3374
    %v3477 = vadd.f32 %v3135, %v3377
    %v3478 = vadd.f32 %v3140, %v3382
    %v3479 = vadd.f32 %v3143, %v3385
    %v3480 = vadd.f32 %v3148, %v3390
    %v3481 = vadd.f32 %v3151, %v3393
    %v3482 = vadd.f32 %v3156, %v3398
    %v3483 = vadd.f32 %v3159, %v3401
    %v3484 = vadd.f32 %v3164, %v3406
    %v3485 = vadd.f32 %v3167, %v3409
    %v3486 = vadd.f32 %v3172, %v3414
    %v3487 = vadd.f32 %v3175, %v3417
    %v3488 = vadd.f32 %v3180, %v3422
    %v3489 = vadd.f32 %v3183, %v3425
    %v3490 = vadd.f32 %v3188, %v3430
    %v3491 = vadd.f32 %v3191, %v3433
    %v3492 = vadd.f32 %v3196, %v3438
    %v3493 = vadd.f32 %v3199, %v3441
    %v3494 = vadd.f32 %v3204, %v3446
    %v3495 = vadd.f32 %v3207, %v3449
    %v3496 = vadd.f32 %v3212, %v3454
    %v3497 = vadd.f32 %v3215, %v3457
    %v3498 = vadd.f32 %v3220, %v3462
    %v3499 = vadd.f32 %v3223, %v3465
    %v3500 = vld [vmem:[%s8] sm:$0x1]
    %v3502 = vlaneseq
    %v3503 = vshrl.u32 %v3502, 7
    %v3504 = vsub.s32 0, %v3503
    %v3505 = vrot.slane %v3500, %v3504
    %v3507 = vadd.f32 %v3468, %v3505
    %v3508 = vadd.f32 %v3469, %v3505
    %v3509 = vadd.f32 %v3470, %v3505
    %v3510 = vadd.f32 %v3471, %v3505
    %v3511 = vadd.f32 %v3472, %v3505
    %v3512 = vadd.f32 %v3473, %v3505
    %v3513 = vadd.f32 %v3474, %v3505
    %v3514 = vadd.f32 %v3475, %v3505
    %v3515 = vadd.f32 %v3476, %v3505
    %v3516 = vadd.f32 %v3477, %v3505
    %v3517 = vadd.f32 %v3478, %v3505
    %v3518 = vadd.f32 %v3479, %v3505
    %v3519 = vadd.f32 %v3480, %v3505
    %v3520 = vadd.f32 %v3481, %v3505
    %v3521 = vadd.f32 %v3482, %v3505
    %v3522 = vadd.f32 %v3483, %v3505
    %v3523 = vadd.f32 %v3484, %v3505
    %v3524 = vadd.f32 %v3485, %v3505
    %v3525 = vadd.f32 %v3486, %v3505
    %v3526 = vadd.f32 %v3487, %v3505
    %v3527 = vadd.f32 %v3488, %v3505
    %v3528 = vadd.f32 %v3489, %v3505
    %v3529 = vadd.f32 %v3490, %v3505
    %v3530 = vadd.f32 %v3491, %v3505
    %v3531 = vadd.f32 %v3492, %v3505
    %v3532 = vadd.f32 %v3493, %v3505
    %v3533 = vadd.f32 %v3494, %v3505
    %v3534 = vadd.f32 %v3495, %v3505
    %v3535 = vadd.f32 %v3496, %v3505
    %v3536 = vadd.f32 %v3497, %v3505
    %v3537 = vadd.f32 %v3498, %v3505
    %v3538 = vadd.f32 %v3499, %v3505
    %v3539 = vmax.f32 %v3507, 0.0
    %v3540 = vmax.f32 %v3508, 0.0
    %v3541 = vmax.f32 %v3509, 0.0
    %v3542 = vmax.f32 %v3510, 0.0
    %v3543 = vmax.f32 %v3511, 0.0
    %v3544 = vmax.f32 %v3512, 0.0
    %v3545 = vmax.f32 %v3513, 0.0
    %v3546 = vmax.f32 %v3514, 0.0
    %v3547 = vmax.f32 %v3515, 0.0
    %v3548 = vmax.f32 %v3516, 0.0
    %v3549 = vmax.f32 %v3517, 0.0
    %v3550 = vmax.f32 %v3518, 0.0
    %v3551 = vmax.f32 %v3519, 0.0
    %v3552 = vmax.f32 %v3520, 0.0
    %v3553 = vmax.f32 %v3521, 0.0
    %v3554 = vmax.f32 %v3522, 0.0
    %v3555 = vmax.f32 %v3523, 0.0
    %v3556 = vmax.f32 %v3524, 0.0
    %v3557 = vmax.f32 %v3525, 0.0
    %v3558 = vmax.f32 %v3526, 0.0
    %v3559 = vmax.f32 %v3527, 0.0
    %v3560 = vmax.f32 %v3528, 0.0
    %v3561 = vmax.f32 %v3529, 0.0
    %v3562 = vmax.f32 %v3530, 0.0
    %v3563 = vmax.f32 %v3531, 0.0
    %v3564 = vmax.f32 %v3532, 0.0
    %v3565 = vmax.f32 %v3533, 0.0
    %v3566 = vmax.f32 %v3534, 0.0
    %v3567 = vmax.f32 %v3535, 0.0
    %v3568 = vmax.f32 %v3536, 0.0
    %v3569 = vmax.f32 %v3537, 0.0
    %v3570 = vmax.f32 %v3538, 0.0
    %3571 = vst.msk [vmem:[#allocation4] sm:$0xff] %vm976, %v3539
    %3572 = vst.msk [vmem:[#allocation4 + $0x8] sm:$0xff] %vm976, %v3540
    %3573 = vst.msk [vmem:[#allocation4 + $0x10] sm:$0xff] %vm976, %v3541
    %3574 = vst.msk [vmem:[#allocation4 + $0x18] sm:$0xff] %vm976, %v3542
    %3575 = vst.msk [vmem:[#allocation4 + $0x20] sm:$0xff] %vm976, %v3543
    %3576 = vst.msk [vmem:[#allocation4 + $0x28] sm:$0xff] %vm976, %v3544
    %3577 = vst.msk [vmem:[#allocation4 + $0x30] sm:$0xff] %vm976, %v3545
    %3578 = vst.msk [vmem:[#allocation4 + $0x38] sm:$0xff] %vm976, %v3546
    %3579 = vst.msk [vmem:[#allocation4 + $0x40] sm:$0xff] %vm976, %v3547
    %3580 = vst.msk [vmem:[#allocation4 + $0x48] sm:$0xff] %vm976, %v3548
    %3581 = vst.msk [vmem:[#allocation4 + $0x50] sm:$0xff] %vm976, %v3549
    %3582 = vst.msk [vmem:[#allocation4 + $0x58] sm:$0xff] %vm976, %v3550
    %3583 = vst.msk [vmem:[#allocation4 + $0x60] sm:$0xff] %vm976, %v3551
    %3584 = vst.msk [vmem:[#allocation4 + $0x68] sm:$0xff] %vm976, %v3552
    %3585 = vst.msk [vmem:[#allocation4 + $0x70] sm:$0xff] %vm976, %v3553
    %3586 = vst.msk [vmem:[#allocation4 + $0x78] sm:$0xff] %vm976, %v3554
    %3587 = vst.msk [vmem:[#allocation4 + $0x80] sm:$0xff] %vm976, %v3555
    %3588 = vst.msk [vmem:[#allocation4 + $0x88] sm:$0xff] %vm976, %v3556
    %3589 = vst.msk [vmem:[#allocation4 + $0x90] sm:$0xff] %vm976, %v3557
    %3590 = vst.msk [vmem:[#allocation4 + $0x98] sm:$0xff] %vm976, %v3558
    %3591 = vst.msk [vmem:[#allocation4 + $0xa0] sm:$0xff] %vm976, %v3559
    %3592 = vst.msk [vmem:[#allocation4 + $0xa8] sm:$0xff] %vm976, %v3560
    %3593 = vst.msk [vmem:[#allocation4 + $0xb0] sm:$0xff] %vm976, %v3561
    %3594 = vst.msk [vmem:[#allocation4 + $0xb8] sm:$0xff] %vm976, %v3562
    %3595 = vst.msk [vmem:[#allocation4 + $0xc0] sm:$0xff] %vm976, %v3563
    %3596 = vst.msk [vmem:[#allocation4 + $0xc8] sm:$0xff] %vm976, %v3564
    %3597 = vst.msk [vmem:[#allocation4 + $0xd0] sm:$0xff] %vm976, %v3565
    %3598 = vst.msk [vmem:[#allocation4 + $0xd8] sm:$0xff] %vm976, %v3566
    %3599 = vst.msk [vmem:[#allocation4 + $0xe0] sm:$0xff] %vm976, %v3567
    %3600 = vst.msk [vmem:[#allocation4 + $0xe8] sm:$0xff] %vm976, %v3568
    %3601 = vst.msk [vmem:[#allocation4 + $0xf0] sm:$0xff] %vm976, %v3569
    %3602 = vst.msk [vmem:[#allocation4 + $0xf8] sm:$0xff] %vm976, %v3570
    // Predicated region
    $region38: #{tpu_custom_call.1} parent=1 // pred_check
      _
    $region39: #{tpu_custom_call.1} parent=1 // pred_check_branch
      %3604 = sbr.rel (0) target = $region41
    $region40: #{tpu_custom_call.1} parent=1 // pred_region
      %s3606 = ssub.s32 4096, 4096
      %3607 = vsyncadd [#allocation5], %s3606
      %s3608 = sshll.u32 [#allocation4], 4
      %s3609 = int_to_ptr.vmem [resolvable:$true] %s3608
      %3614 = dma.vmem_to_hbm [thread:$0]  %s3609, 4096, %s9, [#allocation5], 128, 128, 8
    $region41: #{tpu_custom_call.1} parent=1 // pred_fallthru
      _
    // Predicated region
    $region42: #{tpu_custom_call.1} parent=1 // pred_check
      _
    $region43: #{tpu_custom_call.1} parent=1 // pred_check_branch
      %3616 = sbr.rel (0) target = $region45
    $region44: #{tpu_custom_call.1} parent=1 // pred_region
      %3617 = dma.done [#allocation5], 4096
    $region45: #{tpu_custom_call.1} parent=1 // pred_fallthru
      _
    %3618 = vsyncpa [#allocation5], 1

</llo_original>
